<compile_context>
chip_gen: v6e
topology: v6e:2x2x1
jax: 0.10.0
libtpu: 0.0.40
codegen_flags: <defaults>
</compile_context>

<pallas_src>
import numpy as np
import jax
import jax.numpy as jnp
from jax.experimental import pallas as pl
from jax.experimental.pallas import tpu as pltpu

D_DIM = 8
EPS_BN = 1e-5
LRELU_SLOPE = 0.2
LANE = 128


def _vmem_spec():
    return pl.BlockSpec(memory_space=pltpu.MemorySpace.VMEM)


# ---------------------------------------------------------------------------
# Glue: spectral normalization (power iteration on the flattened weight)
# ---------------------------------------------------------------------------
def spectral_normalize(w, u0, n_iter=5, eps=1e-12):
    cout = w.shape[0]
    wm = w.reshape(cout, -1)
    u = u0 / (jnp.linalg.norm(u0) + eps)
    v = None
    for _ in range(n_iter):
        v = wm.T @ u
        v = v / (jnp.linalg.norm(v) + eps)
        u = wm @ v
        u = u / (jnp.linalg.norm(u) + eps)
    sigma = u @ (wm @ v)
    return w / sigma


# ---------------------------------------------------------------------------
# Deterministic parameter / constant construction (outside the hot path)
# ---------------------------------------------------------------------------
def make_params(key, n, in_ch=3, d_dim=D_DIM, hw=32):
    channels = [in_ch, d_dim, d_dim * 2, d_dim * 4, d_dim * 8]
    layers = []
    h, w = hw, hw
    for i in range(4):
        ci, co = channels[i], channels[i + 1]
        oh, ow = h // 2, w // 2
        key, k_w, k_u = jax.random.split(key, 3)
        fan_in = ci * 4 * 4
        bound = 1.0 / np.sqrt(fan_in)
        w_conv = jax.random.uniform(k_w, (co, ci, 4, 4), jnp.float32, -bound, bound)
        u0 = jax.random.normal(k_u, (co,), jnp.float32)
        w_sn = np.asarray(spectral_normalize(w_conv, u0))
        # nn.Conv2d bias omitted: a per-channel constant cancels exactly under
        # the batch-statistics BatchNorm that immediately follows.

        l_in = w * ci
        l_pad = ((l_in + LANE - 1) // LANE) * LANE     # 128 for every layer here
        # B_all: (4*l_pad, OW*Cout).  Row block kh*l_pad + (wi*Cin + ci) holds
        # w_sn[:, :, kh, kw].T for wi = 2*ow - 1 + kw; it absorbs the kw taps,
        # the stride-2 column subsampling and the width zero-padding.
        B = np.zeros((4, l_pad, ow * co), np.float32)
        for kh in range(4):
            for ow_i in range(ow):
                for kw_i in range(4):
                    wi = 2 * ow_i - 1 + kw_i            # input column (pad = 1)
                    if 0 <= wi < w:
                        B[kh, wi * ci:(wi + 1) * ci, ow_i * co:(ow_i + 1) * co] = \
                            w_sn[:, :, kh, kw_i].T
        B_all = B.reshape(4 * l_pad, ow * co)
        # M: (OW*Cout, Cout) channel-grouping matrix for BN batch statistics.
        M = np.kron(np.ones((ow, 1), np.float32), np.eye(co, dtype=np.float32))
        layers.append(dict(
            B=jnp.asarray(B_all, dtype=jnp.bfloat16),   # bf16 MXU operand
            M=jnp.asarray(M),                           # f32 (stats precision)
            gamma=jnp.ones((1, co), jnp.float32),
            beta=jnp.zeros((1, co), jnp.float32)))
        h, w = oh, ow

    c_last = channels[-1]
    oh4, ow4 = h, w                                     # final spatial dims (2, 2)
    # P: (N, N*OH4) per-sample row-pooling matrix, scaled by 1/(OH4*OW4).
    P = np.kron(np.eye(n, dtype=np.float32), np.ones((1, oh4), np.float32))
    P = P / float(oh4 * ow4)
    key, k_l, k_b = jax.random.split(key, 3)
    bound = 1.0 / np.sqrt(c_last)
    w_lin = jax.random.uniform(k_l, (c_last, 1), jnp.float32, -bound, bound)
    b_lin = jax.random.uniform(k_b, (1, 1), jnp.float32, -bound, bound)
    head = dict(P=jnp.asarray(P),
                gamma=jnp.ones((1, c_last), jnp.float32),
                beta=jnp.zeros((1, c_last), jnp.float32),
                w=w_lin, b=b_lin)
    return {"layers": layers, "head": head}


# ---------------------------------------------------------------------------
# Forward pass: a single fused Pallas kernel
# ---------------------------------------------------------------------------
@jax.jit
def discriminator_forward(x_nchw, params):
    n, c_in, h0, w0 = x_nchw.shape
    layers = params["layers"]
    head = params["head"]

    # Static per-layer meta: (OH, OW, Cout)
    meta = []
    hh, ww = h0, w0
    for lyr in layers:
        co = lyr["M"].shape[1]
        hh, ww = hh // 2, ww // 2
        meta.append((hh, ww, co))
    n_layers = len(meta)

    # NCHW (PyTorch) -> lane-dense 2-D layout: rows (n, h), lanes (w, c) with c
    # fastest; pad the network-input lane dim up to the B_all contraction width.
    l_in0 = w0 * c_in
    l_pad0 = layers[0]["B"].shape[0] // 4
    x2d = jnp.transpose(x_nchw, (0, 2, 3, 1)).astype(jnp.float32)
    x2d = x2d.reshape(n * h0, l_in0)
    if l_pad0 > l_in0:
        x2d = jnp.pad(x2d, ((0, 0), (0, l_pad0 - l_in0)))

    scr_rows = n * meta[0][0]                 # rows of the largest intermediate
    scr_cols = meta[0][1] * meta[0][2]        # lane width of intermediates (128)
    assert all(m[1] * m[2] == scr_cols for m in meta[:-1])

    def kernel(*refs):
        x_ref = refs[0]
        p_ref, gh_ref, bh_ref, wl_ref, bl_ref = refs[1 + 4 * n_layers: 6 + 4 * n_layers]
        o_ref = refs[6 + 4 * n_layers]
        scr_ref = refs[7 + 4 * n_layers]

        src_ref = x_ref
        y = None
        for li, (oh, ow, co) in enumerate(meta):
            b_ref, m_ref, g_ref, be_ref = refs[1 + 4 * li: 5 + 4 * li]
            r_out = n * oh
            l_src = src_ref.shape[1]

            # ---- conv(k4, s2, p1) as ONE deep-K matmul ---------------------
            # kh=1 taps = even input rows, kh=2 taps = odd input rows: a single
            # stride-2 sublane read each (per-sample blocks stay aligned since
            # H is even).  kh=0 / kh=3 taps are the same data shifted by one
            # output row with zeros at each per-sample boundary.
            xe = src_ref[pl.ds(0, r_out, stride=2), :]          # (r_out, l_src)
            xo = src_ref[pl.ds(1, r_out, stride=2), :]
            zrow = jnp.zeros((1, l_src), jnp.float32)
            g0 = jnp.concatenate([zrow, xo[:-1, :]], axis=0)    # kh = 0 taps
            g3 = jnp.concatenate([xe[1:, :], zrow], axis=0)     # kh = 3 taps
            rid = jax.lax.broadcasted_iota(jnp.int32, (r_out, 1), 0)
            g0 = jnp.where(rid % oh == 0, 0.0, g0)              # top-of-sample pad
            g3 = jnp.where(rid % oh == oh - 1, 0.0, g3)         # bottom-of-sample pad
            gsel = jnp.concatenate([g0, xe, xo, g3], axis=1)    # (r_out, 4*l_src)
            acc = jnp.dot(gsel.astype(jnp.bfloat16), b_ref[...],
                          preferred_element_type=jnp.float32)   # (r_out, ow*co)

            # ---- BatchNorm2d (batch statistics) + LeakyReLU(0.2) -----------
            inv_cnt = 1.0 / float(r_out * ow)
            ssum = jnp.sum(acc, axis=0, keepdims=True)
            ssq = jnp.sum(acc * acc, axis=0, keepdims=True)
            stats = jnp.concatenate([ssum, ssq], axis=0)        # (2, ow*co)
            ch = jnp.dot(stats, m_ref[...],
                         preferred_element_type=jnp.float32)    # (2, co)
            mean = ch[0:1] * inv_cnt
            var = jnp.maximum(ch[1:2] * inv_cnt - mean * mean, 0.0)
            scale = g_ref[...] * jax.lax.rsqrt(var + EPS_BN)    # (1, co)
            shift = be_ref[...] - mean * scale
            scale_f = jnp.concatenate([scale] * ow, axis=1)     # lane tile (ow, c)
            shift_f = jnp.concatenate([shift] * ow, axis=1)
            y = acc * scale_f + shift_f
            y = jnp.where(y >= 0, y, LRELU_SLOPE * y)           # LeakyReLU(0.2)

            if li < n_layers - 1:
                scr_ref[0:r_out, :] = y                         # feed next layer
                src_ref = scr_ref

        # ---- head: AdaptiveAvgPool2d(1) + BN + LeakyReLU(0.2) + Linear -----
        m4_ref = refs[1 + 4 * (n_layers - 1) + 1]               # reuse layer-4 M
        pooled = jnp.dot(
            jnp.dot(p_ref[...], y, preferred_element_type=jnp.float32),
            m4_ref[...], preferred_element_type=jnp.float32)    # (n, C4)
        inv_n = 1.0 / float(n)
        mu = jnp.sum(pooled, axis=0, keepdims=True) * inv_n
        ex2 = jnp.sum(pooled * pooled, axis=0, keepdims=True) * inv_n
        var = jnp.maximum(ex2 - mu * mu, 0.0)
        sc = gh_ref[...] * jax.lax.rsqrt(var + EPS_BN)
        sh = bh_ref[...] - mu * sc
        z = pooled * sc + sh
        z = jnp.where(z >= 0, z, LRELU_SLOPE * z)
        o_ref[...] = jnp.dot(z, wl_ref[...],
                             preferred_element_type=jnp.float32) + bl_ref[...]

    flat = [x2d]
    for lyr in layers:
        flat += [lyr["B"], lyr["M"], lyr["gamma"], lyr["beta"]]
    flat += [head["P"], head["gamma"], head["beta"], head["w"], head["b"]]

    out = pl.pallas_call(
        kernel,
        out_shape=jax.ShapeDtypeStruct((n, 1), jnp.float32),
        in_specs=[_vmem_spec() for _ in flat],
        out_specs=_vmem_spec(),
        scratch_shapes=[pltpu.VMEM((scr_rows, scr_cols), jnp.float32)],
    )(*flat)
    return out.reshape(-1)                                      # matches x.view(-1)


if __name__ == "__main__":
    key = jax.random.PRNGKey(0)
    kx, kp = jax.random.split(key)
    x = jax.random.normal(kx, (2, 3, 32, 32), jnp.float32)      # NCHW input
    params = make_params(kp, n=2)
    out = discriminator_forward(x, params)
    out = jax.block_until_ready(out)
    assert out.shape == (2,) and out.dtype == jnp.float32
    assert bool(jnp.all(jnp.isfinite(out)))
    print("KERNEL_OK")
</pallas_src>

<mosaic_0001>
module attributes {stable_mosaic.version = 11 : i64} {
  func.func @kernel(%arg0: memref<64x128xf32, #tpu.memory_space<vmem>>, %arg1: memref<512x128xbf16, #tpu.memory_space<vmem>>, %arg2: memref<128x8xf32, #tpu.memory_space<vmem>>, %arg3: memref<1x8xf32, #tpu.memory_space<vmem>>, %arg4: memref<1x8xf32, #tpu.memory_space<vmem>>, %arg5: memref<512x128xbf16, #tpu.memory_space<vmem>>, %arg6: memref<128x16xf32, #tpu.memory_space<vmem>>, %arg7: memref<1x16xf32, #tpu.memory_space<vmem>>, %arg8: memref<1x16xf32, #tpu.memory_space<vmem>>, %arg9: memref<512x128xbf16, #tpu.memory_space<vmem>>, %arg10: memref<128x32xf32, #tpu.memory_space<vmem>>, %arg11: memref<1x32xf32, #tpu.memory_space<vmem>>, %arg12: memref<1x32xf32, #tpu.memory_space<vmem>>, %arg13: memref<512x128xbf16, #tpu.memory_space<vmem>>, %arg14: memref<128x64xf32, #tpu.memory_space<vmem>>, %arg15: memref<1x64xf32, #tpu.memory_space<vmem>>, %arg16: memref<1x64xf32, #tpu.memory_space<vmem>>, %arg17: memref<2x4xf32, #tpu.memory_space<vmem>>, %arg18: memref<1x64xf32, #tpu.memory_space<vmem>>, %arg19: memref<1x64xf32, #tpu.memory_space<vmem>>, %arg20: memref<64x1xf32, #tpu.memory_space<vmem>>, %arg21: memref<1x1xf32, #tpu.memory_space<vmem>>, %arg22: memref<2x1xf32, #tpu.memory_space<vmem>>, %arg23: memref<32x128xf32, #tpu.memory_space<vmem>>) attributes {dimension_semantics = [], scalar_prefetch = 0 : i64, scratch_operands = 1 : i64, tpu.core_type = #tpu.core_type<tc>} {
    %c0 = arith.constant 0 : index
    %c0_0 = arith.constant 0 : index
    %0 = tpu.strided_load %arg0[%c0, %c0_0] {strides = array<i32: 2, 1>} : memref<64x128xf32, #tpu.memory_space<vmem>>, vector<32x128xf32>
    %c1 = arith.constant 1 : index
    %c0_1 = arith.constant 0 : index
    %1 = tpu.strided_load %arg0[%c1, %c0_1] {strides = array<i32: 2, 1>} : memref<64x128xf32, #tpu.memory_space<vmem>>, vector<32x128xf32>
    %cst = arith.constant 0.000000e+00 : f32
    %2 = vector.broadcast %cst : f32 to vector<1x128xf32>
    %3 = vector.extract_strided_slice %1 {offsets = [0, 0], sizes = [31, 128], strides = [1, 1]} : vector<32x128xf32> to vector<31x128xf32>
    %4 = tpu.concatenate %2, %3 in 0 : vector<1x128xf32>, vector<31x128xf32> -> vector<32x128xf32>
    %5 = vector.extract_strided_slice %0 {offsets = [1, 0], sizes = [31, 128], strides = [1, 1]} : vector<32x128xf32> to vector<31x128xf32>
    %6 = tpu.concatenate %5, %2 in 0 : vector<31x128xf32>, vector<1x128xf32> -> vector<32x128xf32>
    %7 = tpu.iota {dimensions = array<i32: 0>} : vector<32x1xi32>
    %c16_i32 = arith.constant 16 : i32
    %c0_i32 = arith.constant 0 : i32
    %8 = arith.cmpi eq, %c16_i32, %c0_i32 : i32
    %c1_i32 = arith.constant 1 : i32
    %9 = arith.select %8, %c1_i32, %c16_i32 : i32
    %10 = vector.broadcast %9 : i32 to vector<32x1xi32>
    %11 = arith.remsi %7, %10 : vector<32x1xi32>
    %c0_i32_2 = arith.constant 0 : i32
    %12 = vector.broadcast %c0_i32_2 : i32 to vector<32x1xi32>
    %13 = arith.cmpi ne, %11, %12 : vector<32x1xi32>
    %c0_i32_3 = arith.constant 0 : i32
    %14 = vector.broadcast %c0_i32_3 : i32 to vector<32x1xi32>
    %15 = arith.cmpi slt, %11, %14 : vector<32x1xi32>
    %c0_i32_4 = arith.constant 0 : i32
    %16 = arith.cmpi slt, %9, %c0_i32_4 : i32
    %17 = vector.broadcast %16 : i1 to vector<32x1xi1>
    %18 = vector.broadcast %17 : vector<32x1xi1> to vector<32x1xi1>
    %19 = arith.xori %15, %18 : vector<32x1xi1>
    %20 = arith.andi %19, %13 : vector<32x1xi1>
    %21 = vector.broadcast %9 : i32 to vector<32x1xi32>
    %22 = arith.addi %11, %21 : vector<32x1xi32>
    %23 = arith.select %20, %22, %11 : vector<32x1xi1>, vector<32x1xi32>
    %c0_i32_5 = arith.constant 0 : i32
    %24 = vector.broadcast %c0_i32_5 : i32 to vector<32x1xi32>
    %25 = arith.cmpi eq, %23, %24 : vector<32x1xi32>
    %cst_6 = arith.constant 0.000000e+00 : f32
    %26 = vector.shape_cast %25 : vector<32x1xi1> to vector<32x1xi1>
    %27 = vector.broadcast %26 : vector<32x1xi1> to vector<32x128xi1>
    %28 = vector.broadcast %cst_6 : f32 to vector<32x128xf32>
    %29 = arith.select %27, %28, %4 : vector<32x128xi1>, vector<32x128xf32>
    %c16_i32_7 = arith.constant 16 : i32
    %c0_i32_8 = arith.constant 0 : i32
    %30 = arith.cmpi eq, %c16_i32_7, %c0_i32_8 : i32
    %c1_i32_9 = arith.constant 1 : i32
    %31 = arith.select %30, %c1_i32_9, %c16_i32_7 : i32
    %32 = vector.broadcast %31 : i32 to vector<32x1xi32>
    %33 = arith.remsi %7, %32 : vector<32x1xi32>
    %c0_i32_10 = arith.constant 0 : i32
    %34 = vector.broadcast %c0_i32_10 : i32 to vector<32x1xi32>
    %35 = arith.cmpi ne, %33, %34 : vector<32x1xi32>
    %c0_i32_11 = arith.constant 0 : i32
    %36 = vector.broadcast %c0_i32_11 : i32 to vector<32x1xi32>
    %37 = arith.cmpi slt, %33, %36 : vector<32x1xi32>
    %c0_i32_12 = arith.constant 0 : i32
    %38 = arith.cmpi slt, %31, %c0_i32_12 : i32
    %39 = vector.broadcast %38 : i1 to vector<32x1xi1>
    %40 = vector.broadcast %39 : vector<32x1xi1> to vector<32x1xi1>
    %41 = arith.xori %37, %40 : vector<32x1xi1>
    %42 = arith.andi %41, %35 : vector<32x1xi1>
    %43 = vector.broadcast %31 : i32 to vector<32x1xi32>
    %44 = arith.addi %33, %43 : vector<32x1xi32>
    %45 = arith.select %42, %44, %33 : vector<32x1xi1>, vector<32x1xi32>
    %c15_i32 = arith.constant 15 : i32
    %46 = vector.broadcast %c15_i32 : i32 to vector<32x1xi32>
    %47 = arith.cmpi eq, %45, %46 : vector<32x1xi32>
    %cst_13 = arith.constant 0.000000e+00 : f32
    %48 = vector.shape_cast %47 : vector<32x1xi1> to vector<32x1xi1>
    %49 = vector.broadcast %48 : vector<32x1xi1> to vector<32x128xi1>
    %50 = vector.broadcast %cst_13 : f32 to vector<32x128xf32>
    %51 = arith.select %49, %50, %6 : vector<32x128xi1>, vector<32x128xf32>
    %52 = tpu.concatenate %29, %0, %1, %51 in 1 : vector<32x128xf32>, vector<32x128xf32>, vector<32x128xf32>, vector<32x128xf32> -> vector<32x512xf32>
    %53 = arith.truncf %52 : vector<32x512xf32> to vector<32x512xbf16>
    %c0_14 = arith.constant 0 : index
    %c0_15 = arith.constant 0 : index
    %54 = vector.load %arg1[%c0_14, %c0_15] : memref<512x128xbf16, #tpu.memory_space<vmem>>, vector<512x128xbf16>
    %cst_16 = arith.constant dense<0.000000e+00> : vector<32x128xf32>
    %55 = tpu.matmul %53, %54, %cst_16 {dimension_numbers = #tpu.dot_dimension_numbers<[1], [0], [0], [1], [0, 0, 1, 1], [], []>} : vector<32x512xbf16>, vector<512x128xbf16>, vector<32x128xf32> -> vector<32x128xf32>
    %cst_17 = arith.constant dense<0.000000e+00> : vector<128xf32>
    %56 = vector.multi_reduction <add>, %55, %cst_17 [0] : vector<32x128xf32> to vector<128xf32>
    %57 = vector.shape_cast %56 : vector<128xf32> to vector<1x128xf32>
    %58 = arith.mulf %55, %55 : vector<32x128xf32>
    %cst_18 = arith.constant dense<0.000000e+00> : vector<128xf32>
    %59 = vector.multi_reduction <add>, %58, %cst_18 [0] : vector<32x128xf32> to vector<128xf32>
    %60 = vector.shape_cast %59 : vector<128xf32> to vector<1x128xf32>
    %61 = tpu.concatenate %57, %60 in 0 : vector<1x128xf32>, vector<1x128xf32> -> vector<2x128xf32>
    %c0_19 = arith.constant 0 : index
    %c0_20 = arith.constant 0 : index
    %62 = vector.load %arg2[%c0_19, %c0_20] : memref<128x8xf32, #tpu.memory_space<vmem>>, vector<128x8xf32>
    %cst_21 = arith.constant dense<0.000000e+00> : vector<2x8xf32>
    %63 = tpu.matmul %61, %62, %cst_21 {dimension_numbers = #tpu.dot_dimension_numbers<[1], [0], [0], [1], [0, 0, 1, 1], [], []>} : vector<2x128xf32>, vector<128x8xf32>, vector<2x8xf32> -> vector<2x8xf32>
    %64 = vector.extract_strided_slice %63 {offsets = [0, 0], sizes = [1, 8], strides = [1, 1]} : vector<2x8xf32> to vector<1x8xf32>
    %cst_22 = arith.constant 0.001953125 : f32
    %65 = vector.broadcast %cst_22 : f32 to vector<1x8xf32>
    %66 = arith.mulf %64, %65 : vector<1x8xf32>
    %67 = vector.extract_strided_slice %63 {offsets = [1, 0], sizes = [1, 8], strides = [1, 1]} : vector<2x8xf32> to vector<1x8xf32>
    %cst_23 = arith.constant 0.001953125 : f32
    %68 = vector.broadcast %cst_23 : f32 to vector<1x8xf32>
    %69 = arith.mulf %67, %68 : vector<1x8xf32>
    %70 = arith.mulf %66, %66 : vector<1x8xf32>
    %71 = arith.subf %69, %70 : vector<1x8xf32>
    %cst_24 = arith.constant 0.000000e+00 : f32
    %72 = vector.broadcast %cst_24 : f32 to vector<1x8xf32>
    %73 = arith.maximumf %71, %72 : vector<1x8xf32>
    %c0_25 = arith.constant 0 : index
    %c0_26 = arith.constant 0 : index
    %74 = vector.load %arg3[%c0_25, %c0_26] : memref<1x8xf32, #tpu.memory_space<vmem>>, vector<1x8xf32>
    %cst_27 = arith.constant 9.99999974E-6 : f32
    %75 = vector.broadcast %cst_27 : f32 to vector<1x8xf32>
    %76 = arith.addf %73, %75 : vector<1x8xf32>
    %77 = math.rsqrt %76 : vector<1x8xf32>
    %78 = arith.mulf %74, %77 : vector<1x8xf32>
    %c0_28 = arith.constant 0 : index
    %c0_29 = arith.constant 0 : index
    %79 = vector.load %arg4[%c0_28, %c0_29] : memref<1x8xf32, #tpu.memory_space<vmem>>, vector<1x8xf32>
    %80 = arith.mulf %66, %78 : vector<1x8xf32>
    %81 = arith.subf %79, %80 : vector<1x8xf32>
    %82 = tpu.concatenate %78, %78, %78, %78, %78, %78, %78, %78, %78, %78, %78, %78, %78, %78, %78, %78 in 1 : vector<1x8xf32>, vector<1x8xf32>, vector<1x8xf32>, vector<1x8xf32>, vector<1x8xf32>, vector<1x8xf32>, vector<1x8xf32>, vector<1x8xf32>, vector<1x8xf32>, vector<1x8xf32>, vector<1x8xf32>, vector<1x8xf32>, vector<1x8xf32>, vector<1x8xf32>, vector<1x8xf32>, vector<1x8xf32> -> vector<1x128xf32>
    %83 = tpu.concatenate %81, %81, %81, %81, %81, %81, %81, %81, %81, %81, %81, %81, %81, %81, %81, %81 in 1 : vector<1x8xf32>, vector<1x8xf32>, vector<1x8xf32>, vector<1x8xf32>, vector<1x8xf32>, vector<1x8xf32>, vector<1x8xf32>, vector<1x8xf32>, vector<1x8xf32>, vector<1x8xf32>, vector<1x8xf32>, vector<1x8xf32>, vector<1x8xf32>, vector<1x8xf32>, vector<1x8xf32>, vector<1x8xf32> -> vector<1x128xf32>
    %84 = vector.broadcast %82 : vector<1x128xf32> to vector<32x128xf32>
    %85 = arith.mulf %55, %84 : vector<32x128xf32>
    %86 = vector.broadcast %83 : vector<1x128xf32> to vector<32x128xf32>
    %87 = arith.addf %85, %86 : vector<32x128xf32>
    %cst_30 = arith.constant 0.000000e+00 : f32
    %88 = vector.broadcast %cst_30 : f32 to vector<32x128xf32>
    %89 = arith.cmpf oge, %87, %88 : vector<32x128xf32>
    %cst_31 = arith.constant 2.000000e-01 : f32
    %90 = vector.broadcast %cst_31 : f32 to vector<32x128xf32>
    %91 = arith.mulf %90, %87 : vector<32x128xf32>
    %92 = arith.select %89, %87, %91 : vector<32x128xi1>, vector<32x128xf32>
    %c0_32 = arith.constant 0 : index
    %c0_33 = arith.constant 0 : index
    %93 = vector.load %arg23[%c0_32, %c0_33] : memref<32x128xf32, #tpu.memory_space<vmem>>, vector<32x128xf32>
    tpu.vector_store %arg23[%c0_32, %c0_33], %92 {strides = array<i32>} : memref<32x128xf32, #tpu.memory_space<vmem>>, vector<32x128xf32>,
    %c0_34 = arith.constant 0 : index
    %c0_35 = arith.constant 0 : index
    %94 = tpu.strided_load %arg23[%c0_34, %c0_35] {strides = array<i32: 2, 1>} : memref<32x128xf32, #tpu.memory_space<vmem>>, vector<16x128xf32>
    %c1_36 = arith.constant 1 : index
    %c0_37 = arith.constant 0 : index
    %95 = tpu.strided_load %arg23[%c1_36, %c0_37] {strides = array<i32: 2, 1>} : memref<32x128xf32, #tpu.memory_space<vmem>>, vector<16x128xf32>
    %cst_38 = arith.constant 0.000000e+00 : f32
    %96 = vector.broadcast %cst_38 : f32 to vector<1x128xf32>
    %97 = vector.extract_strided_slice %95 {offsets = [0, 0], sizes = [15, 128], strides = [1, 1]} : vector<16x128xf32> to vector<15x128xf32>
    %98 = tpu.concatenate %96, %97 in 0 : vector<1x128xf32>, vector<15x128xf32> -> vector<16x128xf32>
    %99 = vector.extract_strided_slice %94 {offsets = [1, 0], sizes = [15, 128], strides = [1, 1]} : vector<16x128xf32> to vector<15x128xf32>
    %100 = tpu.concatenate %99, %96 in 0 : vector<15x128xf32>, vector<1x128xf32> -> vector<16x128xf32>
    %101 = tpu.iota {dimensions = array<i32: 0>} : vector<16x1xi32>
    %c8_i32 = arith.constant 8 : i32
    %c0_i32_39 = arith.constant 0 : i32
    %102 = arith.cmpi eq, %c8_i32, %c0_i32_39 : i32
    %c1_i32_40 = arith.constant 1 : i32
    %103 = arith.select %102, %c1_i32_40, %c8_i32 : i32
    %104 = vector.broadcast %103 : i32 to vector<16x1xi32>
    %105 = arith.remsi %101, %104 : vector<16x1xi32>
    %c0_i32_41 = arith.constant 0 : i32
    %106 = vector.broadcast %c0_i32_41 : i32 to vector<16x1xi32>
    %107 = arith.cmpi ne, %105, %106 : vector<16x1xi32>
    %c0_i32_42 = arith.constant 0 : i32
    %108 = vector.broadcast %c0_i32_42 : i32 to vector<16x1xi32>
    %109 = arith.cmpi slt, %105, %108 : vector<16x1xi32>
    %c0_i32_43 = arith.constant 0 : i32
    %110 = arith.cmpi slt, %103, %c0_i32_43 : i32
    %111 = vector.broadcast %110 : i1 to vector<16x1xi1>
    %112 = vector.broadcast %111 : vector<16x1xi1> to vector<16x1xi1>
    %113 = arith.xori %109, %112 : vector<16x1xi1>
    %114 = arith.andi %113, %107 : vector<16x1xi1>
    %115 = vector.broadcast %103 : i32 to vector<16x1xi32>
    %116 = arith.addi %105, %115 : vector<16x1xi32>
    %117 = arith.select %114, %116, %105 : vector<16x1xi1>, vector<16x1xi32>
    %c0_i32_44 = arith.constant 0 : i32
    %118 = vector.broadcast %c0_i32_44 : i32 to vector<16x1xi32>
    %119 = arith.cmpi eq, %117, %118 : vector<16x1xi32>
    %cst_45 = arith.constant 0.000000e+00 : f32
    %120 = vector.shape_cast %119 : vector<16x1xi1> to vector<16x1xi1>
    %121 = vector.broadcast %120 : vector<16x1xi1> to vector<16x128xi1>
    %122 = vector.broadcast %cst_45 : f32 to vector<16x128xf32>
    %123 = arith.select %121, %122, %98 : vector<16x128xi1>, vector<16x128xf32>
    %c8_i32_46 = arith.constant 8 : i32
    %c0_i32_47 = arith.constant 0 : i32
    %124 = arith.cmpi eq, %c8_i32_46, %c0_i32_47 : i32
    %c1_i32_48 = arith.constant 1 : i32
    %125 = arith.select %124, %c1_i32_48, %c8_i32_46 : i32
    %126 = vector.broadcast %125 : i32 to vector<16x1xi32>
    %127 = arith.remsi %101, %126 : vector<16x1xi32>
    %c0_i32_49 = arith.constant 0 : i32
    %128 = vector.broadcast %c0_i32_49 : i32 to vector<16x1xi32>
    %129 = arith.cmpi ne, %127, %128 : vector<16x1xi32>
    %c0_i32_50 = arith.constant 0 : i32
    %130 = vector.broadcast %c0_i32_50 : i32 to vector<16x1xi32>
    %131 = arith.cmpi slt, %127, %130 : vector<16x1xi32>
    %c0_i32_51 = arith.constant 0 : i32
    %132 = arith.cmpi slt, %125, %c0_i32_51 : i32
    %133 = vector.broadcast %132 : i1 to vector<16x1xi1>
    %134 = vector.broadcast %133 : vector<16x1xi1> to vector<16x1xi1>
    %135 = arith.xori %131, %134 : vector<16x1xi1>
    %136 = arith.andi %135, %129 : vector<16x1xi1>
    %137 = vector.broadcast %125 : i32 to vector<16x1xi32>
    %138 = arith.addi %127, %137 : vector<16x1xi32>
    %139 = arith.select %136, %138, %127 : vector<16x1xi1>, vector<16x1xi32>
    %c7_i32 = arith.constant 7 : i32
    %140 = vector.broadcast %c7_i32 : i32 to vector<16x1xi32>
    %141 = arith.cmpi eq, %139, %140 : vector<16x1xi32>
    %cst_52 = arith.constant 0.000000e+00 : f32
    %142 = vector.shape_cast %141 : vector<16x1xi1> to vector<16x1xi1>
    %143 = vector.broadcast %142 : vector<16x1xi1> to vector<16x128xi1>
    %144 = vector.broadcast %cst_52 : f32 to vector<16x128xf32>
    %145 = arith.select %143, %144, %100 : vector<16x128xi1>, vector<16x128xf32>
    %146 = tpu.concatenate %123, %94, %95, %145 in 1 : vector<16x128xf32>, vector<16x128xf32>, vector<16x128xf32>, vector<16x128xf32> -> vector<16x512xf32>
    %147 = arith.truncf %146 : vector<16x512xf32> to vector<16x512xbf16>
    %c0_53 = arith.constant 0 : index
    %c0_54 = arith.constant 0 : index
    %148 = vector.load %arg5[%c0_53, %c0_54] : memref<512x128xbf16, #tpu.memory_space<vmem>>, vector<512x128xbf16>
    %cst_55 = arith.constant dense<0.000000e+00> : vector<16x128xf32>
    %149 = tpu.matmul %147, %148, %cst_55 {dimension_numbers = #tpu.dot_dimension_numbers<[1], [0], [0], [1], [0, 0, 1, 1], [], []>} : vector<16x512xbf16>, vector<512x128xbf16>, vector<16x128xf32> -> vector<16x128xf32>
    %cst_56 = arith.constant dense<0.000000e+00> : vector<128xf32>
    %150 = vector.multi_reduction <add>, %149, %cst_56 [0] : vector<16x128xf32> to vector<128xf32>
    %151 = vector.shape_cast %150 : vector<128xf32> to vector<1x128xf32>
    %152 = arith.mulf %149, %149 : vector<16x128xf32>
    %cst_57 = arith.constant dense<0.000000e+00> : vector<128xf32>
    %153 = vector.multi_reduction <add>, %152, %cst_57 [0] : vector<16x128xf32> to vector<128xf32>
    %154 = vector.shape_cast %153 : vector<128xf32> to vector<1x128xf32>
    %155 = tpu.concatenate %151, %154 in 0 : vector<1x128xf32>, vector<1x128xf32> -> vector<2x128xf32>
    %c0_58 = arith.constant 0 : index
    %c0_59 = arith.constant 0 : index
    %156 = vector.load %arg6[%c0_58, %c0_59] : memref<128x16xf32, #tpu.memory_space<vmem>>, vector<128x16xf32>
    %cst_60 = arith.constant dense<0.000000e+00> : vector<2x16xf32>
    %157 = tpu.matmul %155, %156, %cst_60 {dimension_numbers = #tpu.dot_dimension_numbers<[1], [0], [0], [1], [0, 0, 1, 1], [], []>} : vector<2x128xf32>, vector<128x16xf32>, vector<2x16xf32> -> vector<2x16xf32>
    %158 = vector.extract_strided_slice %157 {offsets = [0, 0], sizes = [1, 16], strides = [1, 1]} : vector<2x16xf32> to vector<1x16xf32>
    %cst_61 = arith.constant 7.812500e-03 : f32
    %159 = vector.broadcast %cst_61 : f32 to vector<1x16xf32>
    %160 = arith.mulf %158, %159 : vector<1x16xf32>
    %161 = vector.extract_strided_slice %157 {offsets = [1, 0], sizes = [1, 16], strides = [1, 1]} : vector<2x16xf32> to vector<1x16xf32>
    %cst_62 = arith.constant 7.812500e-03 : f32
    %162 = vector.broadcast %cst_62 : f32 to vector<1x16xf32>
    %163 = arith.mulf %161, %162 : vector<1x16xf32>
    %164 = arith.mulf %160, %160 : vector<1x16xf32>
    %165 = arith.subf %163, %164 : vector<1x16xf32>
    %cst_63 = arith.constant 0.000000e+00 : f32
    %166 = vector.broadcast %cst_63 : f32 to vector<1x16xf32>
    %167 = arith.maximumf %165, %166 : vector<1x16xf32>
    %c0_64 = arith.constant 0 : index
    %c0_65 = arith.constant 0 : index
    %168 = vector.load %arg7[%c0_64, %c0_65] : memref<1x16xf32, #tpu.memory_space<vmem>>, vector<1x16xf32>
    %cst_66 = arith.constant 9.99999974E-6 : f32
    %169 = vector.broadcast %cst_66 : f32 to vector<1x16xf32>
    %170 = arith.addf %167, %169 : vector<1x16xf32>
    %171 = math.rsqrt %170 : vector<1x16xf32>
    %172 = arith.mulf %168, %171 : vector<1x16xf32>
    %c0_67 = arith.constant 0 : index
    %c0_68 = arith.constant 0 : index
    %173 = vector.load %arg8[%c0_67, %c0_68] : memref<1x16xf32, #tpu.memory_space<vmem>>, vector<1x16xf32>
    %174 = arith.mulf %160, %172 : vector<1x16xf32>
    %175 = arith.subf %173, %174 : vector<1x16xf32>
    %176 = tpu.concatenate %172, %172, %172, %172, %172, %172, %172, %172 in 1 : vector<1x16xf32>, vector<1x16xf32>, vector<1x16xf32>, vector<1x16xf32>, vector<1x16xf32>, vector<1x16xf32>, vector<1x16xf32>, vector<1x16xf32> -> vector<1x128xf32>
    %177 = tpu.concatenate %175, %175, %175, %175, %175, %175, %175, %175 in 1 : vector<1x16xf32>, vector<1x16xf32>, vector<1x16xf32>, vector<1x16xf32>, vector<1x16xf32>, vector<1x16xf32>, vector<1x16xf32>, vector<1x16xf32> -> vector<1x128xf32>
    %178 = vector.broadcast %176 : vector<1x128xf32> to vector<16x128xf32>
    %179 = arith.mulf %149, %178 : vector<16x128xf32>
    %180 = vector.broadcast %177 : vector<1x128xf32> to vector<16x128xf32>
    %181 = arith.addf %179, %180 : vector<16x128xf32>
    %cst_69 = arith.constant 0.000000e+00 : f32
    %182 = vector.broadcast %cst_69 : f32 to vector<16x128xf32>
    %183 = arith.cmpf oge, %181, %182 : vector<16x128xf32>
    %cst_70 = arith.constant 2.000000e-01 : f32
    %184 = vector.broadcast %cst_70 : f32 to vector<16x128xf32>
    %185 = arith.mulf %184, %181 : vector<16x128xf32>
    %186 = arith.select %183, %181, %185 : vector<16x128xi1>, vector<16x128xf32>
    %c0_71 = arith.constant 0 : index
    %c0_72 = arith.constant 0 : index
    %187 = vector.load %arg23[%c0_71, %c0_72] : memref<32x128xf32, #tpu.memory_space<vmem>>, vector<16x128xf32>
    tpu.vector_store %arg23[%c0_71, %c0_72], %186 {strides = array<i32>} : memref<32x128xf32, #tpu.memory_space<vmem>>, vector<16x128xf32>,
    %c0_73 = arith.constant 0 : index
    %c0_74 = arith.constant 0 : index
    %188 = tpu.strided_load %arg23[%c0_73, %c0_74] {strides = array<i32: 2, 1>} : memref<32x128xf32, #tpu.memory_space<vmem>>, vector<8x128xf32>
    %c1_75 = arith.constant 1 : index
    %c0_76 = arith.constant 0 : index
    %189 = tpu.strided_load %arg23[%c1_75, %c0_76] {strides = array<i32: 2, 1>} : memref<32x128xf32, #tpu.memory_space<vmem>>, vector<8x128xf32>
    %cst_77 = arith.constant 0.000000e+00 : f32
    %190 = vector.broadcast %cst_77 : f32 to vector<1x128xf32>
    %191 = vector.extract_strided_slice %189 {offsets = [0, 0], sizes = [7, 128], strides = [1, 1]} : vector<8x128xf32> to vector<7x128xf32>
    %192 = tpu.concatenate %190, %191 in 0 : vector<1x128xf32>, vector<7x128xf32> -> vector<8x128xf32>
    %193 = vector.extract_strided_slice %188 {offsets = [1, 0], sizes = [7, 128], strides = [1, 1]} : vector<8x128xf32> to vector<7x128xf32>
    %194 = tpu.concatenate %193, %190 in 0 : vector<7x128xf32>, vector<1x128xf32> -> vector<8x128xf32>
    %195 = tpu.iota {dimensions = array<i32: 0>} : vector<8x1xi32>
    %c4_i32 = arith.constant 4 : i32
    %c0_i32_78 = arith.constant 0 : i32
    %196 = arith.cmpi eq, %c4_i32, %c0_i32_78 : i32
    %c1_i32_79 = arith.constant 1 : i32
    %197 = arith.select %196, %c1_i32_79, %c4_i32 : i32
    %198 = vector.broadcast %197 : i32 to vector<8x1xi32>
    %199 = arith.remsi %195, %198 : vector<8x1xi32>
    %c0_i32_80 = arith.constant 0 : i32
    %200 = vector.broadcast %c0_i32_80 : i32 to vector<8x1xi32>
    %201 = arith.cmpi ne, %199, %200 : vector<8x1xi32>
    %c0_i32_81 = arith.constant 0 : i32
    %202 = vector.broadcast %c0_i32_81 : i32 to vector<8x1xi32>
    %203 = arith.cmpi slt, %199, %202 : vector<8x1xi32>
    %c0_i32_82 = arith.constant 0 : i32
    %204 = arith.cmpi slt, %197, %c0_i32_82 : i32
    %205 = vector.broadcast %204 : i1 to vector<8x1xi1>
    %206 = vector.broadcast %205 : vector<8x1xi1> to vector<8x1xi1>
    %207 = arith.xori %203, %206 : vector<8x1xi1>
    %208 = arith.andi %207, %201 : vector<8x1xi1>
    %209 = vector.broadcast %197 : i32 to vector<8x1xi32>
    %210 = arith.addi %199, %209 : vector<8x1xi32>
    %211 = arith.select %208, %210, %199 : vector<8x1xi1>, vector<8x1xi32>
    %c0_i32_83 = arith.constant 0 : i32
    %212 = vector.broadcast %c0_i32_83 : i32 to vector<8x1xi32>
    %213 = arith.cmpi eq, %211, %212 : vector<8x1xi32>
    %cst_84 = arith.constant 0.000000e+00 : f32
    %214 = vector.shape_cast %213 : vector<8x1xi1> to vector<8x1xi1>
    %215 = vector.broadcast %214 : vector<8x1xi1> to vector<8x128xi1>
    %216 = vector.broadcast %cst_84 : f32 to vector<8x128xf32>
    %217 = arith.select %215, %216, %192 : vector<8x128xi1>, vector<8x128xf32>
    %c4_i32_85 = arith.constant 4 : i32
    %c0_i32_86 = arith.constant 0 : i32
    %218 = arith.cmpi eq, %c4_i32_85, %c0_i32_86 : i32
    %c1_i32_87 = arith.constant 1 : i32
    %219 = arith.select %218, %c1_i32_87, %c4_i32_85 : i32
    %220 = vector.broadcast %219 : i32 to vector<8x1xi32>
    %221 = arith.remsi %195, %220 : vector<8x1xi32>
    %c0_i32_88 = arith.constant 0 : i32
    %222 = vector.broadcast %c0_i32_88 : i32 to vector<8x1xi32>
    %223 = arith.cmpi ne, %221, %222 : vector<8x1xi32>
    %c0_i32_89 = arith.constant 0 : i32
    %224 = vector.broadcast %c0_i32_89 : i32 to vector<8x1xi32>
    %225 = arith.cmpi slt, %221, %224 : vector<8x1xi32>
    %c0_i32_90 = arith.constant 0 : i32
    %226 = arith.cmpi slt, %219, %c0_i32_90 : i32
    %227 = vector.broadcast %226 : i1 to vector<8x1xi1>
    %228 = vector.broadcast %227 : vector<8x1xi1> to vector<8x1xi1>
    %229 = arith.xori %225, %228 : vector<8x1xi1>
    %230 = arith.andi %229, %223 : vector<8x1xi1>
    %231 = vector.broadcast %219 : i32 to vector<8x1xi32>
    %232 = arith.addi %221, %231 : vector<8x1xi32>
    %233 = arith.select %230, %232, %221 : vector<8x1xi1>, vector<8x1xi32>
    %c3_i32 = arith.constant 3 : i32
    %234 = vector.broadcast %c3_i32 : i32 to vector<8x1xi32>
    %235 = arith.cmpi eq, %233, %234 : vector<8x1xi32>
    %cst_91 = arith.constant 0.000000e+00 : f32
    %236 = vector.shape_cast %235 : vector<8x1xi1> to vector<8x1xi1>
    %237 = vector.broadcast %236 : vector<8x1xi1> to vector<8x128xi1>
    %238 = vector.broadcast %cst_91 : f32 to vector<8x128xf32>
    %239 = arith.select %237, %238, %194 : vector<8x128xi1>, vector<8x128xf32>
    %240 = tpu.concatenate %217, %188, %189, %239 in 1 : vector<8x128xf32>, vector<8x128xf32>, vector<8x128xf32>, vector<8x128xf32> -> vector<8x512xf32>
    %241 = arith.truncf %240 : vector<8x512xf32> to vector<8x512xbf16>
    %c0_92 = arith.constant 0 : index
    %c0_93 = arith.constant 0 : index
    %242 = vector.load %arg9[%c0_92, %c0_93] : memref<512x128xbf16, #tpu.memory_space<vmem>>, vector<512x128xbf16>
    %cst_94 = arith.constant dense<0.000000e+00> : vector<8x128xf32>
    %243 = tpu.matmul %241, %242, %cst_94 {dimension_numbers = #tpu.dot_dimension_numbers<[1], [0], [0], [1], [0, 0, 1, 1], [], []>} : vector<8x512xbf16>, vector<512x128xbf16>, vector<8x128xf32> -> vector<8x128xf32>
    %cst_95 = arith.constant dense<0.000000e+00> : vector<128xf32>
    %244 = vector.multi_reduction <add>, %243, %cst_95 [0] : vector<8x128xf32> to vector<128xf32>
    %245 = vector.shape_cast %244 : vector<128xf32> to vector<1x128xf32>
    %246 = arith.mulf %243, %243 : vector<8x128xf32>
    %cst_96 = arith.constant dense<0.000000e+00> : vector<128xf32>
    %247 = vector.multi_reduction <add>, %246, %cst_96 [0] : vector<8x128xf32> to vector<128xf32>
    %248 = vector.shape_cast %247 : vector<128xf32> to vector<1x128xf32>
    %249 = tpu.concatenate %245, %248 in 0 : vector<1x128xf32>, vector<1x128xf32> -> vector<2x128xf32>
    %c0_97 = arith.constant 0 : index
    %c0_98 = arith.constant 0 : index
    %250 = vector.load %arg10[%c0_97, %c0_98] : memref<128x32xf32, #tpu.memory_space<vmem>>, vector<128x32xf32>
    %cst_99 = arith.constant dense<0.000000e+00> : vector<2x32xf32>
    %251 = tpu.matmul %249, %250, %cst_99 {dimension_numbers = #tpu.dot_dimension_numbers<[1], [0], [0], [1], [0, 0, 1, 1], [], []>} : vector<2x128xf32>, vector<128x32xf32>, vector<2x32xf32> -> vector<2x32xf32>
    %252 = vector.extract_strided_slice %251 {offsets = [0, 0], sizes = [1, 32], strides = [1, 1]} : vector<2x32xf32> to vector<1x32xf32>
    %cst_100 = arith.constant 3.125000e-02 : f32
    %253 = vector.broadcast %cst_100 : f32 to vector<1x32xf32>
    %254 = arith.mulf %252, %253 : vector<1x32xf32>
    %255 = vector.extract_strided_slice %251 {offsets = [1, 0], sizes = [1, 32], strides = [1, 1]} : vector<2x32xf32> to vector<1x32xf32>
    %cst_101 = arith.constant 3.125000e-02 : f32
    %256 = vector.broadcast %cst_101 : f32 to vector<1x32xf32>
    %257 = arith.mulf %255, %256 : vector<1x32xf32>
    %258 = arith.mulf %254, %254 : vector<1x32xf32>
    %259 = arith.subf %257, %258 : vector<1x32xf32>
    %cst_102 = arith.constant 0.000000e+00 : f32
    %260 = vector.broadcast %cst_102 : f32 to vector<1x32xf32>
    %261 = arith.maximumf %259, %260 : vector<1x32xf32>
    %c0_103 = arith.constant 0 : index
    %c0_104 = arith.constant 0 : index
    %262 = vector.load %arg11[%c0_103, %c0_104] : memref<1x32xf32, #tpu.memory_space<vmem>>, vector<1x32xf32>
    %cst_105 = arith.constant 9.99999974E-6 : f32
    %263 = vector.broadcast %cst_105 : f32 to vector<1x32xf32>
    %264 = arith.addf %261, %263 : vector<1x32xf32>
    %265 = math.rsqrt %264 : vector<1x32xf32>
    %266 = arith.mulf %262, %265 : vector<1x32xf32>
    %c0_106 = arith.constant 0 : index
    %c0_107 = arith.constant 0 : index
    %267 = vector.load %arg12[%c0_106, %c0_107] : memref<1x32xf32, #tpu.memory_space<vmem>>, vector<1x32xf32>
    %268 = arith.mulf %254, %266 : vector<1x32xf32>
    %269 = arith.subf %267, %268 : vector<1x32xf32>
    %270 = tpu.concatenate %266, %266, %266, %266 in 1 : vector<1x32xf32>, vector<1x32xf32>, vector<1x32xf32>, vector<1x32xf32> -> vector<1x128xf32>
    %271 = tpu.concatenate %269, %269, %269, %269 in 1 : vector<1x32xf32>, vector<1x32xf32>, vector<1x32xf32>, vector<1x32xf32> -> vector<1x128xf32>
    %272 = vector.broadcast %270 : vector<1x128xf32> to vector<8x128xf32>
    %273 = arith.mulf %243, %272 : vector<8x128xf32>
    %274 = vector.broadcast %271 : vector<1x128xf32> to vector<8x128xf32>
    %275 = arith.addf %273, %274 : vector<8x128xf32>
    %cst_108 = arith.constant 0.000000e+00 : f32
    %276 = vector.broadcast %cst_108 : f32 to vector<8x128xf32>
    %277 = arith.cmpf oge, %275, %276 : vector<8x128xf32>
    %cst_109 = arith.constant 2.000000e-01 : f32
    %278 = vector.broadcast %cst_109 : f32 to vector<8x128xf32>
    %279 = arith.mulf %278, %275 : vector<8x128xf32>
    %280 = arith.select %277, %275, %279 : vector<8x128xi1>, vector<8x128xf32>
    %c0_110 = arith.constant 0 : index
    %c0_111 = arith.constant 0 : index
    %281 = vector.load %arg23[%c0_110, %c0_111] : memref<32x128xf32, #tpu.memory_space<vmem>>, vector<8x128xf32>
    tpu.vector_store %arg23[%c0_110, %c0_111], %280 {strides = array<i32>} : memref<32x128xf32, #tpu.memory_space<vmem>>, vector<8x128xf32>,
    %c0_112 = arith.constant 0 : index
    %c0_113 = arith.constant 0 : index
    %282 = tpu.strided_load %arg23[%c0_112, %c0_113] {strides = array<i32: 2, 1>} : memref<32x128xf32, #tpu.memory_space<vmem>>, vector<4x128xf32>
    %c1_114 = arith.constant 1 : index
    %c0_115 = arith.constant 0 : index
    %283 = tpu.strided_load %arg23[%c1_114, %c0_115] {strides = array<i32: 2, 1>} : memref<32x128xf32, #tpu.memory_space<vmem>>, vector<4x128xf32>
    %cst_116 = arith.constant 0.000000e+00 : f32
    %284 = vector.broadcast %cst_116 : f32 to vector<1x128xf32>
    %285 = vector.extract_strided_slice %283 {offsets = [0, 0], sizes = [3, 128], strides = [1, 1]} : vector<4x128xf32> to vector<3x128xf32>
    %286 = tpu.concatenate %284, %285 in 0 : vector<1x128xf32>, vector<3x128xf32> -> vector<4x128xf32>
    %287 = vector.extract_strided_slice %282 {offsets = [1, 0], sizes = [3, 128], strides = [1, 1]} : vector<4x128xf32> to vector<3x128xf32>
    %288 = tpu.concatenate %287, %284 in 0 : vector<3x128xf32>, vector<1x128xf32> -> vector<4x128xf32>
    %289 = tpu.iota {dimensions = array<i32: 0>} : vector<4x1xi32>
    %c2_i32 = arith.constant 2 : i32
    %c0_i32_117 = arith.constant 0 : i32
    %290 = arith.cmpi eq, %c2_i32, %c0_i32_117 : i32
    %c1_i32_118 = arith.constant 1 : i32
    %291 = arith.select %290, %c1_i32_118, %c2_i32 : i32
    %292 = vector.broadcast %291 : i32 to vector<4x1xi32>
    %293 = arith.remsi %289, %292 : vector<4x1xi32>
    %c0_i32_119 = arith.constant 0 : i32
    %294 = vector.broadcast %c0_i32_119 : i32 to vector<4x1xi32>
    %295 = arith.cmpi ne, %293, %294 : vector<4x1xi32>
    %c0_i32_120 = arith.constant 0 : i32
    %296 = vector.broadcast %c0_i32_120 : i32 to vector<4x1xi32>
    %297 = arith.cmpi slt, %293, %296 : vector<4x1xi32>
    %c0_i32_121 = arith.constant 0 : i32
    %298 = arith.cmpi slt, %291, %c0_i32_121 : i32
    %299 = vector.broadcast %298 : i1 to vector<4x1xi1>
    %300 = vector.broadcast %299 : vector<4x1xi1> to vector<4x1xi1>
    %301 = arith.xori %297, %300 : vector<4x1xi1>
    %302 = arith.andi %301, %295 : vector<4x1xi1>
    %303 = vector.broadcast %291 : i32 to vector<4x1xi32>
    %304 = arith.addi %293, %303 : vector<4x1xi32>
    %305 = arith.select %302, %304, %293 : vector<4x1xi1>, vector<4x1xi32>
    %c0_i32_122 = arith.constant 0 : i32
    %306 = vector.broadcast %c0_i32_122 : i32 to vector<4x1xi32>
    %307 = arith.cmpi eq, %305, %306 : vector<4x1xi32>
    %cst_123 = arith.constant 0.000000e+00 : f32
    %308 = vector.shape_cast %307 : vector<4x1xi1> to vector<4x1xi1>
    %309 = vector.broadcast %308 : vector<4x1xi1> to vector<4x128xi1>
    %310 = vector.broadcast %cst_123 : f32 to vector<4x128xf32>
    %311 = arith.select %309, %310, %286 : vector<4x128xi1>, vector<4x128xf32>
    %c2_i32_124 = arith.constant 2 : i32
    %c0_i32_125 = arith.constant 0 : i32
    %312 = arith.cmpi eq, %c2_i32_124, %c0_i32_125 : i32
    %c1_i32_126 = arith.constant 1 : i32
    %313 = arith.select %312, %c1_i32_126, %c2_i32_124 : i32
    %314 = vector.broadcast %313 : i32 to vector<4x1xi32>
    %315 = arith.remsi %289, %314 : vector<4x1xi32>
    %c0_i32_127 = arith.constant 0 : i32
    %316 = vector.broadcast %c0_i32_127 : i32 to vector<4x1xi32>
    %317 = arith.cmpi ne, %315, %316 : vector<4x1xi32>
    %c0_i32_128 = arith.constant 0 : i32
    %318 = vector.broadcast %c0_i32_128 : i32 to vector<4x1xi32>
    %319 = arith.cmpi slt, %315, %318 : vector<4x1xi32>
    %c0_i32_129 = arith.constant 0 : i32
    %320 = arith.cmpi slt, %313, %c0_i32_129 : i32
    %321 = vector.broadcast %320 : i1 to vector<4x1xi1>
    %322 = vector.broadcast %321 : vector<4x1xi1> to vector<4x1xi1>
    %323 = arith.xori %319, %322 : vector<4x1xi1>
    %324 = arith.andi %323, %317 : vector<4x1xi1>
    %325 = vector.broadcast %313 : i32 to vector<4x1xi32>
    %326 = arith.addi %315, %325 : vector<4x1xi32>
    %327 = arith.select %324, %326, %315 : vector<4x1xi1>, vector<4x1xi32>
    %c1_i32_130 = arith.constant 1 : i32
    %328 = vector.broadcast %c1_i32_130 : i32 to vector<4x1xi32>
    %329 = arith.cmpi eq, %327, %328 : vector<4x1xi32>
    %cst_131 = arith.constant 0.000000e+00 : f32
    %330 = vector.shape_cast %329 : vector<4x1xi1> to vector<4x1xi1>
    %331 = vector.broadcast %330 : vector<4x1xi1> to vector<4x128xi1>
    %332 = vector.broadcast %cst_131 : f32 to vector<4x128xf32>
    %333 = arith.select %331, %332, %288 : vector<4x128xi1>, vector<4x128xf32>
    %334 = tpu.concatenate %311, %282, %283, %333 in 1 : vector<4x128xf32>, vector<4x128xf32>, vector<4x128xf32>, vector<4x128xf32> -> vector<4x512xf32>
    %335 = arith.truncf %334 : vector<4x512xf32> to vector<4x512xbf16>
    %c0_132 = arith.constant 0 : index
    %c0_133 = arith.constant 0 : index
    %336 = vector.load %arg13[%c0_132, %c0_133] : memref<512x128xbf16, #tpu.memory_space<vmem>>, vector<512x128xbf16>
    %cst_134 = arith.constant dense<0.000000e+00> : vector<4x128xf32>
    %337 = tpu.matmul %335, %336, %cst_134 {dimension_numbers = #tpu.dot_dimension_numbers<[1], [0], [0], [1], [0, 0, 1, 1], [], []>} : vector<4x512xbf16>, vector<512x128xbf16>, vector<4x128xf32> -> vector<4x128xf32>
    %cst_135 = arith.constant dense<0.000000e+00> : vector<128xf32>
    %338 = vector.multi_reduction <add>, %337, %cst_135 [0] : vector<4x128xf32> to vector<128xf32>
    %339 = vector.shape_cast %338 : vector<128xf32> to vector<1x128xf32>
    %340 = arith.mulf %337, %337 : vector<4x128xf32>
    %cst_136 = arith.constant dense<0.000000e+00> : vector<128xf32>
    %341 = vector.multi_reduction <add>, %340, %cst_136 [0] : vector<4x128xf32> to vector<128xf32>
    %342 = vector.shape_cast %341 : vector<128xf32> to vector<1x128xf32>
    %343 = tpu.concatenate %339, %342 in 0 : vector<1x128xf32>, vector<1x128xf32> -> vector<2x128xf32>
    %c0_137 = arith.constant 0 : index
    %c0_138 = arith.constant 0 : index
    %344 = vector.load %arg14[%c0_137, %c0_138] : memref<128x64xf32, #tpu.memory_space<vmem>>, vector<128x64xf32>
    %cst_139 = arith.constant dense<0.000000e+00> : vector<2x64xf32>
    %345 = tpu.matmul %343, %344, %cst_139 {dimension_numbers = #tpu.dot_dimension_numbers<[1], [0], [0], [1], [0, 0, 1, 1], [], []>} : vector<2x128xf32>, vector<128x64xf32>, vector<2x64xf32> -> vector<2x64xf32>
    %346 = vector.extract_strided_slice %345 {offsets = [0, 0], sizes = [1, 64], strides = [1, 1]} : vector<2x64xf32> to vector<1x64xf32>
    %cst_140 = arith.constant 1.250000e-01 : f32
    %347 = vector.broadcast %cst_140 : f32 to vector<1x64xf32>
    %348 = arith.mulf %346, %347 : vector<1x64xf32>
    %349 = vector.extract_strided_slice %345 {offsets = [1, 0], sizes = [1, 64], strides = [1, 1]} : vector<2x64xf32> to vector<1x64xf32>
    %cst_141 = arith.constant 1.250000e-01 : f32
    %350 = vector.broadcast %cst_141 : f32 to vector<1x64xf32>
    %351 = arith.mulf %349, %350 : vector<1x64xf32>
    %352 = arith.mulf %348, %348 : vector<1x64xf32>
    %353 = arith.subf %351, %352 : vector<1x64xf32>
    %cst_142 = arith.constant 0.000000e+00 : f32
    %354 = vector.broadcast %cst_142 : f32 to vector<1x64xf32>
    %355 = arith.maximumf %353, %354 : vector<1x64xf32>
    %c0_143 = arith.constant 0 : index
    %c0_144 = arith.constant 0 : index
    %356 = vector.load %arg15[%c0_143, %c0_144] : memref<1x64xf32, #tpu.memory_space<vmem>>, vector<1x64xf32>
    %cst_145 = arith.constant 9.99999974E-6 : f32
    %357 = vector.broadcast %cst_145 : f32 to vector<1x64xf32>
    %358 = arith.addf %355, %357 : vector<1x64xf32>
    %359 = math.rsqrt %358 : vector<1x64xf32>
    %360 = arith.mulf %356, %359 : vector<1x64xf32>
    %c0_146 = arith.constant 0 : index
    %c0_147 = arith.constant 0 : index
    %361 = vector.load %arg16[%c0_146, %c0_147] : memref<1x64xf32, #tpu.memory_space<vmem>>, vector<1x64xf32>
    %362 = arith.mulf %348, %360 : vector<1x64xf32>
    %363 = arith.subf %361, %362 : vector<1x64xf32>
    %364 = tpu.concatenate %360, %360 in 1 : vector<1x64xf32>, vector<1x64xf32> -> vector<1x128xf32>
    %365 = tpu.concatenate %363, %363 in 1 : vector<1x64xf32>, vector<1x64xf32> -> vector<1x128xf32>
    %366 = vector.broadcast %364 : vector<1x128xf32> to vector<4x128xf32>
    %367 = arith.mulf %337, %366 : vector<4x128xf32>
    %368 = vector.broadcast %365 : vector<1x128xf32> to vector<4x128xf32>
    %369 = arith.addf %367, %368 : vector<4x128xf32>
    %cst_148 = arith.constant 0.000000e+00 : f32
    %370 = vector.broadcast %cst_148 : f32 to vector<4x128xf32>
    %371 = arith.cmpf oge, %369, %370 : vector<4x128xf32>
    %cst_149 = arith.constant 2.000000e-01 : f32
    %372 = vector.broadcast %cst_149 : f32 to vector<4x128xf32>
    %373 = arith.mulf %372, %369 : vector<4x128xf32>
    %374 = arith.select %371, %369, %373 : vector<4x128xi1>, vector<4x128xf32>
    %c0_150 = arith.constant 0 : index
    %c0_151 = arith.constant 0 : index
    %375 = vector.load %arg17[%c0_150, %c0_151] : memref<2x4xf32, #tpu.memory_space<vmem>>, vector<2x4xf32>
    %cst_152 = arith.constant dense<0.000000e+00> : vector<2x128xf32>
    %376 = tpu.matmul %375, %374, %cst_152 {dimension_numbers = #tpu.dot_dimension_numbers<[1], [0], [0], [1], [0, 0, 1, 1], [], []>} : vector<2x4xf32>, vector<4x128xf32>, vector<2x128xf32> -> vector<2x128xf32>
    %c0_153 = arith.constant 0 : index
    %c0_154 = arith.constant 0 : index
    %377 = vector.load %arg14[%c0_153, %c0_154] : memref<128x64xf32, #tpu.memory_space<vmem>>, vector<128x64xf32>
    %cst_155 = arith.constant dense<0.000000e+00> : vector<2x64xf32>
    %378 = tpu.matmul %376, %377, %cst_155 {dimension_numbers = #tpu.dot_dimension_numbers<[1], [0], [0], [1], [0, 0, 1, 1], [], []>} : vector<2x128xf32>, vector<128x64xf32>, vector<2x64xf32> -> vector<2x64xf32>
    %cst_156 = arith.constant dense<0.000000e+00> : vector<64xf32>
    %379 = vector.multi_reduction <add>, %378, %cst_156 [0] : vector<2x64xf32> to vector<64xf32>
    %380 = vector.shape_cast %379 : vector<64xf32> to vector<1x64xf32>
    %cst_157 = arith.constant 5.000000e-01 : f32
    %381 = vector.broadcast %cst_157 : f32 to vector<1x64xf32>
    %382 = arith.mulf %380, %381 : vector<1x64xf32>
    %383 = arith.mulf %378, %378 : vector<2x64xf32>
    %cst_158 = arith.constant dense<0.000000e+00> : vector<64xf32>
    %384 = vector.multi_reduction <add>, %383, %cst_158 [0] : vector<2x64xf32> to vector<64xf32>
    %385 = vector.shape_cast %384 : vector<64xf32> to vector<1x64xf32>
    %cst_159 = arith.constant 5.000000e-01 : f32
    %386 = vector.broadcast %cst_159 : f32 to vector<1x64xf32>
    %387 = arith.mulf %385, %386 : vector<1x64xf32>
    %388 = arith.mulf %382, %382 : vector<1x64xf32>
    %389 = arith.subf %387, %388 : vector<1x64xf32>
    %cst_160 = arith.constant 0.000000e+00 : f32
    %390 = vector.broadcast %cst_160 : f32 to vector<1x64xf32>
    %391 = arith.maximumf %389, %390 : vector<1x64xf32>
    %c0_161 = arith.constant 0 : index
    %c0_162 = arith.constant 0 : index
    %392 = vector.load %arg18[%c0_161, %c0_162] : memref<1x64xf32, #tpu.memory_space<vmem>>, vector<1x64xf32>
    %cst_163 = arith.constant 9.99999974E-6 : f32
    %393 = vector.broadcast %cst_163 : f32 to vector<1x64xf32>
    %394 = arith.addf %391, %393 : vector<1x64xf32>
    %395 = math.rsqrt %394 : vector<1x64xf32>
    %396 = arith.mulf %392, %395 : vector<1x64xf32>
    %c0_164 = arith.constant 0 : index
    %c0_165 = arith.constant 0 : index
    %397 = vector.load %arg19[%c0_164, %c0_165] : memref<1x64xf32, #tpu.memory_space<vmem>>, vector<1x64xf32>
    %398 = arith.mulf %382, %396 : vector<1x64xf32>
    %399 = arith.subf %397, %398 : vector<1x64xf32>
    %400 = vector.broadcast %396 : vector<1x64xf32> to vector<2x64xf32>
    %401 = arith.mulf %378, %400 : vector<2x64xf32>
    %402 = vector.broadcast %399 : vector<1x64xf32> to vector<2x64xf32>
    %403 = arith.addf %401, %402 : vector<2x64xf32>
    %cst_166 = arith.constant 0.000000e+00 : f32
    %404 = vector.broadcast %cst_166 : f32 to vector<2x64xf32>
    %405 = arith.cmpf oge, %403, %404 : vector<2x64xf32>
    %cst_167 = arith.constant 2.000000e-01 : f32
    %406 = vector.broadcast %cst_167 : f32 to vector<2x64xf32>
    %407 = arith.mulf %406, %403 : vector<2x64xf32>
    %408 = arith.select %405, %403, %407 : vector<2x64xi1>, vector<2x64xf32>
    %c0_168 = arith.constant 0 : index
    %c0_169 = arith.constant 0 : index
    %409 = vector.load %arg20[%c0_168, %c0_169] : memref<64x1xf32, #tpu.memory_space<vmem>>, vector<64x1xf32>
    %cst_170 = arith.constant dense<0.000000e+00> : vector<2x1xf32>
    %410 = tpu.matmul %408, %409, %cst_170 {dimension_numbers = #tpu.dot_dimension_numbers<[1], [0], [0], [1], [0, 0, 1, 1], [], []>} : vector<2x64xf32>, vector<64x1xf32>, vector<2x1xf32> -> vector<2x1xf32>
    %c0_171 = arith.constant 0 : index
    %c0_172 = arith.constant 0 : index
    %411 = vector.load %arg21[%c0_171, %c0_172] : memref<1x1xf32, #tpu.memory_space<vmem>>, vector<1x1xf32>
    %412 = vector.broadcast %411 : vector<1x1xf32> to vector<2x1xf32>
    %413 = arith.addf %410, %412 : vector<2x1xf32>
    %c0_173 = arith.constant 0 : index
    %c0_174 = arith.constant 0 : index
    %414 = vector.load %arg22[%c0_173, %c0_174] : memref<2x1xf32, #tpu.memory_space<vmem>>, vector<2x1xf32>
    tpu.vector_store %arg22[%c0_173, %c0_174], %413 {strides = array<i32>} : memref<2x1xf32, #tpu.memory_space<vmem>>, vector<2x1xf32>,
    return
  }
}

</mosaic_0001>

<llo_original>
// kernel: discriminator_forward.1
$region0: #{discriminator_forward.1}
  #allocation0 [shape = 'u32[]', space=smem, size = 0x4, offset = 0x4, fixed_abs, tag = 'smem constant byte address 0x4 - core index']
  #allocation1 [shape = 'u32[144,128]{1,0:T(1,128)}', space=vmem, size = 0x12000, scoped, tag = 'internal scratch']
  #allocation2 [shape = 'f32[32,128]{1,0:T(8,128)}', space=vmem, size = 0x4000, scoped, tag = 'scratch operand']
  #allocation3 [shape = 'f32[1,1]{1,0:T(1,128)S(1)}', space=vmem, size = 0x200, scoped, tag = 'scoped memory for discriminator_forward.1']
  %s0 = inlined_call_operand.vmem [shape: f32[64,128], index: 0, kind: input, shape index: {}]
  %s1 = inlined_call_operand.vmem [shape: bf16[512,128], index: 1, kind: input, shape index: {}]
  %s2 = inlined_call_operand.vmem [shape: f32[128,8], index: 2, kind: input, shape index: {}]
  %s3 = inlined_call_operand.vmem [shape: f32[1,8], index: 3, kind: input, shape index: {}]
  %s4 = inlined_call_operand.vmem [shape: f32[1,8], index: 4, kind: input, shape index: {}]
  %s5 = inlined_call_operand.vmem [shape: bf16[512,128], index: 5, kind: input, shape index: {}]
  %s6 = inlined_call_operand.vmem [shape: f32[128,16], index: 6, kind: input, shape index: {}]
  %s7 = inlined_call_operand.vmem [shape: f32[1,16], index: 7, kind: input, shape index: {}]
  %s8 = inlined_call_operand.vmem [shape: f32[1,16], index: 8, kind: input, shape index: {}]
  %s9 = inlined_call_operand.vmem [shape: bf16[512,128], index: 9, kind: input, shape index: {}]
  %s10 = inlined_call_operand.vmem [shape: f32[128,32], index: 10, kind: input, shape index: {}]
  %s11 = inlined_call_operand.vmem [shape: f32[1,32], index: 11, kind: input, shape index: {}]
  %s12 = inlined_call_operand.vmem [shape: f32[1,32], index: 12, kind: input, shape index: {}]
  %s13 = inlined_call_operand.vmem [shape: bf16[512,128], index: 13, kind: input, shape index: {}]
  %s14 = inlined_call_operand.vmem [shape: f32[128,64], index: 14, kind: input, shape index: {}]
  %s15 = inlined_call_operand.vmem [shape: f32[1,64], index: 15, kind: input, shape index: {}]
  %s16 = inlined_call_operand.vmem [shape: f32[1,64], index: 16, kind: input, shape index: {}]
  %s17 = inlined_call_operand.vmem [shape: f32[2,4], index: 17, kind: input, shape index: {}]
  %s18 = inlined_call_operand.vmem [shape: f32[1,64], index: 18, kind: input, shape index: {}]
  %s19 = inlined_call_operand.vmem [shape: f32[1,64], index: 19, kind: input, shape index: {}]
  %s20 = inlined_call_operand.vmem [shape: f32[64,1], index: 20, kind: input, shape index: {}]
  %s21 = inlined_call_operand.<no memory space> [shape: f32[1,1], index: 21, kind: input, shape index: {}]
  %s22 = inlined_call_operand.vmem [shape: f32[2,1], index: 22, kind: output, shape index: {}]
  %s23 = sld [smem:[#allocation0]]
  $region98: #{discriminator_forward.1} parent=0
    _
  %s25 = ssub.s32 1, %s23
  %s26 = scalar_select 0, %s25, %s23
  %v27 = vstv %s21
  %28 = vst [vmem:[#allocation3] sm:$0x1] %v27
  // Predicated region
  $region2: #{discriminator_forward.1} parent=0 // pred_check
    _
  $region3: #{discriminator_forward.1} parent=0 // pred_check_branch
    %30 = sbr.rel (0) target = $region5
  $region4: #{discriminator_forward.1} parent=0 // pred_region
    _
  $region5: #{discriminator_forward.1} parent=0 // pred_fallthru
    _
  // Predicated region
  $region6: #{discriminator_forward.1} parent=0 // pred_check
    _
  $region7: #{discriminator_forward.1} parent=0 // pred_check_branch
    %32 = sbr.rel (0) target = $region9
  $region8: #{discriminator_forward.1} parent=0 // pred_region
    _
  $region9: #{discriminator_forward.1} parent=0 // pred_fallthru
    _
  // Predicated region
  $region10: #{discriminator_forward.1} parent=0 // pred_check
    _
  $region11: #{discriminator_forward.1} parent=0 // pred_check_branch
    %34 = sbr.rel (0) target = $region13
  $region12: #{discriminator_forward.1} parent=0 // pred_region
    _
  $region13: #{discriminator_forward.1} parent=0 // pred_fallthru
    _
  // Predicated region
  $region14: #{discriminator_forward.1} parent=0 // pred_check
    _
  $region15: #{discriminator_forward.1} parent=0 // pred_check_branch
    %36 = sbr.rel (0) target = $region17
  $region16: #{discriminator_forward.1} parent=0 // pred_region
    _
  $region17: #{discriminator_forward.1} parent=0 // pred_fallthru
    _
  // Predicated region
  $region18: #{discriminator_forward.1} parent=0 // pred_check
    _
  $region19: #{discriminator_forward.1} parent=0 // pred_check_branch
    %38 = sbr.rel (0) target = $region21
  $region20: #{discriminator_forward.1} parent=0 // pred_region
    _
  $region21: #{discriminator_forward.1} parent=0 // pred_fallthru
    _
  // Predicated region
  $region22: #{discriminator_forward.1} parent=0 // pred_check
    _
  $region23: #{discriminator_forward.1} parent=0 // pred_check_branch
    %40 = sbr.rel (0) target = $region25
  $region24: #{discriminator_forward.1} parent=0 // pred_region
    _
  $region25: #{discriminator_forward.1} parent=0 // pred_fallthru
    _
  // Predicated region
  $region26: #{discriminator_forward.1} parent=0 // pred_check
    _
  $region27: #{discriminator_forward.1} parent=0 // pred_check_branch
    %42 = sbr.rel (0) target = $region29
  $region28: #{discriminator_forward.1} parent=0 // pred_region
    _
  $region29: #{discriminator_forward.1} parent=0 // pred_fallthru
    _
  // Predicated region
  $region30: #{discriminator_forward.1} parent=0 // pred_check
    _
  $region31: #{discriminator_forward.1} parent=0 // pred_check_branch
    %44 = sbr.rel (0) target = $region33
  $region32: #{discriminator_forward.1} parent=0 // pred_region
    _
  $region33: #{discriminator_forward.1} parent=0 // pred_fallthru
    _
  // Predicated region
  $region34: #{discriminator_forward.1} parent=0 // pred_check
    _
  $region35: #{discriminator_forward.1} parent=0 // pred_check_branch
    %46 = sbr.rel (0) target = $region37
  $region36: #{discriminator_forward.1} parent=0 // pred_region
    _
  $region37: #{discriminator_forward.1} parent=0 // pred_fallthru
    _
  // Predicated region
  $region38: #{discriminator_forward.1} parent=0 // pred_check
    _
  $region39: #{discriminator_forward.1} parent=0 // pred_check_branch
    %48 = sbr.rel (0) target = $region41
  $region40: #{discriminator_forward.1} parent=0 // pred_region
    _
  $region41: #{discriminator_forward.1} parent=0 // pred_fallthru
    _
  // Predicated region
  $region42: #{discriminator_forward.1} parent=0 // pred_check
    _
  $region43: #{discriminator_forward.1} parent=0 // pred_check_branch
    %50 = sbr.rel (0) target = $region45
  $region44: #{discriminator_forward.1} parent=0 // pred_region
    _
  $region45: #{discriminator_forward.1} parent=0 // pred_fallthru
    _
  // Predicated region
  $region46: #{discriminator_forward.1} parent=0 // pred_check
    _
  $region47: #{discriminator_forward.1} parent=0 // pred_check_branch
    %52 = sbr.rel (0) target = $region49
  $region48: #{discriminator_forward.1} parent=0 // pred_region
    _
  $region49: #{discriminator_forward.1} parent=0 // pred_fallthru
    _
  // Predicated region
  $region50: #{discriminator_forward.1} parent=0 // pred_check
    _
  $region51: #{discriminator_forward.1} parent=0 // pred_check_branch
    %54 = sbr.rel (0) target = $region53
  $region52: #{discriminator_forward.1} parent=0 // pred_region
    _
  $region53: #{discriminator_forward.1} parent=0 // pred_fallthru
    _
  // Predicated region
  $region54: #{discriminator_forward.1} parent=0 // pred_check
    _
  $region55: #{discriminator_forward.1} parent=0 // pred_check_branch
    %56 = sbr.rel (0) target = $region57
  $region56: #{discriminator_forward.1} parent=0 // pred_region
    _
  $region57: #{discriminator_forward.1} parent=0 // pred_fallthru
    _
  // Predicated region
  $region58: #{discriminator_forward.1} parent=0 // pred_check
    _
  $region59: #{discriminator_forward.1} parent=0 // pred_check_branch
    %58 = sbr.rel (0) target = $region61
  $region60: #{discriminator_forward.1} parent=0 // pred_region
    _
  $region61: #{discriminator_forward.1} parent=0 // pred_fallthru
    _
  // Predicated region
  $region62: #{discriminator_forward.1} parent=0 // pred_check
    _
  $region63: #{discriminator_forward.1} parent=0 // pred_check_branch
    %60 = sbr.rel (0) target = $region65
  $region64: #{discriminator_forward.1} parent=0 // pred_region
    _
  $region65: #{discriminator_forward.1} parent=0 // pred_fallthru
    _
  // Predicated region
  $region66: #{discriminator_forward.1} parent=0 // pred_check
    _
  $region67: #{discriminator_forward.1} parent=0 // pred_check_branch
    %62 = sbr.rel (0) target = $region69
  $region68: #{discriminator_forward.1} parent=0 // pred_region
    _
  $region69: #{discriminator_forward.1} parent=0 // pred_fallthru
    _
  // Predicated region
  $region70: #{discriminator_forward.1} parent=0 // pred_check
    _
  $region71: #{discriminator_forward.1} parent=0 // pred_check_branch
    %64 = sbr.rel (0) target = $region73
  $region72: #{discriminator_forward.1} parent=0 // pred_region
    _
  $region73: #{discriminator_forward.1} parent=0 // pred_fallthru
    _
  // Predicated region
  $region74: #{discriminator_forward.1} parent=0 // pred_check
    _
  $region75: #{discriminator_forward.1} parent=0 // pred_check_branch
    %66 = sbr.rel (0) target = $region77
  $region76: #{discriminator_forward.1} parent=0 // pred_region
    _
  $region77: #{discriminator_forward.1} parent=0 // pred_fallthru
    _
  // Predicated region
  $region78: #{discriminator_forward.1} parent=0 // pred_check
    _
  $region79: #{discriminator_forward.1} parent=0 // pred_check_branch
    %68 = sbr.rel (0) target = $region81
  $region80: #{discriminator_forward.1} parent=0 // pred_region
    _
  $region81: #{discriminator_forward.1} parent=0 // pred_fallthru
    _
  // Predicated region
  $region82: #{discriminator_forward.1} parent=0 // pred_check
    _
  $region83: #{discriminator_forward.1} parent=0 // pred_check_branch
    %70 = sbr.rel (0) target = $region85
  $region84: #{discriminator_forward.1} parent=0 // pred_region
    _
  $region85: #{discriminator_forward.1} parent=0 // pred_fallthru
    _
  // Predicated region
  $region86: #{discriminator_forward.1} parent=0 // pred_check
    _
  $region87: #{discriminator_forward.1} parent=0 // pred_check_branch
    %72 = sbr.rel (0) target = $region89
  $region88: #{discriminator_forward.1} parent=0 // pred_region
    _
  $region89: #{discriminator_forward.1} parent=0 // pred_fallthru
    _
  %v74 = vld [vmem:[%s0] ss:$2 sm:$0xff]
  %s75 = scalar_lea.vmem %s0, 16
  %v76 = vld [vmem:[%s75] ss:$2 sm:$0xff]
  %s77 = scalar_lea.vmem %s0, 32
  %v78 = vld [vmem:[%s77] ss:$2 sm:$0xff]
  %s79 = scalar_lea.vmem %s0, 48
  %v80 = vld [vmem:[%s79] ss:$2 sm:$0xff]
  %s81 = scalar_lea.vmem %s0, 1
  %v82 = vld [vmem:[%s81] ss:$2 sm:$0xff]
  %s83 = scalar_lea.vmem %s0, 17
  %v84 = vld [vmem:[%s83] ss:$2 sm:$0xff]
  %s85 = scalar_lea.vmem %s0, 33
  %v86 = vld [vmem:[%s85] ss:$2 sm:$0xff]
  %s87 = scalar_lea.vmem %s0, 49
  %v88 = vld [vmem:[%s87] ss:$2 sm:$0xff]
  %vm93 = vcmask 1040384
  %v94 = vrot.slane %v82, 7
  %v95 = vrot.slane %v84, 7
  %v96 = vsel %vm93, %v94, %v95
  %v97 = vrot.slane %v86, 7
  %v98 = vsel %vm93, %v95, %v97
  %v99 = vrot.slane %v88, 7
  %v100 = vsel %vm93, %v97, %v99
  %v105 = vsel %vm93, 0.0, %v94
  %vm110 = vcmask 1046528
  %v111 = vrot.slane %v74, 1
  %v112 = vrot.slane %v76, 1
  %v113 = vsel %vm110, %v111, %v112
  %v114 = vrot.slane %v78, 1
  %v115 = vsel %vm110, %v112, %v114
  %v116 = vrot.slane %v80, 1
  %v117 = vsel %vm110, %v114, %v116
  %v122 = vsel %vm110, %v116, 0.0
  %v123 = vlaneseq
  %v124 = vshrl.u32 %v123, 7
  %v125 = vadd.s32 %v124, 8
  %v126 = vadd.s32 %v124, 16
  %v127 = vadd.s32 %v124, 24
  %vm128 = vcmp.lt.s32.totalorder %v124, 0
  %v129 = vsub.s32 0, %v124
  %v130 = vsel %vm128, %v129, %v124
  %v131 = vshrl.u32 %v130, 4
  %v132 = vand.u32 %v130, 15
  %v133 = vsub.s32 0, %v132
  %v134 = vsel %vm128, %v133, %v132
  %vm135 = vcmp.lt.s32.totalorder %v125, 0
  %v136 = vsub.s32 0, %v125
  %v137 = vsel %vm135, %v136, %v125
  %v138 = vshrl.u32 %v137, 4
  %v139 = vand.u32 %v137, 15
  %v140 = vsub.s32 0, %v139
  %v141 = vsel %vm135, %v140, %v139
  %vm142 = vcmp.lt.s32.totalorder %v126, 0
  %v143 = vsub.s32 0, %v126
  %v144 = vsel %vm142, %v143, %v126
  %v145 = vshrl.u32 %v144, 4
  %v146 = vand.u32 %v144, 15
  %v147 = vsub.s32 0, %v146
  %v148 = vsel %vm142, %v147, %v146
  %vm149 = vcmp.lt.s32.totalorder %v127, 0
  %v150 = vsub.s32 0, %v127
  %v151 = vsel %vm149, %v150, %v127
  %v152 = vshrl.u32 %v151, 4
  %v153 = vand.u32 %v151, 15
  %v154 = vsub.s32 0, %v153
  %v155 = vsel %vm149, %v154, %v153
  %vm156 = vcmp.ne.s32.totalorder %v134, 0
  %vm157 = vcmp.ne.s32.totalorder %v141, 0
  %vm158 = vcmp.ne.s32.totalorder %v148, 0
  %vm159 = vcmp.ne.s32.totalorder %v155, 0
  %vm160 = vcmp.lt.s32.totalorder %v134, 0
  %vm161 = vcmp.lt.s32.totalorder %v141, 0
  %vm162 = vcmp.lt.s32.totalorder %v148, 0
  %vm163 = vcmp.lt.s32.totalorder %v155, 0
  %vm164 = vmand %vm160, %vm156
  %vm165 = vmand %vm161, %vm157
  %vm166 = vmand %vm162, %vm158
  %vm167 = vmand %vm163, %vm159
  %v168 = vadd.s32 %v134, 16
  %v169 = vadd.s32 %v141, 16
  %v170 = vadd.s32 %v148, 16
  %v171 = vadd.s32 %v155, 16
  %v172 = vsel %vm164, %v168, %v134
  %v173 = vsel %vm165, %v169, %v141
  %v174 = vsel %vm166, %v170, %v148
  %v175 = vsel %vm167, %v171, %v155
  %vm176 = vcmp.eq.s32.totalorder %v172, 0
  %vm177 = vcmp.eq.s32.totalorder %v173, 0
  %vm178 = vcmp.eq.s32.totalorder %v174, 0
  %vm179 = vcmp.eq.s32.totalorder %v175, 0
  %v180 = vsel %vm176, 1, 0
  %v181 = vsel %vm177, 1, 0
  %v182 = vsel %vm178, 1, 0
  %v183 = vsel %vm179, 1, 0
  %vm184 = vcmp.eq.s32.totalorder %v180, 1
  %vm185 = vcmp.eq.s32.totalorder %v181, 1
  %vm186 = vcmp.eq.s32.totalorder %v182, 1
  %vm187 = vcmp.eq.s32.totalorder %v183, 1
  %v188 = vsel %vm184, 0.0, %v105
  %v189 = vsel %vm185, 0.0, %v96
  %v190 = vsel %vm186, 0.0, %v98
  %v191 = vsel %vm187, 0.0, %v100
  %vm192 = vcmp.eq.s32.totalorder %v172, 15
  %vm193 = vcmp.eq.s32.totalorder %v173, 15
  %vm194 = vcmp.eq.s32.totalorder %v174, 15
  %vm195 = vcmp.eq.s32.totalorder %v175, 15
  %v196 = vsel %vm192, 1, 0
  %v197 = vsel %vm193, 1, 0
  %v198 = vsel %vm194, 1, 0
  %v199 = vsel %vm195, 1, 0
  %vm200 = vcmp.eq.s32.totalorder %v196, 1
  %vm201 = vcmp.eq.s32.totalorder %v197, 1
  %vm202 = vcmp.eq.s32.totalorder %v198, 1
  %vm203 = vcmp.eq.s32.totalorder %v199, 1
  %v204 = vsel %vm200, 0.0, %v113
  %v205 = vsel %vm201, 0.0, %v115
  %v206 = vsel %vm202, 0.0, %v117
  %v207 = vsel %vm203, 0.0, %v122
  %v208 = vpack.c.bf16 %v189, %v188
  %v209 = vpack.c.bf16 %v76, %v74
  %v210 = vpack.c.bf16 %v84, %v82
  %v211 = vpack.c.bf16 %v205, %v204
  %v212 = vpack.c.bf16 %v191, %v190
  %v213 = vpack.c.bf16 %v80, %v78
  %v214 = vpack.c.bf16 %v88, %v86
  %v215 = vpack.c.bf16 %v207, %v206
  %v216 = vld [vmem:[%s1] sm:$0xf]
  %v217 = vld [vmem:[%s1 + $0x4] sm:$0xf]
  %v218 = vld [vmem:[%s1 + $0x8] sm:$0xf]
  %v219 = vld [vmem:[%s1 + $0xc] sm:$0xf]
  %v220 = vld [vmem:[%s1 + $0x10] sm:$0xf]
  %v221 = vld [vmem:[%s1 + $0x14] sm:$0xf]
  %v222 = vld [vmem:[%s1 + $0x18] sm:$0xf]
  %v223 = vld [vmem:[%s1 + $0x1c] sm:$0xf]
  %v224 = vld [vmem:[%s1 + $0x20] sm:$0xf]
  %v225 = vld [vmem:[%s1 + $0x24] sm:$0xf]
  %v226 = vld [vmem:[%s1 + $0x28] sm:$0xf]
  %v227 = vld [vmem:[%s1 + $0x2c] sm:$0xf]
  %v228 = vld [vmem:[%s1 + $0x30] sm:$0xf]
  %v229 = vld [vmem:[%s1 + $0x34] sm:$0xf]
  %v230 = vld [vmem:[%s1 + $0x38] sm:$0xf]
  %v231 = vld [vmem:[%s1 + $0x3c] sm:$0xf]
  %v232 = vld [vmem:[%s1 + $0x40] sm:$0xf]
  %v233 = vld [vmem:[%s1 + $0x44] sm:$0xf]
  %v234 = vld [vmem:[%s1 + $0x48] sm:$0xf]
  %v235 = vld [vmem:[%s1 + $0x4c] sm:$0xf]
  %v236 = vld [vmem:[%s1 + $0x50] sm:$0xf]
  %v237 = vld [vmem:[%s1 + $0x54] sm:$0xf]
  %v238 = vld [vmem:[%s1 + $0x58] sm:$0xf]
  %v239 = vld [vmem:[%s1 + $0x5c] sm:$0xf]
  %v240 = vld [vmem:[%s1 + $0x60] sm:$0xf]
  %v241 = vld [vmem:[%s1 + $0x64] sm:$0xf]
  %v242 = vld [vmem:[%s1 + $0x68] sm:$0xf]
  %v243 = vld [vmem:[%s1 + $0x6c] sm:$0xf]
  %v244 = vld [vmem:[%s1 + $0x70] sm:$0xf]
  %v245 = vld [vmem:[%s1 + $0x74] sm:$0xf]
  %v246 = vld [vmem:[%s1 + $0x78] sm:$0xf]
  %v247 = vld [vmem:[%s1 + $0x7c] sm:$0xf]
  %v248 = vld [vmem:[%s1 + $0x80] sm:$0xf]
  %v249 = vld [vmem:[%s1 + $0x84] sm:$0xf]
  %v250 = vld [vmem:[%s1 + $0x88] sm:$0xf]
  %v251 = vld [vmem:[%s1 + $0x8c] sm:$0xf]
  %v252 = vld [vmem:[%s1 + $0x90] sm:$0xf]
  %v253 = vld [vmem:[%s1 + $0x94] sm:$0xf]
  %v254 = vld [vmem:[%s1 + $0x98] sm:$0xf]
  %v255 = vld [vmem:[%s1 + $0x9c] sm:$0xf]
  %v256 = vld [vmem:[%s1 + $0xa0] sm:$0xf]
  %v257 = vld [vmem:[%s1 + $0xa4] sm:$0xf]
  %v258 = vld [vmem:[%s1 + $0xa8] sm:$0xf]
  %v259 = vld [vmem:[%s1 + $0xac] sm:$0xf]
  %v260 = vld [vmem:[%s1 + $0xb0] sm:$0xf]
  %v261 = vld [vmem:[%s1 + $0xb4] sm:$0xf]
  %v262 = vld [vmem:[%s1 + $0xb8] sm:$0xf]
  %v263 = vld [vmem:[%s1 + $0xbc] sm:$0xf]
  %v264 = vld [vmem:[%s1 + $0xc0] sm:$0xf]
  %v265 = vld [vmem:[%s1 + $0xc4] sm:$0xf]
  %v266 = vld [vmem:[%s1 + $0xc8] sm:$0xf]
  %v267 = vld [vmem:[%s1 + $0xcc] sm:$0xf]
  %v268 = vld [vmem:[%s1 + $0xd0] sm:$0xf]
  %v269 = vld [vmem:[%s1 + $0xd4] sm:$0xf]
  %v270 = vld [vmem:[%s1 + $0xd8] sm:$0xf]
  %v271 = vld [vmem:[%s1 + $0xdc] sm:$0xf]
  %v272 = vld [vmem:[%s1 + $0xe0] sm:$0xf]
  %v273 = vld [vmem:[%s1 + $0xe4] sm:$0xf]
  %v274 = vld [vmem:[%s1 + $0xe8] sm:$0xf]
  %v275 = vld [vmem:[%s1 + $0xec] sm:$0xf]
  %v276 = vld [vmem:[%s1 + $0xf0] sm:$0xf]
  %v277 = vld [vmem:[%s1 + $0xf4] sm:$0xf]
  %v278 = vld [vmem:[%s1 + $0xf8] sm:$0xf]
  %v279 = vld [vmem:[%s1 + $0xfc] sm:$0xf]
  %v344 = vunpack.c.l.b16 %v216
  %v345 = vunpack.c.l.b16 %v217
  %v346 = vunpack.c.l.b16 %v218
  %v347 = vunpack.c.l.b16 %v219
  %v348 = vunpack.c.l.b16 %v220
  %v349 = vunpack.c.l.b16 %v221
  %v350 = vunpack.c.l.b16 %v222
  %v351 = vunpack.c.l.b16 %v223
  %v352 = vunpack.c.l.b16 %v224
  %v353 = vunpack.c.l.b16 %v225
  %v354 = vunpack.c.l.b16 %v226
  %v355 = vunpack.c.l.b16 %v227
  %v356 = vunpack.c.l.b16 %v228
  %v357 = vunpack.c.l.b16 %v229
  %v358 = vunpack.c.l.b16 %v230
  %v359 = vunpack.c.l.b16 %v231
  %v360 = vunpack.c.l.b16 %v232
  %v361 = vunpack.c.l.b16 %v233
  %v362 = vunpack.c.l.b16 %v234
  %v363 = vunpack.c.l.b16 %v235
  %v364 = vunpack.c.l.b16 %v236
  %v365 = vunpack.c.l.b16 %v237
  %v366 = vunpack.c.l.b16 %v238
  %v367 = vunpack.c.l.b16 %v239
  %v368 = vunpack.c.l.b16 %v240
  %v369 = vunpack.c.l.b16 %v241
  %v370 = vunpack.c.l.b16 %v242
  %v371 = vunpack.c.l.b16 %v243
  %v372 = vunpack.c.l.b16 %v244
  %v373 = vunpack.c.l.b16 %v245
  %v374 = vunpack.c.l.b16 %v246
  %v375 = vunpack.c.l.b16 %v247
  %v376 = vunpack.c.l.b16 %v248
  %v377 = vunpack.c.l.b16 %v249
  %v378 = vunpack.c.l.b16 %v250
  %v379 = vunpack.c.l.b16 %v251
  %v380 = vunpack.c.l.b16 %v252
  %v381 = vunpack.c.l.b16 %v253
  %v382 = vunpack.c.l.b16 %v254
  %v383 = vunpack.c.l.b16 %v255
  %v384 = vunpack.c.l.b16 %v256
  %v385 = vunpack.c.l.b16 %v257
  %v386 = vunpack.c.l.b16 %v258
  %v387 = vunpack.c.l.b16 %v259
  %v388 = vunpack.c.l.b16 %v260
  %v389 = vunpack.c.l.b16 %v261
  %v390 = vunpack.c.l.b16 %v262
  %v391 = vunpack.c.l.b16 %v263
  %v392 = vunpack.c.l.b16 %v264
  %v393 = vunpack.c.l.b16 %v265
  %v394 = vunpack.c.l.b16 %v266
  %v395 = vunpack.c.l.b16 %v267
  %v396 = vunpack.c.l.b16 %v268
  %v397 = vunpack.c.l.b16 %v269
  %v398 = vunpack.c.l.b16 %v270
  %v399 = vunpack.c.l.b16 %v271
  %v400 = vunpack.c.l.b16 %v272
  %v401 = vunpack.c.l.b16 %v273
  %v402 = vunpack.c.l.b16 %v274
  %v403 = vunpack.c.l.b16 %v275
  %v404 = vunpack.c.l.b16 %v276
  %v405 = vunpack.c.l.b16 %v277
  %v406 = vunpack.c.l.b16 %v278
  %v407 = vunpack.c.l.b16 %v279
  %v408 = vpack.c.b16 %v345, %v344
  %v409 = vpack.c.b16 %v347, %v346
  %v410 = vpack.c.b16 %v349, %v348
  %v411 = vpack.c.b16 %v351, %v350
  %v412 = vpack.c.b16 %v353, %v352
  %v413 = vpack.c.b16 %v355, %v354
  %v414 = vpack.c.b16 %v357, %v356
  %v415 = vpack.c.b16 %v359, %v358
  %v416 = vpack.c.b16 %v361, %v360
  %v417 = vpack.c.b16 %v363, %v362
  %v418 = vpack.c.b16 %v365, %v364
  %v419 = vpack.c.b16 %v367, %v366
  %v420 = vpack.c.b16 %v369, %v368
  %v421 = vpack.c.b16 %v371, %v370
  %v422 = vpack.c.b16 %v373, %v372
  %v423 = vpack.c.b16 %v375, %v374
  %v424 = vpack.c.b16 %v377, %v376
  %v425 = vpack.c.b16 %v379, %v378
  %v426 = vpack.c.b16 %v381, %v380
  %v427 = vpack.c.b16 %v383, %v382
  %v428 = vpack.c.b16 %v385, %v384
  %v429 = vpack.c.b16 %v387, %v386
  %v430 = vpack.c.b16 %v389, %v388
  %v431 = vpack.c.b16 %v391, %v390
  %v432 = vpack.c.b16 %v393, %v392
  %v433 = vpack.c.b16 %v395, %v394
  %v434 = vpack.c.b16 %v397, %v396
  %v435 = vpack.c.b16 %v399, %v398
  %v436 = vpack.c.b16 %v401, %v400
  %v437 = vpack.c.b16 %v403, %v402
  %v438 = vpack.c.b16 %v405, %v404
  %v439 = vpack.c.b16 %v407, %v406
  %472 = vmatprep.subr.bf16.mxu0 0
  %473 = vmatpush1.bf16.msra.mxu0 %v415
  %474 = vmatprep.subr.bf16.mxu0 0
  %475 = vmatpush1.bf16.msra.mxu0 %v414
  %476 = vmatprep.subr.bf16.mxu0 0
  %477 = vmatpush1.bf16.msra.mxu0 %v413
  %478 = vmatprep.subr.bf16.mxu0 0
  %479 = vmatpush1.bf16.msra.mxu0 %v412
  %480 = vmatprep.subr.bf16.mxu0 0
  %481 = vmatpush1.bf16.msra.mxu0 %v411
  %482 = vmatprep.subr.bf16.mxu0 0
  %483 = vmatpush1.bf16.msra.mxu0 %v410
  %484 = vmatprep.subr.bf16.mxu0 0
  %485 = vmatpush1.bf16.msra.mxu0 %v409
  %486 = vmatprep.subr.bf16.mxu0 0
  %487 = vmatpush1.bf16.msra.mxu0 %v408
  %488 = vmatprep.subr.bf16.mxu0 0
  %489 = vmatpush2.bf16.msra.mxu0 %v423
  %490 = vmatprep.subr.bf16.mxu0 0
  %491 = vmatpush2.bf16.msra.mxu0 %v422
  %492 = vmatprep.subr.bf16.mxu0 0
  %493 = vmatpush2.bf16.msra.mxu0 %v421
  %494 = vmatprep.subr.bf16.mxu0 0
  %495 = vmatpush2.bf16.msra.mxu0 %v420
  %496 = vmatprep.subr.bf16.mxu0 0
  %497 = vmatpush2.bf16.msra.mxu0 %v419
  %498 = vmatprep.subr.bf16.mxu0 0
  %499 = vmatpush2.bf16.msra.mxu0 %v418
  %500 = vmatprep.subr.bf16.mxu0 0
  %501 = vmatpush2.bf16.msra.mxu0 %v417
  %502 = vmatprep.subr.bf16.mxu0 0
  %503 = vmatpush2.bf16.msra.mxu0 %v416
  %504 = vmatprep.mubr.bf16.mxu0 %v209
  %505 = vmatmul.mubr.bf16.gmra.mxu0 %v208
  %v506 = vpop.f32.mrf.mxu0
  %v507 = vadd.f32 0.0, %v506
  %v508 = vpop.f32.mrf.mxu0
  %v509 = vpop.f32.mrf.mxu0
  %v510 = vadd.f32 0.0, %v509
  %v511 = vpop.f32.mrf.mxu0
  %512 = vmatprep.mubr.bf16.mxu0 %v213
  %513 = vmatmul.mubr.bf16.gmra.mxu0 %v212
  %v514 = vpop.f32.mrf.mxu0
  %v515 = vadd.f32 0.0, %v514
  %v516 = vpop.f32.mrf.mxu0
  %v517 = vpop.f32.mrf.mxu0
  %v518 = vadd.f32 0.0, %v517
  %v519 = vpop.f32.mrf.mxu0
  %520 = vdwg.mxu0
  %521 = vmatprep.subr.bf16.mxu0 0
  %522 = vmatpush1.bf16.msra.mxu0 %v431
  %523 = vmatprep.subr.bf16.mxu0 0
  %524 = vmatpush1.bf16.msra.mxu0 %v430
  %525 = vmatprep.subr.bf16.mxu0 0
  %526 = vmatpush1.bf16.msra.mxu0 %v429
  %527 = vmatprep.subr.bf16.mxu0 0
  %528 = vmatpush1.bf16.msra.mxu0 %v428
  %529 = vmatprep.subr.bf16.mxu0 0
  %530 = vmatpush1.bf16.msra.mxu0 %v427
  %531 = vmatprep.subr.bf16.mxu0 0
  %532 = vmatpush1.bf16.msra.mxu0 %v426
  %533 = vmatprep.subr.bf16.mxu0 0
  %534 = vmatpush1.bf16.msra.mxu0 %v425
  %535 = vmatprep.subr.bf16.mxu0 0
  %536 = vmatpush1.bf16.msra.mxu0 %v424
  %537 = vmatprep.subr.bf16.mxu0 0
  %538 = vmatpush2.bf16.msra.mxu0 %v439
  %539 = vmatprep.subr.bf16.mxu0 0
  %540 = vmatpush2.bf16.msra.mxu0 %v438
  %541 = vmatprep.subr.bf16.mxu0 0
  %542 = vmatpush2.bf16.msra.mxu0 %v437
  %543 = vmatprep.subr.bf16.mxu0 0
  %544 = vmatpush2.bf16.msra.mxu0 %v436
  %545 = vmatprep.subr.bf16.mxu0 0
  %546 = vmatpush2.bf16.msra.mxu0 %v435
  %547 = vmatprep.subr.bf16.mxu0 0
  %548 = vmatpush2.bf16.msra.mxu0 %v434
  %549 = vmatprep.subr.bf16.mxu0 0
  %550 = vmatpush2.bf16.msra.mxu0 %v433
  %551 = vmatprep.subr.bf16.mxu0 0
  %552 = vmatpush2.bf16.msra.mxu0 %v432
  %553 = vmatprep.mubr.bf16.mxu0 %v211
  %554 = vmatmul.mubr.bf16.gmra.mxu0 %v210
  %v555 = vpop.f32.mrf.mxu0
  %v556 = vadd.f32 %v507, %v555
  %v557 = vpop.f32.mrf.mxu0
  %v558 = vpop.f32.mrf.mxu0
  %v559 = vadd.f32 %v510, %v558
  %v560 = vpop.f32.mrf.mxu0
  %561 = vmatprep.mubr.bf16.mxu0 %v215
  %562 = vmatmul.mubr.bf16.gmra.mxu0 %v214
  %v563 = vpop.f32.mrf.mxu0
  %v564 = vadd.f32 %v515, %v563
  %v565 = vpop.f32.mrf.mxu0
  %v566 = vpop.f32.mrf.mxu0
  %v567 = vadd.f32 %v518, %v566
  %v568 = vpop.f32.mrf.mxu0
  %569 = vdwg.mxu0
  %v570 = vadd.f32 %v556, %v559
  %v571 = vadd.f32 %v570, %v564
  %v572 = vadd.f32 %v571, %v567
  %v573 = vrot.slane %v572, 4
  %v574 = vadd.f32 %v572, %v573
  %v575 = vrot.slane %v574, 2
  %v576 = vadd.f32 %v574, %v575
  %v577 = vrot.slane %v576, 1
  %v578 = vadd.f32 %v576, %v577
  %v579 = vmul.f32 %v556, %v556
  %v580 = vmul.f32 %v559, %v559
  %v581 = vmul.f32 %v564, %v564
  %v582 = vmul.f32 %v567, %v567
  %v583 = vadd.f32 %v579, %v580
  %v584 = vadd.f32 %v583, %v581
  %v585 = vadd.f32 %v584, %v582
  %v586 = vrot.slane %v585, 4
  %v587 = vadd.f32 %v585, %v586
  %v588 = vrot.slane %v587, 2
  %v589 = vadd.f32 %v587, %v588
  %v590 = vrot.slane %v589, 1
  %v591 = vadd.f32 %v589, %v590
  %v592 = vsel %vm93, %v578, %v591
  %v593 = vld [vmem:[%s2] sm:$0xff]
  %v594 = vld [vmem:[%s2 + $0x8] sm:$0xff]
  %v595 = vld [vmem:[%s2 + $0x10] sm:$0xff]
  %v596 = vld [vmem:[%s2 + $0x18] sm:$0xff]
  %v597 = vld [vmem:[%s2 + $0x20] sm:$0xff]
  %v598 = vld [vmem:[%s2 + $0x28] sm:$0xff]
  %v599 = vld [vmem:[%s2 + $0x30] sm:$0xff]
  %v600 = vld [vmem:[%s2 + $0x38] sm:$0xff]
  %v601 = vld [vmem:[%s2 + $0x40] sm:$0xff]
  %v602 = vld [vmem:[%s2 + $0x48] sm:$0xff]
  %v603 = vld [vmem:[%s2 + $0x50] sm:$0xff]
  %v604 = vld [vmem:[%s2 + $0x58] sm:$0xff]
  %v605 = vld [vmem:[%s2 + $0x60] sm:$0xff]
  %v606 = vld [vmem:[%s2 + $0x68] sm:$0xff]
  %v607 = vld [vmem:[%s2 + $0x70] sm:$0xff]
  %v608 = vld [vmem:[%s2 + $0x78] sm:$0xff]
  %609 = vmatprep.subr.mxu0 0.0
  %610 = vmatpush1.msra.mxu0 %v608
  %611 = vmatprep.subr.mxu0 0.0
  %612 = vmatpush1.msra.mxu0 %v607
  %613 = vmatprep.subr.mxu0 0.0
  %614 = vmatpush1.msra.mxu0 %v606
  %615 = vmatprep.subr.mxu0 0.0
  %616 = vmatpush1.msra.mxu0 %v605
  %617 = vmatprep.subr.mxu0 0.0
  %618 = vmatpush1.msra.mxu0 %v604
  %619 = vmatprep.subr.mxu0 0.0
  %620 = vmatpush1.msra.mxu0 %v603
  %621 = vmatprep.subr.mxu0 0.0
  %622 = vmatpush1.msra.mxu0 %v602
  %623 = vmatprep.subr.mxu0 0.0
  %624 = vmatpush1.msra.mxu0 %v601
  %625 = vmatprep.subr.mxu0 0.0
  %626 = vmatpush1.msra.mxu0 %v600
  %627 = vmatprep.subr.mxu0 0.0
  %628 = vmatpush1.msra.mxu0 %v599
  %629 = vmatprep.subr.mxu0 0.0
  %630 = vmatpush1.msra.mxu0 %v598
  %631 = vmatprep.subr.mxu0 0.0
  %632 = vmatpush1.msra.mxu0 %v597
  %633 = vmatprep.subr.mxu0 0.0
  %634 = vmatpush1.msra.mxu0 %v596
  %635 = vmatprep.subr.mxu0 0.0
  %636 = vmatpush1.msra.mxu0 %v595
  %637 = vmatprep.subr.mxu0 0.0
  %638 = vmatpush1.msra.mxu0 %v594
  %639 = vmatprep.subr.mxu0 0.0
  %640 = vmatpush1.msra.mxu0 %v593
  %641 = vmatprep.subr.mxu0 0.0
  %642 = vmatpush2.msra.mxu0 0.0
  %643 = vmatprep.subr.mxu0 0.0
  %644 = vmatpush2.msra.mxu0 0.0
  %645 = vmatprep.subr.mxu0 0.0
  %646 = vmatpush2.msra.mxu0 0.0
  %647 = vmatprep.subr.mxu0 0.0
  %648 = vmatpush2.msra.mxu0 0.0
  %649 = vmatprep.subr.mxu0 0.0
  %650 = vmatpush2.msra.mxu0 0.0
  %651 = vmatprep.subr.mxu0 0.0
  %652 = vmatpush2.msra.mxu0 0.0
  %653 = vmatprep.subr.mxu0 0.0
  %654 = vmatpush2.msra.mxu0 0.0
  %655 = vmatprep.subr.mxu0 0.0
  %656 = vmatpush2.msra.mxu0 0.0
  %657 = vmatprep.subr.mxu0 0.0
  %658 = vmatpush2.msra.mxu0 0.0
  %659 = vmatprep.subr.mxu0 0.0
  %660 = vmatpush2.msra.mxu0 0.0
  %661 = vmatprep.subr.mxu0 0.0
  %662 = vmatpush2.msra.mxu0 0.0
  %663 = vmatprep.subr.mxu0 0.0
  %664 = vmatpush2.msra.mxu0 0.0
  %665 = vmatprep.subr.mxu0 0.0
  %666 = vmatpush2.msra.mxu0 0.0
  %667 = vmatprep.subr.mxu0 0.0
  %668 = vmatpush2.msra.mxu0 0.0
  %669 = vmatprep.subr.mxu0 0.0
  %670 = vmatpush2.msra.mxu0 0.0
  %671 = vmatprep.subr.mxu0 0.0
  %672 = vmatpush2.msra.mxu0 0.0
  %673 = vmatprep.mubr.f32.mxu0 0.0
  %674 = vmatmul.mubr.f32.gmra.mxu0 %v592
  %v675 = vpop.f32.mrf.mxu0
  %v676 = vadd.f32 0.0, %v675
  %v677 = vpop.f32.mrf.mxu0
  %678 = vdwg.mxu0
  %v679 = vmul.f32 %v676, 0.001953125
  %v680 = vmul.f32 %v679, %v679
  %v682 = vrot.slane %v680, 7
  %v684 = vsub.f32 %v679, %v682
  %v685 = vmax.f32 %v684, 0.0
  %v686 = vld [vmem:[%s3] sm:$0x1]
  %v687 = vadd.f32 %v685, 1e-05
  %v688 = vrsqrt.pop %v687
  %v691 = vunpack.c.l.s4 1966171168
  %v692 = vunpack.c.0.s8 %v691
  %v693 = vlaneseq
  %v694 = vshrl.u32 %v693, 7
  %v695 = vsub.s32 %v692, %v694
  %v696 = vrot.slane %v688, %v695
  %v697 = vcombine.high %v696, %v696
  %v699 = vunpack.c.l.s4 1966171168
  %v700 = vunpack.c.0.s8 %v699
  %v701 = vlaneseq
  %v702 = vshrl.u32 %v701, 7
  %v703 = vsub.s32 %v700, %v702
  %v704 = vrot.slane %v697, %v703
  %v706 = vmul.f32 %v686, %v704
  %v707 = vld [vmem:[%s4] sm:$0x1]
  %v708 = vmul.f32 %v679, %v706
  %v709 = vsub.f32 %v707, %v708
  %v711 = vlaneseq
  %v712 = vshrl.u32 %v711, 7
  %v713 = vsub.s32 0, %v712
  %v714 = vrot.slane %v706, %v713
  %715 = vrot.lane.b32.xlu0 %v714, 8
  %v716 = vpop.permute.xlu0 %715
  %718 = vrot.lane.b32.xlu0 %v714, 16
  %v719 = vpop.permute.xlu0 %718
  %721 = vrot.lane.b32.xlu0 %v714, 24
  %v722 = vpop.permute.xlu0 %721
  %724 = vrot.lane.b32.xlu0 %v714, 32
  %v725 = vpop.permute.xlu0 %724
  %727 = vrot.lane.b32.xlu0 %v714, 40
  %v728 = vpop.permute.xlu0 %727
  %730 = vrot.lane.b32.xlu0 %v714, 48
  %v731 = vpop.permute.xlu0 %730
  %733 = vrot.lane.b32.xlu0 %v714, 56
  %v734 = vpop.permute.xlu0 %733
  %736 = vrot.lane.b32.xlu0 %v714, 64
  %v737 = vpop.permute.xlu0 %736
  %739 = vrot.lane.b32.xlu0 %v714, 72
  %v740 = vpop.permute.xlu0 %739
  %742 = vrot.lane.b32.xlu0 %v714, 80
  %v743 = vpop.permute.xlu0 %742
  %745 = vrot.lane.b32.xlu0 %v714, 88
  %v746 = vpop.permute.xlu0 %745
  %748 = vrot.lane.b32.xlu0 %v714, 96
  %v749 = vpop.permute.xlu0 %748
  %751 = vrot.lane.b32.xlu0 %v714, 104
  %v752 = vpop.permute.xlu0 %751
  %754 = vrot.lane.b32.xlu0 %v714, 112
  %v755 = vpop.permute.xlu0 %754
  %757 = vrot.lane.b32.xlu0 %v714, 120
  %v758 = vpop.permute.xlu0 %757
  %vm760 = vcmask 64512
  %v761 = vsel %vm760, %v706, %v716
  %vm762 = vcmask 130048
  %v763 = vsel %vm762, %v761, %v719
  %vm764 = vcmask 195584
  %v765 = vsel %vm764, %v763, %v722
  %vm766 = vcmask 261120
  %v767 = vsel %vm766, %v765, %v725
  %vm768 = vcmask 326656
  %v769 = vsel %vm768, %v767, %v728
  %vm770 = vcmask 392192
  %v771 = vsel %vm770, %v769, %v731
  %vm772 = vcmask 457728
  %v773 = vsel %vm772, %v771, %v734
  %vm774 = vcmask 523264
  %v775 = vsel %vm774, %v773, %v737
  %vm776 = vcmask 588800
  %v777 = vsel %vm776, %v775, %v740
  %vm778 = vcmask 654336
  %v779 = vsel %vm778, %v777, %v743
  %vm780 = vcmask 719872
  %v781 = vsel %vm780, %v779, %v746
  %vm782 = vcmask 785408
  %v783 = vsel %vm782, %v781, %v749
  %vm784 = vcmask 850944
  %v785 = vsel %vm784, %v783, %v752
  %vm786 = vcmask 916480
  %v787 = vsel %vm786, %v785, %v755
  %vm788 = vcmask 982016
  %v789 = vsel %vm788, %v787, %v758
  %v791 = vlaneseq
  %v792 = vshrl.u32 %v791, 7
  %v793 = vsub.s32 0, %v792
  %v794 = vrot.slane %v709, %v793
  %795 = vrot.lane.b32.xlu0 %v794, 8
  %v796 = vpop.permute.xlu0 %795
  %798 = vrot.lane.b32.xlu0 %v794, 16
  %v799 = vpop.permute.xlu0 %798
  %801 = vrot.lane.b32.xlu0 %v794, 24
  %v802 = vpop.permute.xlu0 %801
  %804 = vrot.lane.b32.xlu0 %v794, 32
  %v805 = vpop.permute.xlu0 %804
  %807 = vrot.lane.b32.xlu0 %v794, 40
  %v808 = vpop.permute.xlu0 %807
  %810 = vrot.lane.b32.xlu0 %v794, 48
  %v811 = vpop.permute.xlu0 %810
  %813 = vrot.lane.b32.xlu0 %v794, 56
  %v814 = vpop.permute.xlu0 %813
  %816 = vrot.lane.b32.xlu0 %v794, 64
  %v817 = vpop.permute.xlu0 %816
  %819 = vrot.lane.b32.xlu0 %v794, 72
  %v820 = vpop.permute.xlu0 %819
  %822 = vrot.lane.b32.xlu0 %v794, 80
  %v823 = vpop.permute.xlu0 %822
  %825 = vrot.lane.b32.xlu0 %v794, 88
  %v826 = vpop.permute.xlu0 %825
  %828 = vrot.lane.b32.xlu0 %v794, 96
  %v829 = vpop.permute.xlu0 %828
  %831 = vrot.lane.b32.xlu0 %v794, 104
  %v832 = vpop.permute.xlu0 %831
  %834 = vrot.lane.b32.xlu0 %v794, 112
  %v835 = vpop.permute.xlu0 %834
  %837 = vrot.lane.b32.xlu0 %v794, 120
  %v838 = vpop.permute.xlu0 %837
  %v840 = vsel %vm760, %v709, %v796
  %v841 = vsel %vm762, %v840, %v799
  %v842 = vsel %vm764, %v841, %v802
  %v843 = vsel %vm766, %v842, %v805
  %v844 = vsel %vm768, %v843, %v808
  %v845 = vsel %vm770, %v844, %v811
  %v846 = vsel %vm772, %v845, %v814
  %v847 = vsel %vm774, %v846, %v817
  %v848 = vsel %vm776, %v847, %v820
  %v849 = vsel %vm778, %v848, %v823
  %v850 = vsel %vm780, %v849, %v826
  %v851 = vsel %vm782, %v850, %v829
  %v852 = vsel %vm784, %v851, %v832
  %v853 = vsel %vm786, %v852, %v835
  %v854 = vsel %vm788, %v853, %v838
  %v855 = vlaneseq
  %v856 = vshrl.u32 %v855, 7
  %v857 = vsub.s32 0, %v856
  %v858 = vrot.slane %v789, %v857
  %v859 = vmul.f32 %v556, %v858
  %v860 = vmul.f32 %v559, %v858
  %v861 = vmul.f32 %v564, %v858
  %v862 = vmul.f32 %v567, %v858
  %v863 = vlaneseq
  %v864 = vshrl.u32 %v863, 7
  %v865 = vsub.s32 0, %v864
  %v866 = vrot.slane %v854, %v865
  %v867 = vadd.f32 %v859, %v866
  %v868 = vadd.f32 %v860, %v866
  %v869 = vadd.f32 %v861, %v866
  %v870 = vadd.f32 %v862, %v866
  %vm871 = vcmp.ge.f32.partialorder %v867, 0.0
  %vm872 = vcmp.ge.f32.partialorder %v868, 0.0
  %vm873 = vcmp.ge.f32.partialorder %v869, 0.0
  %vm874 = vcmp.ge.f32.partialorder %v870, 0.0
  %v875 = vmul.f32 %v867, 0.2
  %v876 = vmul.f32 %v868, 0.2
  %v877 = vmul.f32 %v869, 0.2
  %v878 = vmul.f32 %v870, 0.2
  %v879 = vsel %vm871, %v867, %v875
  %v880 = vsel %vm872, %v868, %v876
  %v881 = vsel %vm873, %v869, %v877
  %v882 = vsel %vm874, %v870, %v878
  %883 = vst [vmem:[#allocation2] sm:$0xff] %v879
  %884 = vst [vmem:[#allocation2 + $0x8] sm:$0xff] %v880
  %885 = vst [vmem:[#allocation2 + $0x10] sm:$0xff] %v881
  %886 = vst [vmem:[#allocation2 + $0x18] sm:$0xff] %v882
  %v887 = vld [vmem:[#allocation2] ss:$2 sm:$0xff]
  %s888 = scalar_lea.vmem [#allocation2], 16
  %v889 = vld [vmem:[%s888] ss:$2 sm:$0xff]
  %s890 = scalar_lea.vmem [#allocation2], 1
  %v891 = vld [vmem:[%s890] ss:$2 sm:$0xff]
  %s892 = scalar_lea.vmem [#allocation2], 17
  %v893 = vld [vmem:[%s892] ss:$2 sm:$0xff]
  %v896 = vrot.slane %v891, 7
  %v897 = vrot.slane %v893, 7
  %v898 = vsel %vm93, %v896, %v897
  %v901 = vsel %vm93, 0.0, %v896
  %v904 = vrot.slane %v887, 1
  %v905 = vrot.slane %v889, 1
  %v906 = vsel %vm110, %v904, %v905
  %v909 = vsel %vm110, %v905, 0.0
  %vm910 = vcmp.lt.s32.totalorder %v124, 0
  %v911 = vsub.s32 0, %v124
  %v912 = vsel %vm910, %v911, %v124
  %v913 = vshrl.u32 %v912, 3
  %v914 = vand.u32 %v912, 7
  %v915 = vsub.s32 0, %v914
  %v916 = vsel %vm910, %v915, %v914
  %vm917 = vcmp.lt.s32.totalorder %v125, 0
  %v918 = vsub.s32 0, %v125
  %v919 = vsel %vm917, %v918, %v125
  %v920 = vshrl.u32 %v919, 3
  %v921 = vand.u32 %v919, 7
  %v922 = vsub.s32 0, %v921
  %v923 = vsel %vm917, %v922, %v921
  %vm924 = vcmp.ne.s32.totalorder %v916, 0
  %vm925 = vcmp.ne.s32.totalorder %v923, 0
  %vm926 = vcmp.lt.s32.totalorder %v916, 0
  %vm927 = vcmp.lt.s32.totalorder %v923, 0
  %vm928 = vmand %vm926, %vm924
  %vm929 = vmand %vm927, %vm925
  %v930 = vadd.s32 %v916, 8
  %v931 = vadd.s32 %v923, 8
  %v932 = vsel %vm928, %v930, %v916
  %v933 = vsel %vm929, %v931, %v923
  %vm934 = vcmp.eq.s32.totalorder %v932, 0
  %vm935 = vcmp.eq.s32.totalorder %v933, 0
  %v936 = vsel %vm934, 1, 0
  %v937 = vsel %vm935, 1, 0
  %vm938 = vcmp.eq.s32.totalorder %v936, 1
  %vm939 = vcmp.eq.s32.totalorder %v937, 1
  %v940 = vsel %vm938, 0.0, %v901
  %v941 = vsel %vm939, 0.0, %v898
  %vm942 = vcmp.eq.s32.totalorder %v932, 7
  %vm943 = vcmp.eq.s32.totalorder %v933, 7
  %v944 = vsel %vm942, 1, 0
  %v945 = vsel %vm943, 1, 0
  %vm946 = vcmp.eq.s32.totalorder %v944, 1
  %vm947 = vcmp.eq.s32.totalorder %v945, 1
  %v948 = vsel %vm946, 0.0, %v906
  %v949 = vsel %vm947, 0.0, %v909
  %v950 = vpack.c.bf16 %v941, %v940
  %v951 = vpack.c.bf16 %v889, %v887
  %v952 = vpack.c.bf16 %v893, %v891
  %v953 = vpack.c.bf16 %v949, %v948
  %v954 = vld [vmem:[%s5] sm:$0xf]
  %v955 = vld [vmem:[%s5 + $0x4] sm:$0xf]
  %v956 = vld [vmem:[%s5 + $0x8] sm:$0xf]
  %v957 = vld [vmem:[%s5 + $0xc] sm:$0xf]
  %v958 = vld [vmem:[%s5 + $0x10] sm:$0xf]
  %v959 = vld [vmem:[%s5 + $0x14] sm:$0xf]
  %v960 = vld [vmem:[%s5 + $0x18] sm:$0xf]
  %v961 = vld [vmem:[%s5 + $0x1c] sm:$0xf]
  %v962 = vld [vmem:[%s5 + $0x20] sm:$0xf]
  %v963 = vld [vmem:[%s5 + $0x24] sm:$0xf]
  %v964 = vld [vmem:[%s5 + $0x28] sm:$0xf]
  %v965 = vld [vmem:[%s5 + $0x2c] sm:$0xf]
  %v966 = vld [vmem:[%s5 + $0x30] sm:$0xf]
  %v967 = vld [vmem:[%s5 + $0x34] sm:$0xf]
  %v968 = vld [vmem:[%s5 + $0x38] sm:$0xf]
  %v969 = vld [vmem:[%s5 + $0x3c] sm:$0xf]
  %v970 = vld [vmem:[%s5 + $0x40] sm:$0xf]
  %v971 = vld [vmem:[%s5 + $0x44] sm:$0xf]
  %v972 = vld [vmem:[%s5 + $0x48] sm:$0xf]
  %v973 = vld [vmem:[%s5 + $0x4c] sm:$0xf]
  %v974 = vld [vmem:[%s5 + $0x50] sm:$0xf]
  %v975 = vld [vmem:[%s5 + $0x54] sm:$0xf]
  %v976 = vld [vmem:[%s5 + $0x58] sm:$0xf]
  %v977 = vld [vmem:[%s5 + $0x5c] sm:$0xf]
  %v978 = vld [vmem:[%s5 + $0x60] sm:$0xf]
  %v979 = vld [vmem:[%s5 + $0x64] sm:$0xf]
  %v980 = vld [vmem:[%s5 + $0x68] sm:$0xf]
  %v981 = vld [vmem:[%s5 + $0x6c] sm:$0xf]
  %v982 = vld [vmem:[%s5 + $0x70] sm:$0xf]
  %v983 = vld [vmem:[%s5 + $0x74] sm:$0xf]
  %v984 = vld [vmem:[%s5 + $0x78] sm:$0xf]
  %v985 = vld [vmem:[%s5 + $0x7c] sm:$0xf]
  %v986 = vld [vmem:[%s5 + $0x80] sm:$0xf]
  %v987 = vld [vmem:[%s5 + $0x84] sm:$0xf]
  %v988 = vld [vmem:[%s5 + $0x88] sm:$0xf]
  %v989 = vld [vmem:[%s5 + $0x8c] sm:$0xf]
  %v990 = vld [vmem:[%s5 + $0x90] sm:$0xf]
  %v991 = vld [vmem:[%s5 + $0x94] sm:$0xf]
  %v992 = vld [vmem:[%s5 + $0x98] sm:$0xf]
  %v993 = vld [vmem:[%s5 + $0x9c] sm:$0xf]
  %v994 = vld [vmem:[%s5 + $0xa0] sm:$0xf]
  %v995 = vld [vmem:[%s5 + $0xa4] sm:$0xf]
  %v996 = vld [vmem:[%s5 + $0xa8] sm:$0xf]
  %v997 = vld [vmem:[%s5 + $0xac] sm:$0xf]
  %v998 = vld [vmem:[%s5 + $0xb0] sm:$0xf]
  %v999 = vld [vmem:[%s5 + $0xb4] sm:$0xf]
  %v1000 = vld [vmem:[%s5 + $0xb8] sm:$0xf]
  %v1001 = vld [vmem:[%s5 + $0xbc] sm:$0xf]
  %v1002 = vld [vmem:[%s5 + $0xc0] sm:$0xf]
  %v1003 = vld [vmem:[%s5 + $0xc4] sm:$0xf]
  %v1004 = vld [vmem:[%s5 + $0xc8] sm:$0xf]
  %v1005 = vld [vmem:[%s5 + $0xcc] sm:$0xf]
  %v1006 = vld [vmem:[%s5 + $0xd0] sm:$0xf]
  %v1007 = vld [vmem:[%s5 + $0xd4] sm:$0xf]
  %v1008 = vld [vmem:[%s5 + $0xd8] sm:$0xf]
  %v1009 = vld [vmem:[%s5 + $0xdc] sm:$0xf]
  %v1010 = vld [vmem:[%s5 + $0xe0] sm:$0xf]
  %v1011 = vld [vmem:[%s5 + $0xe4] sm:$0xf]
  %v1012 = vld [vmem:[%s5 + $0xe8] sm:$0xf]
  %v1013 = vld [vmem:[%s5 + $0xec] sm:$0xf]
  %v1014 = vld [vmem:[%s5 + $0xf0] sm:$0xf]
  %v1015 = vld [vmem:[%s5 + $0xf4] sm:$0xf]
  %v1016 = vld [vmem:[%s5 + $0xf8] sm:$0xf]
  %v1017 = vld [vmem:[%s5 + $0xfc] sm:$0xf]
  %v1082 = vunpack.c.l.b16 %v954
  %v1083 = vunpack.c.l.b16 %v955
  %v1084 = vunpack.c.l.b16 %v956
  %v1085 = vunpack.c.l.b16 %v957
  %v1086 = vunpack.c.l.b16 %v958
  %v1087 = vunpack.c.l.b16 %v959
  %v1088 = vunpack.c.l.b16 %v960
  %v1089 = vunpack.c.l.b16 %v961
  %v1090 = vunpack.c.l.b16 %v962
  %v1091 = vunpack.c.l.b16 %v963
  %v1092 = vunpack.c.l.b16 %v964
  %v1093 = vunpack.c.l.b16 %v965
  %v1094 = vunpack.c.l.b16 %v966
  %v1095 = vunpack.c.l.b16 %v967
  %v1096 = vunpack.c.l.b16 %v968
  %v1097 = vunpack.c.l.b16 %v969
  %v1098 = vunpack.c.l.b16 %v970
  %v1099 = vunpack.c.l.b16 %v971
  %v1100 = vunpack.c.l.b16 %v972
  %v1101 = vunpack.c.l.b16 %v973
  %v1102 = vunpack.c.l.b16 %v974
  %v1103 = vunpack.c.l.b16 %v975
  %v1104 = vunpack.c.l.b16 %v976
  %v1105 = vunpack.c.l.b16 %v977
  %v1106 = vunpack.c.l.b16 %v978
  %v1107 = vunpack.c.l.b16 %v979
  %v1108 = vunpack.c.l.b16 %v980
  %v1109 = vunpack.c.l.b16 %v981
  %v1110 = vunpack.c.l.b16 %v982
  %v1111 = vunpack.c.l.b16 %v983
  %v1112 = vunpack.c.l.b16 %v984
  %v1113 = vunpack.c.l.b16 %v985
  %v1114 = vunpack.c.l.b16 %v986
  %v1115 = vunpack.c.l.b16 %v987
  %v1116 = vunpack.c.l.b16 %v988
  %v1117 = vunpack.c.l.b16 %v989
  %v1118 = vunpack.c.l.b16 %v990
  %v1119 = vunpack.c.l.b16 %v991
  %v1120 = vunpack.c.l.b16 %v992
  %v1121 = vunpack.c.l.b16 %v993
  %v1122 = vunpack.c.l.b16 %v994
  %v1123 = vunpack.c.l.b16 %v995
  %v1124 = vunpack.c.l.b16 %v996
  %v1125 = vunpack.c.l.b16 %v997
  %v1126 = vunpack.c.l.b16 %v998
  %v1127 = vunpack.c.l.b16 %v999
  %v1128 = vunpack.c.l.b16 %v1000
  %v1129 = vunpack.c.l.b16 %v1001
  %v1130 = vunpack.c.l.b16 %v1002
  %v1131 = vunpack.c.l.b16 %v1003
  %v1132 = vunpack.c.l.b16 %v1004
  %v1133 = vunpack.c.l.b16 %v1005
  %v1134 = vunpack.c.l.b16 %v1006
  %v1135 = vunpack.c.l.b16 %v1007
  %v1136 = vunpack.c.l.b16 %v1008
  %v1137 = vunpack.c.l.b16 %v1009
  %v1138 = vunpack.c.l.b16 %v1010
  %v1139 = vunpack.c.l.b16 %v1011
  %v1140 = vunpack.c.l.b16 %v1012
  %v1141 = vunpack.c.l.b16 %v1013
  %v1142 = vunpack.c.l.b16 %v1014
  %v1143 = vunpack.c.l.b16 %v1015
  %v1144 = vunpack.c.l.b16 %v1016
  %v1145 = vunpack.c.l.b16 %v1017
  %v1146 = vpack.c.b16 %v1083, %v1082
  %v1147 = vpack.c.b16 %v1085, %v1084
  %v1148 = vpack.c.b16 %v1087, %v1086
  %v1149 = vpack.c.b16 %v1089, %v1088
  %v1150 = vpack.c.b16 %v1091, %v1090
  %v1151 = vpack.c.b16 %v1093, %v1092
  %v1152 = vpack.c.b16 %v1095, %v1094
  %v1153 = vpack.c.b16 %v1097, %v1096
  %v1154 = vpack.c.b16 %v1099, %v1098
  %v1155 = vpack.c.b16 %v1101, %v1100
  %v1156 = vpack.c.b16 %v1103, %v1102
  %v1157 = vpack.c.b16 %v1105, %v1104
  %v1158 = vpack.c.b16 %v1107, %v1106
  %v1159 = vpack.c.b16 %v1109, %v1108
  %v1160 = vpack.c.b16 %v1111, %v1110
  %v1161 = vpack.c.b16 %v1113, %v1112
  %v1162 = vpack.c.b16 %v1115, %v1114
  %v1163 = vpack.c.b16 %v1117, %v1116
  %v1164 = vpack.c.b16 %v1119, %v1118
  %v1165 = vpack.c.b16 %v1121, %v1120
  %v1166 = vpack.c.b16 %v1123, %v1122
  %v1167 = vpack.c.b16 %v1125, %v1124
  %v1168 = vpack.c.b16 %v1127, %v1126
  %v1169 = vpack.c.b16 %v1129, %v1128
  %v1170 = vpack.c.b16 %v1131, %v1130
  %v1171 = vpack.c.b16 %v1133, %v1132
  %v1172 = vpack.c.b16 %v1135, %v1134
  %v1173 = vpack.c.b16 %v1137, %v1136
  %v1174 = vpack.c.b16 %v1139, %v1138
  %v1175 = vpack.c.b16 %v1141, %v1140
  %v1176 = vpack.c.b16 %v1143, %v1142
  %v1177 = vpack.c.b16 %v1145, %v1144
  %1210 = vmatprep.subr.bf16.mxu0 0
  %1211 = vmatpush1.bf16.msra.mxu0 %v1153
  %1212 = vmatprep.subr.bf16.mxu0 0
  %1213 = vmatpush1.bf16.msra.mxu0 %v1152
  %1214 = vmatprep.subr.bf16.mxu0 0
  %1215 = vmatpush1.bf16.msra.mxu0 %v1151
  %1216 = vmatprep.subr.bf16.mxu0 0
  %1217 = vmatpush1.bf16.msra.mxu0 %v1150
  %1218 = vmatprep.subr.bf16.mxu0 0
  %1219 = vmatpush1.bf16.msra.mxu0 %v1149
  %1220 = vmatprep.subr.bf16.mxu0 0
  %1221 = vmatpush1.bf16.msra.mxu0 %v1148
  %1222 = vmatprep.subr.bf16.mxu0 0
  %1223 = vmatpush1.bf16.msra.mxu0 %v1147
  %1224 = vmatprep.subr.bf16.mxu0 0
  %1225 = vmatpush1.bf16.msra.mxu0 %v1146
  %1226 = vmatprep.subr.bf16.mxu0 0
  %1227 = vmatpush2.bf16.msra.mxu0 %v1161
  %1228 = vmatprep.subr.bf16.mxu0 0
  %1229 = vmatpush2.bf16.msra.mxu0 %v1160
  %1230 = vmatprep.subr.bf16.mxu0 0
  %1231 = vmatpush2.bf16.msra.mxu0 %v1159
  %1232 = vmatprep.subr.bf16.mxu0 0
  %1233 = vmatpush2.bf16.msra.mxu0 %v1158
  %1234 = vmatprep.subr.bf16.mxu0 0
  %1235 = vmatpush2.bf16.msra.mxu0 %v1157
  %1236 = vmatprep.subr.bf16.mxu0 0
  %1237 = vmatpush2.bf16.msra.mxu0 %v1156
  %1238 = vmatprep.subr.bf16.mxu0 0
  %1239 = vmatpush2.bf16.msra.mxu0 %v1155
  %1240 = vmatprep.subr.bf16.mxu0 0
  %1241 = vmatpush2.bf16.msra.mxu0 %v1154
  %1242 = vmatprep.mubr.bf16.mxu0 %v951
  %1243 = vmatmul.mubr.bf16.gmra.mxu0 %v950
  %v1244 = vpop.f32.mrf.mxu0
  %v1245 = vadd.f32 0.0, %v1244
  %v1246 = vpop.f32.mrf.mxu0
  %v1247 = vpop.f32.mrf.mxu0
  %v1248 = vadd.f32 0.0, %v1247
  %v1249 = vpop.f32.mrf.mxu0
  %1250 = vdwg.mxu0
  %1251 = vmatprep.subr.bf16.mxu0 0
  %1252 = vmatpush1.bf16.msra.mxu0 %v1169
  %1253 = vmatprep.subr.bf16.mxu0 0
  %1254 = vmatpush1.bf16.msra.mxu0 %v1168
  %1255 = vmatprep.subr.bf16.mxu0 0
  %1256 = vmatpush1.bf16.msra.mxu0 %v1167
  %1257 = vmatprep.subr.bf16.mxu0 0
  %1258 = vmatpush1.bf16.msra.mxu0 %v1166
  %1259 = vmatprep.subr.bf16.mxu0 0
  %1260 = vmatpush1.bf16.msra.mxu0 %v1165
  %1261 = vmatprep.subr.bf16.mxu0 0
  %1262 = vmatpush1.bf16.msra.mxu0 %v1164
  %1263 = vmatprep.subr.bf16.mxu0 0
  %1264 = vmatpush1.bf16.msra.mxu0 %v1163
  %1265 = vmatprep.subr.bf16.mxu0 0
  %1266 = vmatpush1.bf16.msra.mxu0 %v1162
  %1267 = vmatprep.subr.bf16.mxu0 0
  %1268 = vmatpush2.bf16.msra.mxu0 %v1177
  %1269 = vmatprep.subr.bf16.mxu0 0
  %1270 = vmatpush2.bf16.msra.mxu0 %v1176
  %1271 = vmatprep.subr.bf16.mxu0 0
  %1272 = vmatpush2.bf16.msra.mxu0 %v1175
  %1273 = vmatprep.subr.bf16.mxu0 0
  %1274 = vmatpush2.bf16.msra.mxu0 %v1174
  %1275 = vmatprep.subr.bf16.mxu0 0
  %1276 = vmatpush2.bf16.msra.mxu0 %v1173
  %1277 = vmatprep.subr.bf16.mxu0 0
  %1278 = vmatpush2.bf16.msra.mxu0 %v1172
  %1279 = vmatprep.subr.bf16.mxu0 0
  %1280 = vmatpush2.bf16.msra.mxu0 %v1171
  %1281 = vmatprep.subr.bf16.mxu0 0
  %1282 = vmatpush2.bf16.msra.mxu0 %v1170
  %1283 = vmatprep.mubr.bf16.mxu0 %v953
  %1284 = vmatmul.mubr.bf16.gmra.mxu0 %v952
  %v1285 = vpop.f32.mrf.mxu0
  %v1286 = vadd.f32 %v1245, %v1285
  %v1287 = vpop.f32.mrf.mxu0
  %v1288 = vpop.f32.mrf.mxu0
  %v1289 = vadd.f32 %v1248, %v1288
  %v1290 = vpop.f32.mrf.mxu0
  %1291 = vdwg.mxu0
  %v1292 = vadd.f32 %v1286, %v1289
  %v1293 = vrot.slane %v1292, 4
  %v1294 = vadd.f32 %v1292, %v1293
  %v1295 = vrot.slane %v1294, 2
  %v1296 = vadd.f32 %v1294, %v1295
  %v1297 = vrot.slane %v1296, 1
  %v1298 = vadd.f32 %v1296, %v1297
  %v1299 = vmul.f32 %v1286, %v1286
  %v1300 = vmul.f32 %v1289, %v1289
  %v1301 = vadd.f32 %v1299, %v1300
  %v1302 = vrot.slane %v1301, 4
  %v1303 = vadd.f32 %v1301, %v1302
  %v1304 = vrot.slane %v1303, 2
  %v1305 = vadd.f32 %v1303, %v1304
  %v1306 = vrot.slane %v1305, 1
  %v1307 = vadd.f32 %v1305, %v1306
  %v1308 = vsel %vm93, %v1298, %v1307
  %v1309 = vld [vmem:[%s6] sm:$0xff]
  %v1310 = vld [vmem:[%s6 + $0x8] sm:$0xff]
  %v1311 = vld [vmem:[%s6 + $0x10] sm:$0xff]
  %v1312 = vld [vmem:[%s6 + $0x18] sm:$0xff]
  %v1313 = vld [vmem:[%s6 + $0x20] sm:$0xff]
  %v1314 = vld [vmem:[%s6 + $0x28] sm:$0xff]
  %v1315 = vld [vmem:[%s6 + $0x30] sm:$0xff]
  %v1316 = vld [vmem:[%s6 + $0x38] sm:$0xff]
  %v1317 = vld [vmem:[%s6 + $0x40] sm:$0xff]
  %v1318 = vld [vmem:[%s6 + $0x48] sm:$0xff]
  %v1319 = vld [vmem:[%s6 + $0x50] sm:$0xff]
  %v1320 = vld [vmem:[%s6 + $0x58] sm:$0xff]
  %v1321 = vld [vmem:[%s6 + $0x60] sm:$0xff]
  %v1322 = vld [vmem:[%s6 + $0x68] sm:$0xff]
  %v1323 = vld [vmem:[%s6 + $0x70] sm:$0xff]
  %v1324 = vld [vmem:[%s6 + $0x78] sm:$0xff]
  %1325 = vmatprep.subr.mxu0 0.0
  %1326 = vmatpush1.msra.mxu0 %v1324
  %1327 = vmatprep.subr.mxu0 0.0
  %1328 = vmatpush1.msra.mxu0 %v1323
  %1329 = vmatprep.subr.mxu0 0.0
  %1330 = vmatpush1.msra.mxu0 %v1322
  %1331 = vmatprep.subr.mxu0 0.0
  %1332 = vmatpush1.msra.mxu0 %v1321
  %1333 = vmatprep.subr.mxu0 0.0
  %1334 = vmatpush1.msra.mxu0 %v1320
  %1335 = vmatprep.subr.mxu0 0.0
  %1336 = vmatpush1.msra.mxu0 %v1319
  %1337 = vmatprep.subr.mxu0 0.0
  %1338 = vmatpush1.msra.mxu0 %v1318
  %1339 = vmatprep.subr.mxu0 0.0
  %1340 = vmatpush1.msra.mxu0 %v1317
  %1341 = vmatprep.subr.mxu0 0.0
  %1342 = vmatpush1.msra.mxu0 %v1316
  %1343 = vmatprep.subr.mxu0 0.0
  %1344 = vmatpush1.msra.mxu0 %v1315
  %1345 = vmatprep.subr.mxu0 0.0
  %1346 = vmatpush1.msra.mxu0 %v1314
  %1347 = vmatprep.subr.mxu0 0.0
  %1348 = vmatpush1.msra.mxu0 %v1313
  %1349 = vmatprep.subr.mxu0 0.0
  %1350 = vmatpush1.msra.mxu0 %v1312
  %1351 = vmatprep.subr.mxu0 0.0
  %1352 = vmatpush1.msra.mxu0 %v1311
  %1353 = vmatprep.subr.mxu0 0.0
  %1354 = vmatpush1.msra.mxu0 %v1310
  %1355 = vmatprep.subr.mxu0 0.0
  %1356 = vmatpush1.msra.mxu0 %v1309
  %1357 = vmatprep.subr.mxu0 0.0
  %1358 = vmatpush2.msra.mxu0 0.0
  %1359 = vmatprep.subr.mxu0 0.0
  %1360 = vmatpush2.msra.mxu0 0.0
  %1361 = vmatprep.subr.mxu0 0.0
  %1362 = vmatpush2.msra.mxu0 0.0
  %1363 = vmatprep.subr.mxu0 0.0
  %1364 = vmatpush2.msra.mxu0 0.0
  %1365 = vmatprep.subr.mxu0 0.0
  %1366 = vmatpush2.msra.mxu0 0.0
  %1367 = vmatprep.subr.mxu0 0.0
  %1368 = vmatpush2.msra.mxu0 0.0
  %1369 = vmatprep.subr.mxu0 0.0
  %1370 = vmatpush2.msra.mxu0 0.0
  %1371 = vmatprep.subr.mxu0 0.0
  %1372 = vmatpush2.msra.mxu0 0.0
  %1373 = vmatprep.subr.mxu0 0.0
  %1374 = vmatpush2.msra.mxu0 0.0
  %1375 = vmatprep.subr.mxu0 0.0
  %1376 = vmatpush2.msra.mxu0 0.0
  %1377 = vmatprep.subr.mxu0 0.0
  %1378 = vmatpush2.msra.mxu0 0.0
  %1379 = vmatprep.subr.mxu0 0.0
  %1380 = vmatpush2.msra.mxu0 0.0
  %1381 = vmatprep.subr.mxu0 0.0
  %1382 = vmatpush2.msra.mxu0 0.0
  %1383 = vmatprep.subr.mxu0 0.0
  %1384 = vmatpush2.msra.mxu0 0.0
  %1385 = vmatprep.subr.mxu0 0.0
  %1386 = vmatpush2.msra.mxu0 0.0
  %1387 = vmatprep.subr.mxu0 0.0
  %1388 = vmatpush2.msra.mxu0 0.0
  %1389 = vmatprep.mubr.f32.mxu0 0.0
  %1390 = vmatmul.mubr.f32.gmra.mxu0 %v1308
  %v1391 = vpop.f32.mrf.mxu0
  %v1392 = vadd.f32 0.0, %v1391
  %v1393 = vpop.f32.mrf.mxu0
  %1394 = vdwg.mxu0
  %v1395 = vmul.f32 %v1392, 0.0078125
  %v1396 = vmul.f32 %v1395, %v1395
  %v1398 = vrot.slane %v1396, 7
  %v1400 = vsub.f32 %v1395, %v1398
  %v1401 = vmax.f32 %v1400, 0.0
  %v1402 = vld [vmem:[%s7] sm:$0x1]
  %v1403 = vadd.f32 %v1401, 1e-05
  %v1404 = vrsqrt.pop %v1403
  %v1407 = vunpack.c.l.s4 1966171168
  %v1408 = vunpack.c.0.s8 %v1407
  %v1409 = vlaneseq
  %v1410 = vshrl.u32 %v1409, 7
  %v1411 = vsub.s32 %v1408, %v1410
  %v1412 = vrot.slane %v1404, %v1411
  %v1413 = vcombine.high %v1412, %v1412
  %v1415 = vunpack.c.l.s4 1966171168
  %v1416 = vunpack.c.0.s8 %v1415
  %v1417 = vlaneseq
  %v1418 = vshrl.u32 %v1417, 7
  %v1419 = vsub.s32 %v1416, %v1418
  %v1420 = vrot.slane %v1413, %v1419
  %v1422 = vmul.f32 %v1402, %v1420
  %v1423 = vld [vmem:[%s8] sm:$0x1]
  %v1424 = vmul.f32 %v1395, %v1422
  %v1425 = vsub.f32 %v1423, %v1424
  %v1427 = vlaneseq
  %v1428 = vshrl.u32 %v1427, 7
  %v1429 = vsub.s32 0, %v1428
  %v1430 = vrot.slane %v1422, %v1429
  %1431 = vrot.lane.b32.xlu0 %v1430, 16
  %v1432 = vpop.permute.xlu0 %1431
  %1434 = vrot.lane.b32.xlu0 %v1430, 32
  %v1435 = vpop.permute.xlu0 %1434
  %1437 = vrot.lane.b32.xlu0 %v1430, 48
  %v1438 = vpop.permute.xlu0 %1437
  %1440 = vrot.lane.b32.xlu0 %v1430, 64
  %v1441 = vpop.permute.xlu0 %1440
  %1443 = vrot.lane.b32.xlu0 %v1430, 80
  %v1444 = vpop.permute.xlu0 %1443
  %1446 = vrot.lane.b32.xlu0 %v1430, 96
  %v1447 = vpop.permute.xlu0 %1446
  %1449 = vrot.lane.b32.xlu0 %v1430, 112
  %v1450 = vpop.permute.xlu0 %1449
  %v1452 = vsel %vm762, %v1422, %v1432
  %v1453 = vsel %vm766, %v1452, %v1435
  %v1454 = vsel %vm770, %v1453, %v1438
  %v1455 = vsel %vm774, %v1454, %v1441
  %v1456 = vsel %vm778, %v1455, %v1444
  %v1457 = vsel %vm782, %v1456, %v1447
  %v1458 = vsel %vm786, %v1457, %v1450
  %v1460 = vlaneseq
  %v1461 = vshrl.u32 %v1460, 7
  %v1462 = vsub.s32 0, %v1461
  %v1463 = vrot.slane %v1425, %v1462
  %1464 = vrot.lane.b32.xlu0 %v1463, 16
  %v1465 = vpop.permute.xlu0 %1464
  %1467 = vrot.lane.b32.xlu0 %v1463, 32
  %v1468 = vpop.permute.xlu0 %1467
  %1470 = vrot.lane.b32.xlu0 %v1463, 48
  %v1471 = vpop.permute.xlu0 %1470
  %1473 = vrot.lane.b32.xlu0 %v1463, 64
  %v1474 = vpop.permute.xlu0 %1473
  %1476 = vrot.lane.b32.xlu0 %v1463, 80
  %v1477 = vpop.permute.xlu0 %1476
  %1479 = vrot.lane.b32.xlu0 %v1463, 96
  %v1480 = vpop.permute.xlu0 %1479
  %1482 = vrot.lane.b32.xlu0 %v1463, 112
  %v1483 = vpop.permute.xlu0 %1482
  %v1485 = vsel %vm762, %v1425, %v1465
  %v1486 = vsel %vm766, %v1485, %v1468
  %v1487 = vsel %vm770, %v1486, %v1471
  %v1488 = vsel %vm774, %v1487, %v1474
  %v1489 = vsel %vm778, %v1488, %v1477
  %v1490 = vsel %vm782, %v1489, %v1480
  %v1491 = vsel %vm786, %v1490, %v1483
  %v1492 = vlaneseq
  %v1493 = vshrl.u32 %v1492, 7
  %v1494 = vsub.s32 0, %v1493
  %v1495 = vrot.slane %v1458, %v1494
  %v1496 = vmul.f32 %v1286, %v1495
  %v1497 = vmul.f32 %v1289, %v1495
  %v1498 = vlaneseq
  %v1499 = vshrl.u32 %v1498, 7
  %v1500 = vsub.s32 0, %v1499
  %v1501 = vrot.slane %v1491, %v1500
  %v1502 = vadd.f32 %v1496, %v1501
  %v1503 = vadd.f32 %v1497, %v1501
  %vm1504 = vcmp.ge.f32.partialorder %v1502, 0.0
  %vm1505 = vcmp.ge.f32.partialorder %v1503, 0.0
  %v1506 = vmul.f32 %v1502, 0.2
  %v1507 = vmul.f32 %v1503, 0.2
  %v1508 = vsel %vm1504, %v1502, %v1506
  %v1509 = vsel %vm1505, %v1503, %v1507
  %1510 = vst [vmem:[#allocation2] sm:$0xff] %v1508
  %1511 = vst [vmem:[#allocation2 + $0x8] sm:$0xff] %v1509
  %v1512 = vld [vmem:[#allocation2] ss:$2 sm:$0xff]
  %v1513 = vld [vmem:[%s890] ss:$2 sm:$0xff]
  %v1515 = vrot.slane %v1513, 7
  %v1517 = vsel %vm93, 0.0, %v1515
  %v1519 = vrot.slane %v1512, 1
  %v1521 = vsel %vm110, %v1519, 0.0
  %vm1522 = vcmp.lt.s32.totalorder %v124, 0
  %v1523 = vsub.s32 0, %v124
  %v1524 = vsel %vm1522, %v1523, %v124
  %v1525 = vshrl.u32 %v1524, 2
  %v1526 = vand.u32 %v1524, 3
  %v1527 = vsub.s32 0, %v1526
  %v1528 = vsel %vm1522, %v1527, %v1526
  %vm1529 = vcmp.ne.s32.totalorder %v1528, 0
  %vm1530 = vcmp.lt.s32.totalorder %v1528, 0
  %vm1531 = vmand %vm1530, %vm1529
  %v1532 = vadd.s32 %v1528, 4
  %v1533 = vsel %vm1531, %v1532, %v1528
  %vm1534 = vcmp.eq.s32.totalorder %v1533, 0
  %v1535 = vsel %vm1534, 1, 0
  %vm1536 = vcmp.eq.s32.totalorder %v1535, 1
  %v1537 = vsel %vm1536, 0.0, %v1517
  %vm1538 = vcmp.eq.s32.totalorder %v1533, 3
  %v1539 = vsel %vm1538, 1, 0
  %vm1540 = vcmp.eq.s32.totalorder %v1539, 1
  %v1541 = vsel %vm1540, 0.0, %v1521
  %v1542 = vpack.c.bf16 %v1537, %v1537
  %v1543 = vpack.c.bf16 %v1512, %v1512
  %v1544 = vpack.c.bf16 %v1513, %v1513
  %v1545 = vpack.c.bf16 %v1541, %v1541
  %v1546 = vld [vmem:[%s9] sm:$0xf]
  %v1547 = vld [vmem:[%s9 + $0x4] sm:$0xf]
  %v1548 = vld [vmem:[%s9 + $0x8] sm:$0xf]
  %v1549 = vld [vmem:[%s9 + $0xc] sm:$0xf]
  %v1550 = vld [vmem:[%s9 + $0x10] sm:$0xf]
  %v1551 = vld [vmem:[%s9 + $0x14] sm:$0xf]
  %v1552 = vld [vmem:[%s9 + $0x18] sm:$0xf]
  %v1553 = vld [vmem:[%s9 + $0x1c] sm:$0xf]
  %v1554 = vld [vmem:[%s9 + $0x20] sm:$0xf]
  %v1555 = vld [vmem:[%s9 + $0x24] sm:$0xf]
  %v1556 = vld [vmem:[%s9 + $0x28] sm:$0xf]
  %v1557 = vld [vmem:[%s9 + $0x2c] sm:$0xf]
  %v1558 = vld [vmem:[%s9 + $0x30] sm:$0xf]
  %v1559 = vld [vmem:[%s9 + $0x34] sm:$0xf]
  %v1560 = vld [vmem:[%s9 + $0x38] sm:$0xf]
  %v1561 = vld [vmem:[%s9 + $0x3c] sm:$0xf]
  %v1562 = vld [vmem:[%s9 + $0x40] sm:$0xf]
  %v1563 = vld [vmem:[%s9 + $0x44] sm:$0xf]
  %v1564 = vld [vmem:[%s9 + $0x48] sm:$0xf]
  %v1565 = vld [vmem:[%s9 + $0x4c] sm:$0xf]
  %v1566 = vld [vmem:[%s9 + $0x50] sm:$0xf]
  %v1567 = vld [vmem:[%s9 + $0x54] sm:$0xf]
  %v1568 = vld [vmem:[%s9 + $0x58] sm:$0xf]
  %v1569 = vld [vmem:[%s9 + $0x5c] sm:$0xf]
  %v1570 = vld [vmem:[%s9 + $0x60] sm:$0xf]
  %v1571 = vld [vmem:[%s9 + $0x64] sm:$0xf]
  %v1572 = vld [vmem:[%s9 + $0x68] sm:$0xf]
  %v1573 = vld [vmem:[%s9 + $0x6c] sm:$0xf]
  %v1574 = vld [vmem:[%s9 + $0x70] sm:$0xf]
  %v1575 = vld [vmem:[%s9 + $0x74] sm:$0xf]
  %v1576 = vld [vmem:[%s9 + $0x78] sm:$0xf]
  %v1577 = vld [vmem:[%s9 + $0x7c] sm:$0xf]
  %v1578 = vld [vmem:[%s9 + $0x80] sm:$0xf]
  %v1579 = vld [vmem:[%s9 + $0x84] sm:$0xf]
  %v1580 = vld [vmem:[%s9 + $0x88] sm:$0xf]
  %v1581 = vld [vmem:[%s9 + $0x8c] sm:$0xf]
  %v1582 = vld [vmem:[%s9 + $0x90] sm:$0xf]
  %v1583 = vld [vmem:[%s9 + $0x94] sm:$0xf]
  %v1584 = vld [vmem:[%s9 + $0x98] sm:$0xf]
  %v1585 = vld [vmem:[%s9 + $0x9c] sm:$0xf]
  %v1586 = vld [vmem:[%s9 + $0xa0] sm:$0xf]
  %v1587 = vld [vmem:[%s9 + $0xa4] sm:$0xf]
  %v1588 = vld [vmem:[%s9 + $0xa8] sm:$0xf]
  %v1589 = vld [vmem:[%s9 + $0xac] sm:$0xf]
  %v1590 = vld [vmem:[%s9 + $0xb0] sm:$0xf]
  %v1591 = vld [vmem:[%s9 + $0xb4] sm:$0xf]
  %v1592 = vld [vmem:[%s9 + $0xb8] sm:$0xf]
  %v1593 = vld [vmem:[%s9 + $0xbc] sm:$0xf]
  %v1594 = vld [vmem:[%s9 + $0xc0] sm:$0xf]
  %v1595 = vld [vmem:[%s9 + $0xc4] sm:$0xf]
  %v1596 = vld [vmem:[%s9 + $0xc8] sm:$0xf]
  %v1597 = vld [vmem:[%s9 + $0xcc] sm:$0xf]
  %v1598 = vld [vmem:[%s9 + $0xd0] sm:$0xf]
  %v1599 = vld [vmem:[%s9 + $0xd4] sm:$0xf]
  %v1600 = vld [vmem:[%s9 + $0xd8] sm:$0xf]
  %v1601 = vld [vmem:[%s9 + $0xdc] sm:$0xf]
  %v1602 = vld [vmem:[%s9 + $0xe0] sm:$0xf]
  %v1603 = vld [vmem:[%s9 + $0xe4] sm:$0xf]
  %v1604 = vld [vmem:[%s9 + $0xe8] sm:$0xf]
  %v1605 = vld [vmem:[%s9 + $0xec] sm:$0xf]
  %v1606 = vld [vmem:[%s9 + $0xf0] sm:$0xf]
  %v1607 = vld [vmem:[%s9 + $0xf4] sm:$0xf]
  %v1608 = vld [vmem:[%s9 + $0xf8] sm:$0xf]
  %v1609 = vld [vmem:[%s9 + $0xfc] sm:$0xf]
  %v1674 = vunpack.c.l.b16 %v1546
  %v1675 = vunpack.c.l.b16 %v1547
  %v1676 = vunpack.c.l.b16 %v1548
  %v1677 = vunpack.c.l.b16 %v1549
  %v1678 = vunpack.c.l.b16 %v1550
  %v1679 = vunpack.c.l.b16 %v1551
  %v1680 = vunpack.c.l.b16 %v1552
  %v1681 = vunpack.c.l.b16 %v1553
  %v1682 = vunpack.c.l.b16 %v1554
  %v1683 = vunpack.c.l.b16 %v1555
  %v1684 = vunpack.c.l.b16 %v1556
  %v1685 = vunpack.c.l.b16 %v1557
  %v1686 = vunpack.c.l.b16 %v1558
  %v1687 = vunpack.c.l.b16 %v1559
  %v1688 = vunpack.c.l.b16 %v1560
  %v1689 = vunpack.c.l.b16 %v1561
  %v1690 = vunpack.c.l.b16 %v1562
  %v1691 = vunpack.c.l.b16 %v1563
  %v1692 = vunpack.c.l.b16 %v1564
  %v1693 = vunpack.c.l.b16 %v1565
  %v1694 = vunpack.c.l.b16 %v1566
  %v1695 = vunpack.c.l.b16 %v1567
  %v1696 = vunpack.c.l.b16 %v1568
  %v1697 = vunpack.c.l.b16 %v1569
  %v1698 = vunpack.c.l.b16 %v1570
  %v1699 = vunpack.c.l.b16 %v1571
  %v1700 = vunpack.c.l.b16 %v1572
  %v1701 = vunpack.c.l.b16 %v1573
  %v1702 = vunpack.c.l.b16 %v1574
  %v1703 = vunpack.c.l.b16 %v1575
  %v1704 = vunpack.c.l.b16 %v1576
  %v1705 = vunpack.c.l.b16 %v1577
  %v1706 = vunpack.c.l.b16 %v1578
  %v1707 = vunpack.c.l.b16 %v1579
  %v1708 = vunpack.c.l.b16 %v1580
  %v1709 = vunpack.c.l.b16 %v1581
  %v1710 = vunpack.c.l.b16 %v1582
  %v1711 = vunpack.c.l.b16 %v1583
  %v1712 = vunpack.c.l.b16 %v1584
  %v1713 = vunpack.c.l.b16 %v1585
  %v1714 = vunpack.c.l.b16 %v1586
  %v1715 = vunpack.c.l.b16 %v1587
  %v1716 = vunpack.c.l.b16 %v1588
  %v1717 = vunpack.c.l.b16 %v1589
  %v1718 = vunpack.c.l.b16 %v1590
  %v1719 = vunpack.c.l.b16 %v1591
  %v1720 = vunpack.c.l.b16 %v1592
  %v1721 = vunpack.c.l.b16 %v1593
  %v1722 = vunpack.c.l.b16 %v1594
  %v1723 = vunpack.c.l.b16 %v1595
  %v1724 = vunpack.c.l.b16 %v1596
  %v1725 = vunpack.c.l.b16 %v1597
  %v1726 = vunpack.c.l.b16 %v1598
  %v1727 = vunpack.c.l.b16 %v1599
  %v1728 = vunpack.c.l.b16 %v1600
  %v1729 = vunpack.c.l.b16 %v1601
  %v1730 = vunpack.c.l.b16 %v1602
  %v1731 = vunpack.c.l.b16 %v1603
  %v1732 = vunpack.c.l.b16 %v1604
  %v1733 = vunpack.c.l.b16 %v1605
  %v1734 = vunpack.c.l.b16 %v1606
  %v1735 = vunpack.c.l.b16 %v1607
  %v1736 = vunpack.c.l.b16 %v1608
  %v1737 = vunpack.c.l.b16 %v1609
  %v1738 = vpack.c.b16 %v1675, %v1674
  %v1739 = vpack.c.b16 %v1677, %v1676
  %v1740 = vpack.c.b16 %v1679, %v1678
  %v1741 = vpack.c.b16 %v1681, %v1680
  %v1742 = vpack.c.b16 %v1683, %v1682
  %v1743 = vpack.c.b16 %v1685, %v1684
  %v1744 = vpack.c.b16 %v1687, %v1686
  %v1745 = vpack.c.b16 %v1689, %v1688
  %v1746 = vpack.c.b16 %v1691, %v1690
  %v1747 = vpack.c.b16 %v1693, %v1692
  %v1748 = vpack.c.b16 %v1695, %v1694
  %v1749 = vpack.c.b16 %v1697, %v1696
  %v1750 = vpack.c.b16 %v1699, %v1698
  %v1751 = vpack.c.b16 %v1701, %v1700
  %v1752 = vpack.c.b16 %v1703, %v1702
  %v1753 = vpack.c.b16 %v1705, %v1704
  %v1754 = vpack.c.b16 %v1707, %v1706
  %v1755 = vpack.c.b16 %v1709, %v1708
  %v1756 = vpack.c.b16 %v1711, %v1710
  %v1757 = vpack.c.b16 %v1713, %v1712
  %v1758 = vpack.c.b16 %v1715, %v1714
  %v1759 = vpack.c.b16 %v1717, %v1716
  %v1760 = vpack.c.b16 %v1719, %v1718
  %v1761 = vpack.c.b16 %v1721, %v1720
  %v1762 = vpack.c.b16 %v1723, %v1722
  %v1763 = vpack.c.b16 %v1725, %v1724
  %v1764 = vpack.c.b16 %v1727, %v1726
  %v1765 = vpack.c.b16 %v1729, %v1728
  %v1766 = vpack.c.b16 %v1731, %v1730
  %v1767 = vpack.c.b16 %v1733, %v1732
  %v1768 = vpack.c.b16 %v1735, %v1734
  %v1769 = vpack.c.b16 %v1737, %v1736
  %1802 = vmatprep.subr.bf16.mxu0 0
  %1803 = vmatpush1.bf16.msra.mxu0 %v1745
  %1804 = vmatprep.subr.bf16.mxu0 0
  %1805 = vmatpush1.bf16.msra.mxu0 %v1744
  %1806 = vmatprep.subr.bf16.mxu0 0
  %1807 = vmatpush1.bf16.msra.mxu0 %v1743
  %1808 = vmatprep.subr.bf16.mxu0 0
  %1809 = vmatpush1.bf16.msra.mxu0 %v1742
  %1810 = vmatprep.subr.bf16.mxu0 0
  %1811 = vmatpush1.bf16.msra.mxu0 %v1741
  %1812 = vmatprep.subr.bf16.mxu0 0
  %1813 = vmatpush1.bf16.msra.mxu0 %v1740
  %1814 = vmatprep.subr.bf16.mxu0 0
  %1815 = vmatpush1.bf16.msra.mxu0 %v1739
  %1816 = vmatprep.subr.bf16.mxu0 0
  %1817 = vmatpush1.bf16.msra.mxu0 %v1738
  %1818 = vmatprep.subr.bf16.mxu0 0
  %1819 = vmatpush2.bf16.msra.mxu0 %v1753
  %1820 = vmatprep.subr.bf16.mxu0 0
  %1821 = vmatpush2.bf16.msra.mxu0 %v1752
  %1822 = vmatprep.subr.bf16.mxu0 0
  %1823 = vmatpush2.bf16.msra.mxu0 %v1751
  %1824 = vmatprep.subr.bf16.mxu0 0
  %1825 = vmatpush2.bf16.msra.mxu0 %v1750
  %1826 = vmatprep.subr.bf16.mxu0 0
  %1827 = vmatpush2.bf16.msra.mxu0 %v1749
  %1828 = vmatprep.subr.bf16.mxu0 0
  %1829 = vmatpush2.bf16.msra.mxu0 %v1748
  %1830 = vmatprep.subr.bf16.mxu0 0
  %1831 = vmatpush2.bf16.msra.mxu0 %v1747
  %1832 = vmatprep.subr.bf16.mxu0 0
  %1833 = vmatpush2.bf16.msra.mxu0 %v1746
  %1834 = vmatprep.mubr.bf16.mxu0 %v1543
  %1835 = vmatmul.mubr.bf16.gmra.mxu0 %v1542
  %v1836 = vpop.f32.mrf.mxu0
  %v1837 = vadd.f32 0.0, %v1836
  %v1838 = vpop.f32.mrf.mxu0
  %v1839 = vpop.f32.mrf.mxu0
  %v1840 = vpop.f32.mrf.mxu0
  %1841 = vdwg.mxu0
  %1842 = vmatprep.subr.bf16.mxu0 0
  %1843 = vmatpush1.bf16.msra.mxu0 %v1761
  %1844 = vmatprep.subr.bf16.mxu0 0
  %1845 = vmatpush1.bf16.msra.mxu0 %v1760
  %1846 = vmatprep.subr.bf16.mxu0 0
  %1847 = vmatpush1.bf16.msra.mxu0 %v1759
  %1848 = vmatprep.subr.bf16.mxu0 0
  %1849 = vmatpush1.bf16.msra.mxu0 %v1758
  %1850 = vmatprep.subr.bf16.mxu0 0
  %1851 = vmatpush1.bf16.msra.mxu0 %v1757
  %1852 = vmatprep.subr.bf16.mxu0 0
  %1853 = vmatpush1.bf16.msra.mxu0 %v1756
  %1854 = vmatprep.subr.bf16.mxu0 0
  %1855 = vmatpush1.bf16.msra.mxu0 %v1755
  %1856 = vmatprep.subr.bf16.mxu0 0
  %1857 = vmatpush1.bf16.msra.mxu0 %v1754
  %1858 = vmatprep.subr.bf16.mxu0 0
  %1859 = vmatpush2.bf16.msra.mxu0 %v1769
  %1860 = vmatprep.subr.bf16.mxu0 0
  %1861 = vmatpush2.bf16.msra.mxu0 %v1768
  %1862 = vmatprep.subr.bf16.mxu0 0
  %1863 = vmatpush2.bf16.msra.mxu0 %v1767
  %1864 = vmatprep.subr.bf16.mxu0 0
  %1865 = vmatpush2.bf16.msra.mxu0 %v1766
  %1866 = vmatprep.subr.bf16.mxu0 0
  %1867 = vmatpush2.bf16.msra.mxu0 %v1765
  %1868 = vmatprep.subr.bf16.mxu0 0
  %1869 = vmatpush2.bf16.msra.mxu0 %v1764
  %1870 = vmatprep.subr.bf16.mxu0 0
  %1871 = vmatpush2.bf16.msra.mxu0 %v1763
  %1872 = vmatprep.subr.bf16.mxu0 0
  %1873 = vmatpush2.bf16.msra.mxu0 %v1762
  %1874 = vmatprep.mubr.bf16.mxu0 %v1545
  %1875 = vmatmul.mubr.bf16.gmra.mxu0 %v1544
  %v1876 = vpop.f32.mrf.mxu0
  %v1877 = vadd.f32 %v1837, %v1876
  %v1878 = vpop.f32.mrf.mxu0
  %v1879 = vpop.f32.mrf.mxu0
  %v1880 = vpop.f32.mrf.mxu0
  %1881 = vdwg.mxu0
  %v1882 = vrot.slane %v1877, 4
  %v1883 = vadd.f32 %v1877, %v1882
  %v1884 = vrot.slane %v1883, 2
  %v1885 = vadd.f32 %v1883, %v1884
  %v1886 = vrot.slane %v1885, 1
  %v1887 = vadd.f32 %v1885, %v1886
  %v1888 = vmul.f32 %v1877, %v1877
  %v1889 = vrot.slane %v1888, 4
  %v1890 = vadd.f32 %v1888, %v1889
  %v1891 = vrot.slane %v1890, 2
  %v1892 = vadd.f32 %v1890, %v1891
  %v1893 = vrot.slane %v1892, 1
  %v1894 = vadd.f32 %v1892, %v1893
  %v1895 = vsel %vm93, %v1887, %v1894
  %v1896 = vld [vmem:[%s10] sm:$0xff]
  %v1897 = vld [vmem:[%s10 + $0x8] sm:$0xff]
  %v1898 = vld [vmem:[%s10 + $0x10] sm:$0xff]
  %v1899 = vld [vmem:[%s10 + $0x18] sm:$0xff]
  %v1900 = vld [vmem:[%s10 + $0x20] sm:$0xff]
  %v1901 = vld [vmem:[%s10 + $0x28] sm:$0xff]
  %v1902 = vld [vmem:[%s10 + $0x30] sm:$0xff]
  %v1903 = vld [vmem:[%s10 + $0x38] sm:$0xff]
  %v1904 = vld [vmem:[%s10 + $0x40] sm:$0xff]
  %v1905 = vld [vmem:[%s10 + $0x48] sm:$0xff]
  %v1906 = vld [vmem:[%s10 + $0x50] sm:$0xff]
  %v1907 = vld [vmem:[%s10 + $0x58] sm:$0xff]
  %v1908 = vld [vmem:[%s10 + $0x60] sm:$0xff]
  %v1909 = vld [vmem:[%s10 + $0x68] sm:$0xff]
  %v1910 = vld [vmem:[%s10 + $0x70] sm:$0xff]
  %v1911 = vld [vmem:[%s10 + $0x78] sm:$0xff]
  %1912 = vmatprep.subr.mxu0 0.0
  %1913 = vmatpush1.msra.mxu0 %v1911
  %1914 = vmatprep.subr.mxu0 0.0
  %1915 = vmatpush1.msra.mxu0 %v1910
  %1916 = vmatprep.subr.mxu0 0.0
  %1917 = vmatpush1.msra.mxu0 %v1909
  %1918 = vmatprep.subr.mxu0 0.0
  %1919 = vmatpush1.msra.mxu0 %v1908
  %1920 = vmatprep.subr.mxu0 0.0
  %1921 = vmatpush1.msra.mxu0 %v1907
  %1922 = vmatprep.subr.mxu0 0.0
  %1923 = vmatpush1.msra.mxu0 %v1906
  %1924 = vmatprep.subr.mxu0 0.0
  %1925 = vmatpush1.msra.mxu0 %v1905
  %1926 = vmatprep.subr.mxu0 0.0
  %1927 = vmatpush1.msra.mxu0 %v1904
  %1928 = vmatprep.subr.mxu0 0.0
  %1929 = vmatpush1.msra.mxu0 %v1903
  %1930 = vmatprep.subr.mxu0 0.0
  %1931 = vmatpush1.msra.mxu0 %v1902
  %1932 = vmatprep.subr.mxu0 0.0
  %1933 = vmatpush1.msra.mxu0 %v1901
  %1934 = vmatprep.subr.mxu0 0.0
  %1935 = vmatpush1.msra.mxu0 %v1900
  %1936 = vmatprep.subr.mxu0 0.0
  %1937 = vmatpush1.msra.mxu0 %v1899
  %1938 = vmatprep.subr.mxu0 0.0
  %1939 = vmatpush1.msra.mxu0 %v1898
  %1940 = vmatprep.subr.mxu0 0.0
  %1941 = vmatpush1.msra.mxu0 %v1897
  %1942 = vmatprep.subr.mxu0 0.0
  %1943 = vmatpush1.msra.mxu0 %v1896
  %1944 = vmatprep.subr.mxu0 0.0
  %1945 = vmatpush2.msra.mxu0 0.0
  %1946 = vmatprep.subr.mxu0 0.0
  %1947 = vmatpush2.msra.mxu0 0.0
  %1948 = vmatprep.subr.mxu0 0.0
  %1949 = vmatpush2.msra.mxu0 0.0
  %1950 = vmatprep.subr.mxu0 0.0
  %1951 = vmatpush2.msra.mxu0 0.0
  %1952 = vmatprep.subr.mxu0 0.0
  %1953 = vmatpush2.msra.mxu0 0.0
  %1954 = vmatprep.subr.mxu0 0.0
  %1955 = vmatpush2.msra.mxu0 0.0
  %1956 = vmatprep.subr.mxu0 0.0
  %1957 = vmatpush2.msra.mxu0 0.0
  %1958 = vmatprep.subr.mxu0 0.0
  %1959 = vmatpush2.msra.mxu0 0.0
  %1960 = vmatprep.subr.mxu0 0.0
  %1961 = vmatpush2.msra.mxu0 0.0
  %1962 = vmatprep.subr.mxu0 0.0
  %1963 = vmatpush2.msra.mxu0 0.0
  %1964 = vmatprep.subr.mxu0 0.0
  %1965 = vmatpush2.msra.mxu0 0.0
  %1966 = vmatprep.subr.mxu0 0.0
  %1967 = vmatpush2.msra.mxu0 0.0
  %1968 = vmatprep.subr.mxu0 0.0
  %1969 = vmatpush2.msra.mxu0 0.0
  %1970 = vmatprep.subr.mxu0 0.0
  %1971 = vmatpush2.msra.mxu0 0.0
  %1972 = vmatprep.subr.mxu0 0.0
  %1973 = vmatpush2.msra.mxu0 0.0
  %1974 = vmatprep.subr.mxu0 0.0
  %1975 = vmatpush2.msra.mxu0 0.0
  %1976 = vmatprep.mubr.f32.mxu0 0.0
  %1977 = vmatmul.mubr.f32.gmra.mxu0 %v1895
  %v1978 = vpop.f32.mrf.mxu0
  %v1979 = vadd.f32 0.0, %v1978
  %v1980 = vpop.f32.mrf.mxu0
  %1981 = vdwg.mxu0
  %v1982 = vmul.f32 %v1979, 0.03125
  %v1983 = vmul.f32 %v1982, %v1982
  %v1985 = vrot.slane %v1983, 7
  %v1987 = vsub.f32 %v1982, %v1985
  %v1988 = vmax.f32 %v1987, 0.0
  %v1989 = vld [vmem:[%s11] sm:$0x1]
  %v1990 = vadd.f32 %v1988, 1e-05
  %v1991 = vrsqrt.pop %v1990
  %v1994 = vunpack.c.l.s4 1966171168
  %v1995 = vunpack.c.0.s8 %v1994
  %v1996 = vlaneseq
  %v1997 = vshrl.u32 %v1996, 7
  %v1998 = vsub.s32 %v1995, %v1997
  %v1999 = vrot.slane %v1991, %v1998
  %v2000 = vcombine.high %v1999, %v1999
  %v2002 = vunpack.c.l.s4 1966171168
  %v2003 = vunpack.c.0.s8 %v2002
  %v2004 = vlaneseq
  %v2005 = vshrl.u32 %v2004, 7
  %v2006 = vsub.s32 %v2003, %v2005
  %v2007 = vrot.slane %v2000, %v2006
  %v2009 = vmul.f32 %v1989, %v2007
  %v2010 = vld [vmem:[%s12] sm:$0x1]
  %v2011 = vmul.f32 %v1982, %v2009
  %v2012 = vsub.f32 %v2010, %v2011
  %v2014 = vlaneseq
  %v2015 = vshrl.u32 %v2014, 7
  %v2016 = vsub.s32 0, %v2015
  %v2017 = vrot.slane %v2009, %v2016
  %2018 = vrot.lane.b32.xlu0 %v2017, 32
  %v2019 = vpop.permute.xlu0 %2018
  %2021 = vrot.lane.b32.xlu0 %v2017, 64
  %v2022 = vpop.permute.xlu0 %2021
  %2024 = vrot.lane.b32.xlu0 %v2017, 96
  %v2025 = vpop.permute.xlu0 %2024
  %v2027 = vsel %vm766, %v2009, %v2019
  %v2028 = vsel %vm774, %v2027, %v2022
  %v2029 = vsel %vm782, %v2028, %v2025
  %v2031 = vlaneseq
  %v2032 = vshrl.u32 %v2031, 7
  %v2033 = vsub.s32 0, %v2032
  %v2034 = vrot.slane %v2012, %v2033
  %2035 = vrot.lane.b32.xlu0 %v2034, 32
  %v2036 = vpop.permute.xlu0 %2035
  %2038 = vrot.lane.b32.xlu0 %v2034, 64
  %v2039 = vpop.permute.xlu0 %2038
  %2041 = vrot.lane.b32.xlu0 %v2034, 96
  %v2042 = vpop.permute.xlu0 %2041
  %v2044 = vsel %vm766, %v2012, %v2036
  %v2045 = vsel %vm774, %v2044, %v2039
  %v2046 = vsel %vm782, %v2045, %v2042
  %v2047 = vlaneseq
  %v2048 = vshrl.u32 %v2047, 7
  %v2049 = vsub.s32 0, %v2048
  %v2050 = vrot.slane %v2029, %v2049
  %v2051 = vmul.f32 %v1877, %v2050
  %v2052 = vlaneseq
  %v2053 = vshrl.u32 %v2052, 7
  %v2054 = vsub.s32 0, %v2053
  %v2055 = vrot.slane %v2046, %v2054
  %v2056 = vadd.f32 %v2051, %v2055
  %vm2057 = vcmp.ge.f32.partialorder %v2056, 0.0
  %v2058 = vmul.f32 %v2056, 0.2
  %v2059 = vsel %vm2057, %v2056, %v2058
  %2060 = vst [vmem:[#allocation2] sm:$0xff] %v2059
  %v2061 = vld [vmem:[#allocation2] ss:$2 sm:$0xf]
  %v2062 = vld [vmem:[%s890] ss:$2 sm:$0xf]
  %v2064 = vrot.slane %v2062, 7
  %v2066 = vsel %vm93, 0.0, %v2064
  %v2068 = vrot.slane %v2061, 1
  %vm2070 = vcmask 1042432
  %v2071 = vsel %vm2070, %v2068, 0.0
  %vm2072 = vcmp.lt.s32.totalorder %v124, 0
  %v2073 = vsub.s32 0, %v124
  %v2074 = vsel %vm2072, %v2073, %v124
  %v2075 = vshrl.u32 %v2074, 1
  %v2076 = vand.u32 %v2074, 1
  %v2077 = vsub.s32 0, %v2076
  %v2078 = vsel %vm2072, %v2077, %v2076
  %vm2079 = vcmp.ne.s32.totalorder %v2078, 0
  %vm2080 = vcmp.lt.s32.totalorder %v2078, 0
  %vm2081 = vmand %vm2080, %vm2079
  %v2082 = vadd.s32 %v2078, 2
  %v2083 = vsel %vm2081, %v2082, %v2078
  %vm2084 = vcmp.eq.s32.totalorder %v2083, 0
  %v2085 = vsel %vm2084, 1, 0
  %vm2086 = vcmp.eq.s32.totalorder %v2085, 1
  %v2087 = vsel %vm2086, 0.0, %v2066
  %vm2088 = vcmp.eq.s32.totalorder %v2083, 1
  %v2089 = vsel %vm2088, 1, 0
  %vm2090 = vcmp.eq.s32.totalorder %v2089, 1
  %v2091 = vsel %vm2090, 0.0, %v2071
  %v2092 = vpack.c.bf16 %v2087, %v2087
  %v2093 = vpack.c.bf16 %v2061, %v2061
  %v2094 = vpack.c.bf16 %v2062, %v2062
  %v2095 = vpack.c.bf16 %v2091, %v2091
  %v2096 = vld [vmem:[%s13] sm:$0xf]
  %v2097 = vld [vmem:[%s13 + $0x4] sm:$0xf]
  %v2098 = vld [vmem:[%s13 + $0x8] sm:$0xf]
  %v2099 = vld [vmem:[%s13 + $0xc] sm:$0xf]
  %v2100 = vld [vmem:[%s13 + $0x10] sm:$0xf]
  %v2101 = vld [vmem:[%s13 + $0x14] sm:$0xf]
  %v2102 = vld [vmem:[%s13 + $0x18] sm:$0xf]
  %v2103 = vld [vmem:[%s13 + $0x1c] sm:$0xf]
  %v2104 = vld [vmem:[%s13 + $0x20] sm:$0xf]
  %v2105 = vld [vmem:[%s13 + $0x24] sm:$0xf]
  %v2106 = vld [vmem:[%s13 + $0x28] sm:$0xf]
  %v2107 = vld [vmem:[%s13 + $0x2c] sm:$0xf]
  %v2108 = vld [vmem:[%s13 + $0x30] sm:$0xf]
  %v2109 = vld [vmem:[%s13 + $0x34] sm:$0xf]
  %v2110 = vld [vmem:[%s13 + $0x38] sm:$0xf]
  %v2111 = vld [vmem:[%s13 + $0x3c] sm:$0xf]
  %v2112 = vld [vmem:[%s13 + $0x40] sm:$0xf]
  %v2113 = vld [vmem:[%s13 + $0x44] sm:$0xf]
  %v2114 = vld [vmem:[%s13 + $0x48] sm:$0xf]
  %v2115 = vld [vmem:[%s13 + $0x4c] sm:$0xf]
  %v2116 = vld [vmem:[%s13 + $0x50] sm:$0xf]
  %v2117 = vld [vmem:[%s13 + $0x54] sm:$0xf]
  %v2118 = vld [vmem:[%s13 + $0x58] sm:$0xf]
  %v2119 = vld [vmem:[%s13 + $0x5c] sm:$0xf]
  %v2120 = vld [vmem:[%s13 + $0x60] sm:$0xf]
  %v2121 = vld [vmem:[%s13 + $0x64] sm:$0xf]
  %v2122 = vld [vmem:[%s13 + $0x68] sm:$0xf]
  %v2123 = vld [vmem:[%s13 + $0x6c] sm:$0xf]
  %v2124 = vld [vmem:[%s13 + $0x70] sm:$0xf]
  %v2125 = vld [vmem:[%s13 + $0x74] sm:$0xf]
  %v2126 = vld [vmem:[%s13 + $0x78] sm:$0xf]
  %v2127 = vld [vmem:[%s13 + $0x7c] sm:$0xf]
  %v2128 = vld [vmem:[%s13 + $0x80] sm:$0xf]
  %v2129 = vld [vmem:[%s13 + $0x84] sm:$0xf]
  %v2130 = vld [vmem:[%s13 + $0x88] sm:$0xf]
  %v2131 = vld [vmem:[%s13 + $0x8c] sm:$0xf]
  %v2132 = vld [vmem:[%s13 + $0x90] sm:$0xf]
  %v2133 = vld [vmem:[%s13 + $0x94] sm:$0xf]
  %v2134 = vld [vmem:[%s13 + $0x98] sm:$0xf]
  %v2135 = vld [vmem:[%s13 + $0x9c] sm:$0xf]
  %v2136 = vld [vmem:[%s13 + $0xa0] sm:$0xf]
  %v2137 = vld [vmem:[%s13 + $0xa4] sm:$0xf]
  %v2138 = vld [vmem:[%s13 + $0xa8] sm:$0xf]
  %v2139 = vld [vmem:[%s13 + $0xac] sm:$0xf]
  %v2140 = vld [vmem:[%s13 + $0xb0] sm:$0xf]
  %v2141 = vld [vmem:[%s13 + $0xb4] sm:$0xf]
  %v2142 = vld [vmem:[%s13 + $0xb8] sm:$0xf]
  %v2143 = vld [vmem:[%s13 + $0xbc] sm:$0xf]
  %v2144 = vld [vmem:[%s13 + $0xc0] sm:$0xf]
  %v2145 = vld [vmem:[%s13 + $0xc4] sm:$0xf]
  %v2146 = vld [vmem:[%s13 + $0xc8] sm:$0xf]
  %v2147 = vld [vmem:[%s13 + $0xcc] sm:$0xf]
  %v2148 = vld [vmem:[%s13 + $0xd0] sm:$0xf]
  %v2149 = vld [vmem:[%s13 + $0xd4] sm:$0xf]
  %v2150 = vld [vmem:[%s13 + $0xd8] sm:$0xf]
  %v2151 = vld [vmem:[%s13 + $0xdc] sm:$0xf]
  %v2152 = vld [vmem:[%s13 + $0xe0] sm:$0xf]
  %v2153 = vld [vmem:[%s13 + $0xe4] sm:$0xf]
  %v2154 = vld [vmem:[%s13 + $0xe8] sm:$0xf]
  %v2155 = vld [vmem:[%s13 + $0xec] sm:$0xf]
  %v2156 = vld [vmem:[%s13 + $0xf0] sm:$0xf]
  %v2157 = vld [vmem:[%s13 + $0xf4] sm:$0xf]
  %v2158 = vld [vmem:[%s13 + $0xf8] sm:$0xf]
  %v2159 = vld [vmem:[%s13 + $0xfc] sm:$0xf]
  %v2224 = vunpack.c.l.b16 %v2096
  %v2225 = vunpack.c.l.b16 %v2097
  %v2226 = vunpack.c.l.b16 %v2098
  %v2227 = vunpack.c.l.b16 %v2099
  %v2228 = vunpack.c.l.b16 %v2100
  %v2229 = vunpack.c.l.b16 %v2101
  %v2230 = vunpack.c.l.b16 %v2102
  %v2231 = vunpack.c.l.b16 %v2103
  %v2232 = vunpack.c.l.b16 %v2104
  %v2233 = vunpack.c.l.b16 %v2105
  %v2234 = vunpack.c.l.b16 %v2106
  %v2235 = vunpack.c.l.b16 %v2107
  %v2236 = vunpack.c.l.b16 %v2108
  %v2237 = vunpack.c.l.b16 %v2109
  %v2238 = vunpack.c.l.b16 %v2110
  %v2239 = vunpack.c.l.b16 %v2111
  %v2240 = vunpack.c.l.b16 %v2112
  %v2241 = vunpack.c.l.b16 %v2113
  %v2242 = vunpack.c.l.b16 %v2114
  %v2243 = vunpack.c.l.b16 %v2115
  %v2244 = vunpack.c.l.b16 %v2116
  %v2245 = vunpack.c.l.b16 %v2117
  %v2246 = vunpack.c.l.b16 %v2118
  %v2247 = vunpack.c.l.b16 %v2119
  %v2248 = vunpack.c.l.b16 %v2120
  %v2249 = vunpack.c.l.b16 %v2121
  %v2250 = vunpack.c.l.b16 %v2122
  %v2251 = vunpack.c.l.b16 %v2123
  %v2252 = vunpack.c.l.b16 %v2124
  %v2253 = vunpack.c.l.b16 %v2125
  %v2254 = vunpack.c.l.b16 %v2126
  %v2255 = vunpack.c.l.b16 %v2127
  %v2256 = vunpack.c.l.b16 %v2128
  %v2257 = vunpack.c.l.b16 %v2129
  %v2258 = vunpack.c.l.b16 %v2130
  %v2259 = vunpack.c.l.b16 %v2131
  %v2260 = vunpack.c.l.b16 %v2132
  %v2261 = vunpack.c.l.b16 %v2133
  %v2262 = vunpack.c.l.b16 %v2134
  %v2263 = vunpack.c.l.b16 %v2135
  %v2264 = vunpack.c.l.b16 %v2136
  %v2265 = vunpack.c.l.b16 %v2137
  %v2266 = vunpack.c.l.b16 %v2138
  %v2267 = vunpack.c.l.b16 %v2139
  %v2268 = vunpack.c.l.b16 %v2140
  %v2269 = vunpack.c.l.b16 %v2141
  %v2270 = vunpack.c.l.b16 %v2142
  %v2271 = vunpack.c.l.b16 %v2143
  %v2272 = vunpack.c.l.b16 %v2144
  %v2273 = vunpack.c.l.b16 %v2145
  %v2274 = vunpack.c.l.b16 %v2146
  %v2275 = vunpack.c.l.b16 %v2147
  %v2276 = vunpack.c.l.b16 %v2148
  %v2277 = vunpack.c.l.b16 %v2149
  %v2278 = vunpack.c.l.b16 %v2150
  %v2279 = vunpack.c.l.b16 %v2151
  %v2280 = vunpack.c.l.b16 %v2152
  %v2281 = vunpack.c.l.b16 %v2153
  %v2282 = vunpack.c.l.b16 %v2154
  %v2283 = vunpack.c.l.b16 %v2155
  %v2284 = vunpack.c.l.b16 %v2156
  %v2285 = vunpack.c.l.b16 %v2157
  %v2286 = vunpack.c.l.b16 %v2158
  %v2287 = vunpack.c.l.b16 %v2159
  %v2288 = vpack.c.b16 %v2225, %v2224
  %v2289 = vpack.c.b16 %v2227, %v2226
  %v2290 = vpack.c.b16 %v2229, %v2228
  %v2291 = vpack.c.b16 %v2231, %v2230
  %v2292 = vpack.c.b16 %v2233, %v2232
  %v2293 = vpack.c.b16 %v2235, %v2234
  %v2294 = vpack.c.b16 %v2237, %v2236
  %v2295 = vpack.c.b16 %v2239, %v2238
  %v2296 = vpack.c.b16 %v2241, %v2240
  %v2297 = vpack.c.b16 %v2243, %v2242
  %v2298 = vpack.c.b16 %v2245, %v2244
  %v2299 = vpack.c.b16 %v2247, %v2246
  %v2300 = vpack.c.b16 %v2249, %v2248
  %v2301 = vpack.c.b16 %v2251, %v2250
  %v2302 = vpack.c.b16 %v2253, %v2252
  %v2303 = vpack.c.b16 %v2255, %v2254
  %v2304 = vpack.c.b16 %v2257, %v2256
  %v2305 = vpack.c.b16 %v2259, %v2258
  %v2306 = vpack.c.b16 %v2261, %v2260
  %v2307 = vpack.c.b16 %v2263, %v2262
  %v2308 = vpack.c.b16 %v2265, %v2264
  %v2309 = vpack.c.b16 %v2267, %v2266
  %v2310 = vpack.c.b16 %v2269, %v2268
  %v2311 = vpack.c.b16 %v2271, %v2270
  %v2312 = vpack.c.b16 %v2273, %v2272
  %v2313 = vpack.c.b16 %v2275, %v2274
  %v2314 = vpack.c.b16 %v2277, %v2276
  %v2315 = vpack.c.b16 %v2279, %v2278
  %v2316 = vpack.c.b16 %v2281, %v2280
  %v2317 = vpack.c.b16 %v2283, %v2282
  %v2318 = vpack.c.b16 %v2285, %v2284
  %v2319 = vpack.c.b16 %v2287, %v2286
  %2352 = vmatprep.subr.bf16.mxu0 0
  %2353 = vmatpush1.bf16.msra.mxu0 %v2295
  %2354 = vmatprep.subr.bf16.mxu0 0
  %2355 = vmatpush1.bf16.msra.mxu0 %v2294
  %2356 = vmatprep.subr.bf16.mxu0 0
  %2357 = vmatpush1.bf16.msra.mxu0 %v2293
  %2358 = vmatprep.subr.bf16.mxu0 0
  %2359 = vmatpush1.bf16.msra.mxu0 %v2292
  %2360 = vmatprep.subr.bf16.mxu0 0
  %2361 = vmatpush1.bf16.msra.mxu0 %v2291
  %2362 = vmatprep.subr.bf16.mxu0 0
  %2363 = vmatpush1.bf16.msra.mxu0 %v2290
  %2364 = vmatprep.subr.bf16.mxu0 0
  %2365 = vmatpush1.bf16.msra.mxu0 %v2289
  %2366 = vmatprep.subr.bf16.mxu0 0
  %2367 = vmatpush1.bf16.msra.mxu0 %v2288
  %2368 = vmatprep.subr.bf16.mxu0 0
  %2369 = vmatpush2.bf16.msra.mxu0 %v2303
  %2370 = vmatprep.subr.bf16.mxu0 0
  %2371 = vmatpush2.bf16.msra.mxu0 %v2302
  %2372 = vmatprep.subr.bf16.mxu0 0
  %2373 = vmatpush2.bf16.msra.mxu0 %v2301
  %2374 = vmatprep.subr.bf16.mxu0 0
  %2375 = vmatpush2.bf16.msra.mxu0 %v2300
  %2376 = vmatprep.subr.bf16.mxu0 0
  %2377 = vmatpush2.bf16.msra.mxu0 %v2299
  %2378 = vmatprep.subr.bf16.mxu0 0
  %2379 = vmatpush2.bf16.msra.mxu0 %v2298
  %2380 = vmatprep.subr.bf16.mxu0 0
  %2381 = vmatpush2.bf16.msra.mxu0 %v2297
  %2382 = vmatprep.subr.bf16.mxu0 0
  %2383 = vmatpush2.bf16.msra.mxu0 %v2296
  %2384 = vmatprep.mubr.bf16.mxu0 %v2093
  %2385 = vmatmul.mubr.bf16.gmra.mxu0 %v2092
  %v2386 = vpop.f32.mrf.mxu0
  %v2387 = vadd.f32 0.0, %v2386
  %v2388 = vpop.f32.mrf.mxu0
  %v2389 = vpop.f32.mrf.mxu0
  %v2390 = vpop.f32.mrf.mxu0
  %2391 = vdwg.mxu0
  %2392 = vmatprep.subr.bf16.mxu0 0
  %2393 = vmatpush1.bf16.msra.mxu0 %v2311
  %2394 = vmatprep.subr.bf16.mxu0 0
  %2395 = vmatpush1.bf16.msra.mxu0 %v2310
  %2396 = vmatprep.subr.bf16.mxu0 0
  %2397 = vmatpush1.bf16.msra.mxu0 %v2309
  %2398 = vmatprep.subr.bf16.mxu0 0
  %2399 = vmatpush1.bf16.msra.mxu0 %v2308
  %2400 = vmatprep.subr.bf16.mxu0 0
  %2401 = vmatpush1.bf16.msra.mxu0 %v2307
  %2402 = vmatprep.subr.bf16.mxu0 0
  %2403 = vmatpush1.bf16.msra.mxu0 %v2306
  %2404 = vmatprep.subr.bf16.mxu0 0
  %2405 = vmatpush1.bf16.msra.mxu0 %v2305
  %2406 = vmatprep.subr.bf16.mxu0 0
  %2407 = vmatpush1.bf16.msra.mxu0 %v2304
  %2408 = vmatprep.subr.bf16.mxu0 0
  %2409 = vmatpush2.bf16.msra.mxu0 %v2319
  %2410 = vmatprep.subr.bf16.mxu0 0
  %2411 = vmatpush2.bf16.msra.mxu0 %v2318
  %2412 = vmatprep.subr.bf16.mxu0 0
  %2413 = vmatpush2.bf16.msra.mxu0 %v2317
  %2414 = vmatprep.subr.bf16.mxu0 0
  %2415 = vmatpush2.bf16.msra.mxu0 %v2316
  %2416 = vmatprep.subr.bf16.mxu0 0
  %2417 = vmatpush2.bf16.msra.mxu0 %v2315
  %2418 = vmatprep.subr.bf16.mxu0 0
  %2419 = vmatpush2.bf16.msra.mxu0 %v2314
  %2420 = vmatprep.subr.bf16.mxu0 0
  %2421 = vmatpush2.bf16.msra.mxu0 %v2313
  %2422 = vmatprep.subr.bf16.mxu0 0
  %2423 = vmatpush2.bf16.msra.mxu0 %v2312
  %2424 = vmatprep.mubr.bf16.mxu0 %v2095
  %2425 = vmatmul.mubr.bf16.gmra.mxu0 %v2094
  %v2426 = vpop.f32.mrf.mxu0
  %v2427 = vadd.f32 %v2387, %v2426
  %v2428 = vpop.f32.mrf.mxu0
  %v2429 = vpop.f32.mrf.mxu0
  %v2430 = vpop.f32.mrf.mxu0
  %2431 = vdwg.mxu0
  %vm2432 = vcmask 1043456
  %v2433 = vsel %vm2432, %v2427, 0.0
  %v2434 = vrot.slane %v2433, 4
  %v2435 = vadd.f32 %v2433, %v2434
  %v2436 = vrot.slane %v2435, 2
  %v2437 = vadd.f32 %v2435, %v2436
  %v2438 = vrot.slane %v2437, 1
  %v2439 = vadd.f32 %v2437, %v2438
  %v2440 = vmul.f32 %v2427, %v2427
  %v2441 = vsel %vm2432, %v2440, 0.0
  %v2442 = vrot.slane %v2441, 4
  %v2443 = vadd.f32 %v2441, %v2442
  %v2444 = vrot.slane %v2443, 2
  %v2445 = vadd.f32 %v2443, %v2444
  %v2446 = vrot.slane %v2445, 1
  %v2447 = vadd.f32 %v2445, %v2446
  %v2448 = vsel %vm93, %v2439, %v2447
  %v2449 = vld [vmem:[%s14] sm:$0xff]
  %v2450 = vld [vmem:[%s14 + $0x8] sm:$0xff]
  %v2451 = vld [vmem:[%s14 + $0x10] sm:$0xff]
  %v2452 = vld [vmem:[%s14 + $0x18] sm:$0xff]
  %v2453 = vld [vmem:[%s14 + $0x20] sm:$0xff]
  %v2454 = vld [vmem:[%s14 + $0x28] sm:$0xff]
  %v2455 = vld [vmem:[%s14 + $0x30] sm:$0xff]
  %v2456 = vld [vmem:[%s14 + $0x38] sm:$0xff]
  %v2457 = vld [vmem:[%s14 + $0x40] sm:$0xff]
  %v2458 = vld [vmem:[%s14 + $0x48] sm:$0xff]
  %v2459 = vld [vmem:[%s14 + $0x50] sm:$0xff]
  %v2460 = vld [vmem:[%s14 + $0x58] sm:$0xff]
  %v2461 = vld [vmem:[%s14 + $0x60] sm:$0xff]
  %v2462 = vld [vmem:[%s14 + $0x68] sm:$0xff]
  %v2463 = vld [vmem:[%s14 + $0x70] sm:$0xff]
  %v2464 = vld [vmem:[%s14 + $0x78] sm:$0xff]
  %2465 = vmatprep.subr.mxu0 0.0
  %2466 = vmatpush1.msra.mxu0 %v2464
  %2467 = vmatprep.subr.mxu0 0.0
  %2468 = vmatpush1.msra.mxu0 %v2463
  %2469 = vmatprep.subr.mxu0 0.0
  %2470 = vmatpush1.msra.mxu0 %v2462
  %2471 = vmatprep.subr.mxu0 0.0
  %2472 = vmatpush1.msra.mxu0 %v2461
  %2473 = vmatprep.subr.mxu0 0.0
  %2474 = vmatpush1.msra.mxu0 %v2460
  %2475 = vmatprep.subr.mxu0 0.0
  %2476 = vmatpush1.msra.mxu0 %v2459
  %2477 = vmatprep.subr.mxu0 0.0
  %2478 = vmatpush1.msra.mxu0 %v2458
  %2479 = vmatprep.subr.mxu0 0.0
  %2480 = vmatpush1.msra.mxu0 %v2457
  %2481 = vmatprep.subr.mxu0 0.0
  %2482 = vmatpush1.msra.mxu0 %v2456
  %2483 = vmatprep.subr.mxu0 0.0
  %2484 = vmatpush1.msra.mxu0 %v2455
  %2485 = vmatprep.subr.mxu0 0.0
  %2486 = vmatpush1.msra.mxu0 %v2454
  %2487 = vmatprep.subr.mxu0 0.0
  %2488 = vmatpush1.msra.mxu0 %v2453
  %2489 = vmatprep.subr.mxu0 0.0
  %2490 = vmatpush1.msra.mxu0 %v2452
  %2491 = vmatprep.subr.mxu0 0.0
  %2492 = vmatpush1.msra.mxu0 %v2451
  %2493 = vmatprep.subr.mxu0 0.0
  %2494 = vmatpush1.msra.mxu0 %v2450
  %2495 = vmatprep.subr.mxu0 0.0
  %2496 = vmatpush1.msra.mxu0 %v2449
  %2497 = vmatprep.subr.mxu0 0.0
  %2498 = vmatpush2.msra.mxu0 0.0
  %2499 = vmatprep.subr.mxu0 0.0
  %2500 = vmatpush2.msra.mxu0 0.0
  %2501 = vmatprep.subr.mxu0 0.0
  %2502 = vmatpush2.msra.mxu0 0.0
  %2503 = vmatprep.subr.mxu0 0.0
  %2504 = vmatpush2.msra.mxu0 0.0
  %2505 = vmatprep.subr.mxu0 0.0
  %2506 = vmatpush2.msra.mxu0 0.0
  %2507 = vmatprep.subr.mxu0 0.0
  %2508 = vmatpush2.msra.mxu0 0.0
  %2509 = vmatprep.subr.mxu0 0.0
  %2510 = vmatpush2.msra.mxu0 0.0
  %2511 = vmatprep.subr.mxu0 0.0
  %2512 = vmatpush2.msra.mxu0 0.0
  %2513 = vmatprep.subr.mxu0 0.0
  %2514 = vmatpush2.msra.mxu0 0.0
  %2515 = vmatprep.subr.mxu0 0.0
  %2516 = vmatpush2.msra.mxu0 0.0
  %2517 = vmatprep.subr.mxu0 0.0
  %2518 = vmatpush2.msra.mxu0 0.0
  %2519 = vmatprep.subr.mxu0 0.0
  %2520 = vmatpush2.msra.mxu0 0.0
  %2521 = vmatprep.subr.mxu0 0.0
  %2522 = vmatpush2.msra.mxu0 0.0
  %2523 = vmatprep.subr.mxu0 0.0
  %2524 = vmatpush2.msra.mxu0 0.0
  %2525 = vmatprep.subr.mxu0 0.0
  %2526 = vmatpush2.msra.mxu0 0.0
  %2527 = vmatprep.subr.mxu0 0.0
  %2528 = vmatpush2.msra.mxu0 0.0
  %2529 = vmatprep.mubr.f32.mxu0 0.0
  %2530 = vmatmul.mubr.f32.gmra.mxu0 %v2448
  %v2531 = vpop.f32.mrf.mxu0
  %v2532 = vadd.f32 0.0, %v2531
  %v2533 = vpop.f32.mrf.mxu0
  %2534 = vdwg.mxu0
  %v2535 = vmul.f32 %v2532, 0.125
  %v2536 = vmul.f32 %v2535, %v2535
  %v2538 = vrot.slane %v2536, 7
  %v2540 = vsub.f32 %v2535, %v2538
  %v2541 = vmax.f32 %v2540, 0.0
  %v2542 = vld [vmem:[%s15] sm:$0x1]
  %v2543 = vadd.f32 %v2541, 1e-05
  %v2544 = vrsqrt.pop %v2543
  %v2547 = vunpack.c.l.s4 1966171168
  %v2548 = vunpack.c.0.s8 %v2547
  %v2549 = vlaneseq
  %v2550 = vshrl.u32 %v2549, 7
  %v2551 = vsub.s32 %v2548, %v2550
  %v2552 = vrot.slane %v2544, %v2551
  %v2553 = vcombine.high %v2552, %v2552
  %v2555 = vunpack.c.l.s4 1966171168
  %v2556 = vunpack.c.0.s8 %v2555
  %v2557 = vlaneseq
  %v2558 = vshrl.u32 %v2557, 7
  %v2559 = vsub.s32 %v2556, %v2558
  %v2560 = vrot.slane %v2553, %v2559
  %v2562 = vmul.f32 %v2542, %v2560
  %v2563 = vld [vmem:[%s16] sm:$0x1]
  %v2564 = vmul.f32 %v2535, %v2562
  %v2565 = vsub.f32 %v2563, %v2564
  %v2567 = vlaneseq
  %v2568 = vshrl.u32 %v2567, 7
  %v2569 = vsub.s32 0, %v2568
  %v2570 = vrot.slane %v2562, %v2569
  %2571 = vrot.lane.b32.xlu0 %v2570, 64
  %v2572 = vpop.permute.xlu0 %2571
  %v2574 = vsel %vm774, %v2562, %v2572
  %v2576 = vlaneseq
  %v2577 = vshrl.u32 %v2576, 7
  %v2578 = vsub.s32 0, %v2577
  %v2579 = vrot.slane %v2565, %v2578
  %2580 = vrot.lane.b32.xlu0 %v2579, 64
  %v2581 = vpop.permute.xlu0 %2580
  %v2583 = vsel %vm774, %v2565, %v2581
  %v2584 = vlaneseq
  %v2585 = vshrl.u32 %v2584, 7
  %v2586 = vsub.s32 0, %v2585
  %v2587 = vrot.slane %v2574, %v2586
  %v2588 = vmul.f32 %v2427, %v2587
  %v2589 = vlaneseq
  %v2590 = vshrl.u32 %v2589, 7
  %v2591 = vsub.s32 0, %v2590
  %v2592 = vrot.slane %v2583, %v2591
  %v2593 = vadd.f32 %v2588, %v2592
  %vm2594 = vcmp.ge.f32.partialorder %v2593, 0.0
  %v2595 = vmul.f32 %v2593, 0.2
  %v2596 = vsel %vm2594, %v2593, %v2595
  %v2597 = vld [vmem:[%s17] sm:$0x3]
  %vm2598 = vcmask 31744
  %v2600 = vsel %vm2598, %v2597, 0
  %v2603 = vsel %vm2432, %v2596, 0
  %2605 = vmatprep.subr.mxu0 0.0
  %2606 = vmatpush1.msra.mxu0 0.0
  %2607 = vmatprep.subr.mxu0 0.0
  %2608 = vmatpush1.msra.mxu0 0.0
  %2609 = vmatprep.subr.mxu0 0.0
  %2610 = vmatpush1.msra.mxu0 0.0
  %2611 = vmatprep.subr.mxu0 0.0
  %2612 = vmatpush1.msra.mxu0 0.0
  %2613 = vmatprep.subr.mxu0 0.0
  %2614 = vmatpush1.msra.mxu0 0.0
  %2615 = vmatprep.subr.mxu0 0.0
  %2616 = vmatpush1.msra.mxu0 0.0
  %2617 = vmatprep.subr.mxu0 0.0
  %2618 = vmatpush1.msra.mxu0 0.0
  %2619 = vmatprep.subr.mxu0 0.0
  %2620 = vmatpush1.msra.mxu0 0.0
  %2621 = vmatprep.subr.mxu0 0.0
  %2622 = vmatpush1.msra.mxu0 0.0
  %2623 = vmatprep.subr.mxu0 0.0
  %2624 = vmatpush1.msra.mxu0 0.0
  %2625 = vmatprep.subr.mxu0 0.0
  %2626 = vmatpush1.msra.mxu0 0.0
  %2627 = vmatprep.subr.mxu0 0.0
  %2628 = vmatpush1.msra.mxu0 0.0
  %2629 = vmatprep.subr.mxu0 0.0
  %2630 = vmatpush1.msra.mxu0 0.0
  %2631 = vmatprep.subr.mxu0 0.0
  %2632 = vmatpush1.msra.mxu0 0.0
  %2633 = vmatprep.subr.mxu0 0.0
  %2634 = vmatpush1.msra.mxu0 0.0
  %2635 = vmatprep.subr.mxu0 0.0
  %2636 = vmatpush1.msra.mxu0 %v2603
  %2637 = vmatprep.subr.mxu0 0.0
  %2638 = vmatpush2.msra.mxu0 0.0
  %2639 = vmatprep.subr.mxu0 0.0
  %2640 = vmatpush2.msra.mxu0 0.0
  %2641 = vmatprep.subr.mxu0 0.0
  %2642 = vmatpush2.msra.mxu0 0.0
  %2643 = vmatprep.subr.mxu0 0.0
  %2644 = vmatpush2.msra.mxu0 0.0
  %2645 = vmatprep.subr.mxu0 0.0
  %2646 = vmatpush2.msra.mxu0 0.0
  %2647 = vmatprep.subr.mxu0 0.0
  %2648 = vmatpush2.msra.mxu0 0.0
  %2649 = vmatprep.subr.mxu0 0.0
  %2650 = vmatpush2.msra.mxu0 0.0
  %2651 = vmatprep.subr.mxu0 0.0
  %2652 = vmatpush2.msra.mxu0 0.0
  %2653 = vmatprep.subr.mxu0 0.0
  %2654 = vmatpush2.msra.mxu0 0.0
  %2655 = vmatprep.subr.mxu0 0.0
  %2656 = vmatpush2.msra.mxu0 0.0
  %2657 = vmatprep.subr.mxu0 0.0
  %2658 = vmatpush2.msra.mxu0 0.0
  %2659 = vmatprep.subr.mxu0 0.0
  %2660 = vmatpush2.msra.mxu0 0.0
  %2661 = vmatprep.subr.mxu0 0.0
  %2662 = vmatpush2.msra.mxu0 0.0
  %2663 = vmatprep.subr.mxu0 0.0
  %2664 = vmatpush2.msra.mxu0 0.0
  %2665 = vmatprep.subr.mxu0 0.0
  %2666 = vmatpush2.msra.mxu0 0.0
  %2667 = vmatprep.subr.mxu0 0.0
  %2668 = vmatpush2.msra.mxu0 0.0
  %2669 = vmatprep.mubr.f32.mxu0 0.0
  %2670 = vmatmul.mubr.f32.gmra.mxu0 %v2600
  %v2671 = vpop.f32.mrf.mxu0
  %v2672 = vadd.f32 0.0, %v2671
  %v2673 = vpop.f32.mrf.mxu0
  %2674 = vdwg.mxu0
  %2675 = vmatprep.subr.mxu0 0.0
  %2676 = vmatpush1.msra.mxu0 %v2464
  %2677 = vmatprep.subr.mxu0 0.0
  %2678 = vmatpush1.msra.mxu0 %v2463
  %2679 = vmatprep.subr.mxu0 0.0
  %2680 = vmatpush1.msra.mxu0 %v2462
  %2681 = vmatprep.subr.mxu0 0.0
  %2682 = vmatpush1.msra.mxu0 %v2461
  %2683 = vmatprep.subr.mxu0 0.0
  %2684 = vmatpush1.msra.mxu0 %v2460
  %2685 = vmatprep.subr.mxu0 0.0
  %2686 = vmatpush1.msra.mxu0 %v2459
  %2687 = vmatprep.subr.mxu0 0.0
  %2688 = vmatpush1.msra.mxu0 %v2458
  %2689 = vmatprep.subr.mxu0 0.0
  %2690 = vmatpush1.msra.mxu0 %v2457
  %2691 = vmatprep.subr.mxu0 0.0
  %2692 = vmatpush1.msra.mxu0 %v2456
  %2693 = vmatprep.subr.mxu0 0.0
  %2694 = vmatpush1.msra.mxu0 %v2455
  %2695 = vmatprep.subr.mxu0 0.0
  %2696 = vmatpush1.msra.mxu0 %v2454
  %2697 = vmatprep.subr.mxu0 0.0
  %2698 = vmatpush1.msra.mxu0 %v2453
  %2699 = vmatprep.subr.mxu0 0.0
  %2700 = vmatpush1.msra.mxu0 %v2452
  %2701 = vmatprep.subr.mxu0 0.0
  %2702 = vmatpush1.msra.mxu0 %v2451
  %2703 = vmatprep.subr.mxu0 0.0
  %2704 = vmatpush1.msra.mxu0 %v2450
  %2705 = vmatprep.subr.mxu0 0.0
  %2706 = vmatpush1.msra.mxu0 %v2449
  %2707 = vmatprep.subr.mxu0 0.0
  %2708 = vmatpush2.msra.mxu0 0.0
  %2709 = vmatprep.subr.mxu0 0.0
  %2710 = vmatpush2.msra.mxu0 0.0
  %2711 = vmatprep.subr.mxu0 0.0
  %2712 = vmatpush2.msra.mxu0 0.0
  %2713 = vmatprep.subr.mxu0 0.0
  %2714 = vmatpush2.msra.mxu0 0.0
  %2715 = vmatprep.subr.mxu0 0.0
  %2716 = vmatpush2.msra.mxu0 0.0
  %2717 = vmatprep.subr.mxu0 0.0
  %2718 = vmatpush2.msra.mxu0 0.0
  %2719 = vmatprep.subr.mxu0 0.0
  %2720 = vmatpush2.msra.mxu0 0.0
  %2721 = vmatprep.subr.mxu0 0.0
  %2722 = vmatpush2.msra.mxu0 0.0
  %2723 = vmatprep.subr.mxu0 0.0
  %2724 = vmatpush2.msra.mxu0 0.0
  %2725 = vmatprep.subr.mxu0 0.0
  %2726 = vmatpush2.msra.mxu0 0.0
  %2727 = vmatprep.subr.mxu0 0.0
  %2728 = vmatpush2.msra.mxu0 0.0
  %2729 = vmatprep.subr.mxu0 0.0
  %2730 = vmatpush2.msra.mxu0 0.0
  %2731 = vmatprep.subr.mxu0 0.0
  %2732 = vmatpush2.msra.mxu0 0.0
  %2733 = vmatprep.subr.mxu0 0.0
  %2734 = vmatpush2.msra.mxu0 0.0
  %2735 = vmatprep.subr.mxu0 0.0
  %2736 = vmatpush2.msra.mxu0 0.0
  %2737 = vmatprep.subr.mxu0 0.0
  %2738 = vmatpush2.msra.mxu0 0.0
  %2739 = vmatprep.mubr.f32.mxu0 0.0
  %2740 = vmatmul.mubr.f32.gmra.mxu0 %v2672
  %v2741 = vpop.f32.mrf.mxu0
  %v2742 = vadd.f32 0.0, %v2741
  %v2743 = vpop.f32.mrf.mxu0
  %2744 = vdwg.mxu0
  %vm2745 = vcmask 517120
  %v2746 = vsel %vm2745, %v2742, 0.0
  %v2747 = vrot.slane %v2746, 4
  %v2748 = vadd.f32 %v2746, %v2747
  %v2749 = vrot.slane %v2748, 2
  %v2750 = vadd.f32 %v2748, %v2749
  %v2751 = vrot.slane %v2750, 1
  %v2752 = vadd.f32 %v2750, %v2751
  %v2753 = vmul.f32 %v2752, 0.5
  %v2754 = vmul.f32 %v2742, %v2742
  %v2755 = vsel %vm2745, %v2754, 0.0
  %v2756 = vrot.slane %v2755, 4
  %v2757 = vadd.f32 %v2755, %v2756
  %v2758 = vrot.slane %v2757, 2
  %v2759 = vadd.f32 %v2757, %v2758
  %v2760 = vrot.slane %v2759, 1
  %v2761 = vadd.f32 %v2759, %v2760
  %v2762 = vmul.f32 %v2761, 0.5
  %v2763 = vmul.f32 %v2753, %v2753
  %v2764 = vsub.f32 %v2762, %v2763
  %v2765 = vmax.f32 %v2764, 0.0
  %v2766 = vld [vmem:[%s18] sm:$0x1]
  %v2767 = vadd.f32 %v2765, 1e-05
  %v2768 = vrsqrt.pop %v2767
  %v2769 = vmul.f32 %v2766, %v2768
  %v2770 = vld [vmem:[%s19] sm:$0x1]
  %v2771 = vmul.f32 %v2753, %v2769
  %v2772 = vsub.f32 %v2770, %v2771
  %v2774 = vlaneseq
  %v2775 = vshrl.u32 %v2774, 7
  %v2776 = vsub.s32 0, %v2775
  %v2777 = vrot.slane %v2769, %v2776
  %v2779 = vmul.f32 %v2742, %v2777
  %v2781 = vlaneseq
  %v2782 = vshrl.u32 %v2781, 7
  %v2783 = vsub.s32 0, %v2782
  %v2784 = vrot.slane %v2772, %v2783
  %v2786 = vadd.f32 %v2779, %v2784
  %vm2787 = vcmp.ge.f32.partialorder %v2786, 0.0
  %v2788 = vmul.f32 %v2786, 0.2
  %v2789 = vsel %vm2787, %v2786, %v2788
  %v2790 = vld [vmem:[%s20] sm:$0xff]
  %v2791 = vld [vmem:[%s20 + $0x8] sm:$0xff]
  %v2792 = vld [vmem:[%s20 + $0x10] sm:$0xff]
  %v2793 = vld [vmem:[%s20 + $0x18] sm:$0xff]
  %v2794 = vld [vmem:[%s20 + $0x20] sm:$0xff]
  %v2795 = vld [vmem:[%s20 + $0x28] sm:$0xff]
  %v2796 = vld [vmem:[%s20 + $0x30] sm:$0xff]
  %v2797 = vld [vmem:[%s20 + $0x38] sm:$0xff]
  %v2798 = vld [vmem:[#allocation3] sm:$0x1]
  %v2800 = vlaneseq
  %v2801 = vshrl.u32 %v2800, 7
  %v2802 = vsub.s32 0, %v2801
  %v2803 = vrot.slane %v2798, %v2802
  %v2806 = vsel %vm774, %v2789, 0
  %2808 = vmatprep.subr.mxu0 0.0
  %2809 = vmatpush1.msra.mxu0 0.0
  %2810 = vmatprep.subr.mxu0 0.0
  %2811 = vmatpush1.msra.mxu0 0.0
  %2812 = vmatprep.subr.mxu0 0.0
  %2813 = vmatpush1.msra.mxu0 0.0
  %2814 = vmatprep.subr.mxu0 0.0
  %2815 = vmatpush1.msra.mxu0 0.0
  %2816 = vmatprep.subr.mxu0 0.0
  %2817 = vmatpush1.msra.mxu0 0.0
  %2818 = vmatprep.subr.mxu0 0.0
  %2819 = vmatpush1.msra.mxu0 0.0
  %2820 = vmatprep.subr.mxu0 0.0
  %2821 = vmatpush1.msra.mxu0 0.0
  %2822 = vmatprep.subr.mxu0 0.0
  %2823 = vmatpush1.msra.mxu0 0.0
  %2824 = vmatprep.subr.mxu0 0.0
  %2825 = vmatpush1.msra.mxu0 %v2797
  %2826 = vmatprep.subr.mxu0 0.0
  %2827 = vmatpush1.msra.mxu0 %v2796
  %2828 = vmatprep.subr.mxu0 0.0
  %2829 = vmatpush1.msra.mxu0 %v2795
  %2830 = vmatprep.subr.mxu0 0.0
  %2831 = vmatpush1.msra.mxu0 %v2794
  %2832 = vmatprep.subr.mxu0 0.0
  %2833 = vmatpush1.msra.mxu0 %v2793
  %2834 = vmatprep.subr.mxu0 0.0
  %2835 = vmatpush1.msra.mxu0 %v2792
  %2836 = vmatprep.subr.mxu0 0.0
  %2837 = vmatpush1.msra.mxu0 %v2791
  %2838 = vmatprep.subr.mxu0 0.0
  %2839 = vmatpush1.msra.mxu0 %v2790
  %2840 = vmatprep.subr.mxu0 0.0
  %2841 = vmatpush2.msra.mxu0 0.0
  %2842 = vmatprep.subr.mxu0 0.0
  %2843 = vmatpush2.msra.mxu0 0.0
  %2844 = vmatprep.subr.mxu0 0.0
  %2845 = vmatpush2.msra.mxu0 0.0
  %2846 = vmatprep.subr.mxu0 0.0
  %2847 = vmatpush2.msra.mxu0 0.0
  %2848 = vmatprep.subr.mxu0 0.0
  %2849 = vmatpush2.msra.mxu0 0.0
  %2850 = vmatprep.subr.mxu0 0.0
  %2851 = vmatpush2.msra.mxu0 0.0
  %2852 = vmatprep.subr.mxu0 0.0
  %2853 = vmatpush2.msra.mxu0 0.0
  %2854 = vmatprep.subr.mxu0 0.0
  %2855 = vmatpush2.msra.mxu0 0.0
  %2856 = vmatprep.subr.mxu0 0.0
  %2857 = vmatpush2.msra.mxu0 0.0
  %2858 = vmatprep.subr.mxu0 0.0
  %2859 = vmatpush2.msra.mxu0 0.0
  %2860 = vmatprep.subr.mxu0 0.0
  %2861 = vmatpush2.msra.mxu0 0.0
  %2862 = vmatprep.subr.mxu0 0.0
  %2863 = vmatpush2.msra.mxu0 0.0
  %2864 = vmatprep.subr.mxu0 0.0
  %2865 = vmatpush2.msra.mxu0 0.0
  %2866 = vmatprep.subr.mxu0 0.0
  %2867 = vmatpush2.msra.mxu0 0.0
  %2868 = vmatprep.subr.mxu0 0.0
  %2869 = vmatpush2.msra.mxu0 0.0
  %2870 = vmatprep.subr.mxu0 0.0
  %2871 = vmatpush2.msra.mxu0 0.0
  %2872 = vmatprep.mubr.f32.mxu0 0.0
  %2873 = vmatmul.mubr.f32.gmra.mxu0 %v2806
  %v2874 = vpop.f32.mrf.mxu0
  %v2875 = vadd.f32 %v2803, %v2874
  %v2876 = vpop.f32.mrf.mxu0
  %2877 = vdwg.mxu0
  %vm2878 = vcmask 1024
  %2879 = vst.msk [vmem:[%s22] sm:$0x3] %vm2878, %v2875
  // Predicated region
  $region90: #{discriminator_forward.1} parent=0 // pred_check
    _
  $region91: #{discriminator_forward.1} parent=0 // pred_check_branch
    %2881 = sbr.rel (0) target = $region93
  $region92: #{discriminator_forward.1} parent=0 // pred_region
    _
  $region93: #{discriminator_forward.1} parent=0 // pred_fallthru
    _
  // Predicated region
  $region94: #{discriminator_forward.1} parent=0 // pred_check
    _
  $region95: #{discriminator_forward.1} parent=0 // pred_check_branch
    %2883 = sbr.rel (0) target = $region97
  $region96: #{discriminator_forward.1} parent=0 // pred_region
    _
  $region97: #{discriminator_forward.1} parent=0 // pred_fallthru
    _

</llo_original>
